<compile_context>
chip_gen: v6e
topology: v6e:2x2x1
jax: 0.10.0
libtpu: 0.0.40
codegen_flags: <defaults>
</compile_context>

<pallas_src>
import functools

import jax
import jax.numpy as jnp
from jax.experimental import pallas as pl
from jax.experimental.pallas import tpu as pltpu

CLASSES = 10
HIDDEN = (512, 256, 128, 64)
LANE = 128          # lane width / MXU alignment
BATCH_TILE = 128    # rows per grid step fed to the MXU


def _round_up(n, m):
    return (n + m - 1) // m * m


def _fcn_kernel(x_ref,
                w1_ref, b1_ref,
                w2_ref, b2_ref,
                w3_ref, b3_ref,
                w4_ref, b4_ref,
                w5_ref, b5_ref,
                o_ref):
    """One batch tile: 5 MXU matmuls (bf16 in, f32 acc), f32 bias+ReLU epilogue."""

    def layer(h_bf16, w_ref, b_ref, relu):
        acc = jnp.dot(h_bf16, w_ref[...], preferred_element_type=jnp.float32)
        acc = acc + b_ref[...]          # bias add on the f32 accumulator (VPU)
        if relu:
            acc = jnp.maximum(acc, 0.0)
        return acc

    h = x_ref[...]                                        # bf16 [TB, F_pad]
    h = layer(h, w1_ref, b1_ref, True).astype(jnp.bfloat16)
    h = layer(h, w2_ref, b2_ref, True).astype(jnp.bfloat16)
    h = layer(h, w3_ref, b3_ref, True).astype(jnp.bfloat16)
    h = layer(h, w4_ref, b4_ref, True).astype(jnp.bfloat16)
    # Final layer: no activation (matches torch forward; softmax is unused).
    o_ref[...] = layer(h, w5_ref, b5_ref, False).astype(o_ref.dtype)


def init_params(key, input_size, classes=CLASSES):
    """Deterministic init mimicking nn.Linear default (uniform +/- 1/sqrt(fan_in)).

    Weights stored as [in, out] (transposed vs torch's [out, in]) so each layer
    is x @ W + b.  Returned in f32; padding/casting happens in fcn_forward.
    """
    dims = (input_size,) + HIDDEN + (classes,)
    params = []
    for i in range(len(dims) - 1):
        fan_in, fan_out = dims[i], dims[i + 1]
        key, kw, kb = jax.random.split(key, 3)
        bound = 1.0 / jnp.sqrt(jnp.float32(fan_in))
        w = jax.random.uniform(kw, (fan_in, fan_out), jnp.float32, -bound, bound)
        b = jax.random.uniform(kb, (1, fan_out), jnp.float32, -bound, bound)
        params.append((w, b))
    return params


def _pad_params(params):
    """Zero-pad every layer to 128-lane multiples; weights -> bf16, biases stay f32."""
    padded = []
    for w, b in params:
        fin, fout = w.shape
        fin_p, fout_p = _round_up(fin, LANE), _round_up(fout, LANE)
        w_p = jnp.zeros((fin_p, fout_p), jnp.float32).at[:fin, :fout].set(w)
        b_p = jnp.zeros((1, fout_p), jnp.float32).at[:, :fout].set(b)
        padded.append((w_p.astype(jnp.bfloat16), b_p))
    return padded


@functools.partial(jax.jit, static_argnames=("classes",))
def fcn_forward(x_nchw, params, classes=CLASSES):
    B = x_nchw.shape[0]
    x = x_nchw.reshape(B, -1).astype(jnp.float32)   # torch: x.view(x.size(0), -1)
    F = x.shape[1]

    # --- pad everything to MXU/lane-friendly shapes -------------------------
    padded_params = _pad_params(params)
    F_pad = padded_params[0][0].shape[0]
    N_pad = padded_params[-1][0].shape[1]

    TB = BATCH_TILE
    B_pad = _round_up(max(B, 1), TB)
    x_pad = jnp.zeros((B_pad, F_pad), jnp.bfloat16)
    x_pad = x_pad.at[:B, :F].set(x.astype(jnp.bfloat16))

    flat_args = [x_pad]
    for w, b in padded_params:
        flat_args.extend([w, b])

    # --- specs: activations streamed over the batch grid, weights resident --
    in_specs = [pl.BlockSpec((TB, F_pad), lambda i: (i, 0))]
    for w, b in padded_params:
        in_specs.append(pl.BlockSpec(w.shape, lambda i: (0, 0)))   # resident
        in_specs.append(pl.BlockSpec(b.shape, lambda i: (0, 0)))   # resident
    out_spec = pl.BlockSpec((TB, N_pad), lambda i: (i, 0))

    grid = (B_pad // TB,)

    # --- cost estimate (weights fetched once, activations streamed) ---------
    flops = 2 * B_pad * sum(w.shape[0] * w.shape[1] for w, _ in padded_params)
    bytes_accessed = (x_pad.size * 2                                  # bf16 in
                      + sum(w.size * 2 + b.size * 4 for w, b in padded_params)
                      + B_pad * N_pad * 4)                            # f32 out
    cost = pl.CostEstimate(flops=flops, transcendentals=0,
                           bytes_accessed=bytes_accessed)

    out_pad = pl.pallas_call(
        _fcn_kernel,
        out_shape=jax.ShapeDtypeStruct((B_pad, N_pad), jnp.float32),
        grid=grid,
        in_specs=in_specs,
        out_specs=out_spec,
        compiler_params=pltpu.CompilerParams(
            dimension_semantics=("parallel",),
            vmem_limit_bytes=24 << 20,
        ),
        cost_estimate=cost,
    )(*flat_args)

    return out_pad[:B, :classes]


def fcn_reference(x_nchw, params):
    """Pure-JAX reference mirroring the kernel's bf16-weight / f32-accum numerics."""
    h = x_nchw.reshape(x_nchw.shape[0], -1).astype(jnp.bfloat16)
    for i, (w, b) in enumerate(params):
        acc = jnp.dot(h, w.astype(jnp.bfloat16),
                      preferred_element_type=jnp.float32) + b
        if i < len(params) - 1:
            acc = jnp.maximum(acc, 0.0)
            h = acc.astype(jnp.bfloat16)
        else:
            h = acc
    return h


if __name__ == "__main__":
    key = jax.random.PRNGKey(0)
    kx, kp = jax.random.split(key)

    # Small NCHW input: batch=2, channels=4, spatial=16x16 -> input_size=1024.
    B, C, H, W = 2, 4, 16, 16
    x = jax.random.normal(kx, (B, C, H, W), jnp.float32)

    params = init_params(kp, input_size=C * H * W, classes=CLASSES)

    out = fcn_forward(x, params)
    out = jax.block_until_ready(out)

    ref = fcn_reference(x, params)
    assert out.shape == (B, CLASSES), out.shape
    max_err = jnp.max(jnp.abs(out - ref))
    assert jnp.allclose(out, ref, atol=5e-3, rtol=5e-3), f"max abs err {max_err}"

    print("KERNEL_OK")
</pallas_src>

<mosaic_0001>
module attributes {stable_mosaic.version = 11 : i64} {
  func.func @_fcn_kernel(%arg0: i32, %arg1: memref<128x1024xbf16, #tpu.memory_space<vmem>>, %arg2: memref<1024x512xbf16, #tpu.memory_space<vmem>>, %arg3: memref<1x512xf32, #tpu.memory_space<vmem>>, %arg4: memref<512x256xbf16, #tpu.memory_space<vmem>>, %arg5: memref<1x256xf32, #tpu.memory_space<vmem>>, %arg6: memref<256x128xbf16, #tpu.memory_space<vmem>>, %arg7: memref<1x128xf32, #tpu.memory_space<vmem>>, %arg8: memref<128x128xbf16, #tpu.memory_space<vmem>>, %arg9: memref<1x128xf32, #tpu.memory_space<vmem>>, %arg10: memref<128x128xbf16, #tpu.memory_space<vmem>>, %arg11: memref<1x128xf32, #tpu.memory_space<vmem>>, %arg12: memref<128x128xf32, #tpu.memory_space<vmem>>) attributes {dimension_semantics = [#tpu.dimension_semantics<parallel>], iteration_bounds = array<i64: 1>, scalar_prefetch = 0 : i64, scratch_operands = 0 : i64, tpu.core_type = #tpu.core_type<tc>, window_params = [{transform_indices = @transform_0, window_bounds = array<i64: 128, 1024>}, {pipeline_mode = #tpu.pipeline_mode<synchronous>, transform_indices = @transform_1, window_bounds = array<i64: 1024, 512>}, {pipeline_mode = #tpu.pipeline_mode<synchronous>, transform_indices = @transform_2, window_bounds = array<i64: 1, 512>}, {pipeline_mode = #tpu.pipeline_mode<synchronous>, transform_indices = @transform_3, window_bounds = array<i64: 512, 256>}, {pipeline_mode = #tpu.pipeline_mode<synchronous>, transform_indices = @transform_4, window_bounds = array<i64: 1, 256>}, {pipeline_mode = #tpu.pipeline_mode<synchronous>, transform_indices = @transform_5, window_bounds = array<i64: 256, 128>}, {pipeline_mode = #tpu.pipeline_mode<synchronous>, transform_indices = @transform_6, window_bounds = array<i64: 1, 128>}, {pipeline_mode = #tpu.pipeline_mode<synchronous>, transform_indices = @transform_7, window_bounds = array<i64: 128, 128>}, {pipeline_mode = #tpu.pipeline_mode<synchronous>, transform_indices = @transform_8, window_bounds = array<i64: 1, 128>}, {pipeline_mode = #tpu.pipeline_mode<synchronous>, transform_indices = @transform_9, window_bounds = array<i64: 128, 128>}, {pipeline_mode = #tpu.pipeline_mode<synchronous>, transform_indices = @transform_10, window_bounds = array<i64: 1, 128>}, {transform_indices = @transform_11, window_bounds = array<i64: 128, 128>}]} {
    %c0 = arith.constant 0 : index
    %c0_0 = arith.constant 0 : index
    %0 = vector.load %arg1[%c0, %c0_0] : memref<128x1024xbf16, #tpu.memory_space<vmem>>, vector<128x1024xbf16>
    %c0_1 = arith.constant 0 : index
    %c0_2 = arith.constant 0 : index
    %1 = vector.load %arg2[%c0_1, %c0_2] : memref<1024x512xbf16, #tpu.memory_space<vmem>>, vector<1024x512xbf16>
    %cst = arith.constant dense<0.000000e+00> : vector<128x512xf32>
    %2 = tpu.matmul %0, %1, %cst {dimension_numbers = #tpu.dot_dimension_numbers<[1], [0], [0], [1], [0, 0, 1, 1], [], []>} : vector<128x1024xbf16>, vector<1024x512xbf16>, vector<128x512xf32> -> vector<128x512xf32>
    %c0_3 = arith.constant 0 : index
    %c0_4 = arith.constant 0 : index
    %3 = vector.load %arg3[%c0_3, %c0_4] : memref<1x512xf32, #tpu.memory_space<vmem>>, vector<1x512xf32>
    %4 = vector.broadcast %3 : vector<1x512xf32> to vector<128x512xf32>
    %5 = arith.addf %2, %4 : vector<128x512xf32>
    %cst_5 = arith.constant 0.000000e+00 : f32
    %6 = vector.broadcast %cst_5 : f32 to vector<128x512xf32>
    %7 = arith.maximumf %5, %6 : vector<128x512xf32>
    %8 = arith.truncf %7 : vector<128x512xf32> to vector<128x512xbf16>
    %c0_6 = arith.constant 0 : index
    %c0_7 = arith.constant 0 : index
    %9 = vector.load %arg4[%c0_6, %c0_7] : memref<512x256xbf16, #tpu.memory_space<vmem>>, vector<512x256xbf16>
    %cst_8 = arith.constant dense<0.000000e+00> : vector<128x256xf32>
    %10 = tpu.matmul %8, %9, %cst_8 {dimension_numbers = #tpu.dot_dimension_numbers<[1], [0], [0], [1], [0, 0, 1, 1], [], []>} : vector<128x512xbf16>, vector<512x256xbf16>, vector<128x256xf32> -> vector<128x256xf32>
    %c0_9 = arith.constant 0 : index
    %c0_10 = arith.constant 0 : index
    %11 = vector.load %arg5[%c0_9, %c0_10] : memref<1x256xf32, #tpu.memory_space<vmem>>, vector<1x256xf32>
    %12 = vector.broadcast %11 : vector<1x256xf32> to vector<128x256xf32>
    %13 = arith.addf %10, %12 : vector<128x256xf32>
    %cst_11 = arith.constant 0.000000e+00 : f32
    %14 = vector.broadcast %cst_11 : f32 to vector<128x256xf32>
    %15 = arith.maximumf %13, %14 : vector<128x256xf32>
    %16 = arith.truncf %15 : vector<128x256xf32> to vector<128x256xbf16>
    %c0_12 = arith.constant 0 : index
    %c0_13 = arith.constant 0 : index
    %17 = vector.load %arg6[%c0_12, %c0_13] : memref<256x128xbf16, #tpu.memory_space<vmem>>, vector<256x128xbf16>
    %cst_14 = arith.constant dense<0.000000e+00> : vector<128x128xf32>
    %18 = tpu.matmul %16, %17, %cst_14 {dimension_numbers = #tpu.dot_dimension_numbers<[1], [0], [0], [1], [0, 0, 1, 1], [], []>} : vector<128x256xbf16>, vector<256x128xbf16>, vector<128x128xf32> -> vector<128x128xf32>
    %c0_15 = arith.constant 0 : index
    %c0_16 = arith.constant 0 : index
    %19 = vector.load %arg7[%c0_15, %c0_16] : memref<1x128xf32, #tpu.memory_space<vmem>>, vector<1x128xf32>
    %20 = vector.broadcast %19 : vector<1x128xf32> to vector<128x128xf32>
    %21 = arith.addf %18, %20 : vector<128x128xf32>
    %cst_17 = arith.constant 0.000000e+00 : f32
    %22 = vector.broadcast %cst_17 : f32 to vector<128x128xf32>
    %23 = arith.maximumf %21, %22 : vector<128x128xf32>
    %24 = arith.truncf %23 : vector<128x128xf32> to vector<128x128xbf16>
    %c0_18 = arith.constant 0 : index
    %c0_19 = arith.constant 0 : index
    %25 = vector.load %arg8[%c0_18, %c0_19] : memref<128x128xbf16, #tpu.memory_space<vmem>>, vector<128x128xbf16>
    %cst_20 = arith.constant dense<0.000000e+00> : vector<128x128xf32>
    %26 = tpu.matmul %24, %25, %cst_20 {dimension_numbers = #tpu.dot_dimension_numbers<[1], [0], [0], [1], [0, 0, 1, 1], [], []>} : vector<128x128xbf16>, vector<128x128xbf16>, vector<128x128xf32> -> vector<128x128xf32>
    %c0_21 = arith.constant 0 : index
    %c0_22 = arith.constant 0 : index
    %27 = vector.load %arg9[%c0_21, %c0_22] : memref<1x128xf32, #tpu.memory_space<vmem>>, vector<1x128xf32>
    %28 = vector.broadcast %27 : vector<1x128xf32> to vector<128x128xf32>
    %29 = arith.addf %26, %28 : vector<128x128xf32>
    %cst_23 = arith.constant 0.000000e+00 : f32
    %30 = vector.broadcast %cst_23 : f32 to vector<128x128xf32>
    %31 = arith.maximumf %29, %30 : vector<128x128xf32>
    %32 = arith.truncf %31 : vector<128x128xf32> to vector<128x128xbf16>
    %c0_24 = arith.constant 0 : index
    %c0_25 = arith.constant 0 : index
    %33 = vector.load %arg10[%c0_24, %c0_25] : memref<128x128xbf16, #tpu.memory_space<vmem>>, vector<128x128xbf16>
    %cst_26 = arith.constant dense<0.000000e+00> : vector<128x128xf32>
    %34 = tpu.matmul %32, %33, %cst_26 {dimension_numbers = #tpu.dot_dimension_numbers<[1], [0], [0], [1], [0, 0, 1, 1], [], []>} : vector<128x128xbf16>, vector<128x128xbf16>, vector<128x128xf32> -> vector<128x128xf32>
    %c0_27 = arith.constant 0 : index
    %c0_28 = arith.constant 0 : index
    %35 = vector.load %arg11[%c0_27, %c0_28] : memref<1x128xf32, #tpu.memory_space<vmem>>, vector<1x128xf32>
    %36 = vector.broadcast %35 : vector<1x128xf32> to vector<128x128xf32>
    %37 = arith.addf %34, %36 : vector<128x128xf32>
    %c0_29 = arith.constant 0 : index
    %c0_30 = arith.constant 0 : index
    %38 = vector.load %arg12[%c0_29, %c0_30] : memref<128x128xf32, #tpu.memory_space<vmem>>, vector<128x128xf32>
    tpu.vector_store %arg12[%c0_29, %c0_30], %37 {strides = array<i32>} : memref<128x128xf32, #tpu.memory_space<vmem>>, vector<128x128xf32>,
    return
  }
  func.func @transform_0(%arg0: i32) -> (i32, i32) {
    %c0_i32 = arith.constant 0 : i32
    %c0_i32_0 = arith.constant 0 : i32
    return %arg0, %c0_i32 : i32, i32
  }
  func.func @transform_1(%arg0: i32) -> (i32, i32) {
    %c0_i32 = arith.constant 0 : i32
    %c0_i32_0 = arith.constant 0 : i32
    %c0_i32_1 = arith.constant 0 : i32
    return %c0_i32, %c0_i32_0 : i32, i32
  }
  func.func @transform_2(%arg0: i32) -> (i32, i32) {
    %c0_i32 = arith.constant 0 : i32
    %c0_i32_0 = arith.constant 0 : i32
    %c0_i32_1 = arith.constant 0 : i32
    return %c0_i32, %c0_i32_0 : i32, i32
  }
  func.func @transform_3(%arg0: i32) -> (i32, i32) {
    %c0_i32 = arith.constant 0 : i32
    %c0_i32_0 = arith.constant 0 : i32
    %c0_i32_1 = arith.constant 0 : i32
    return %c0_i32, %c0_i32_0 : i32, i32
  }
  func.func @transform_4(%arg0: i32) -> (i32, i32) {
    %c0_i32 = arith.constant 0 : i32
    %c0_i32_0 = arith.constant 0 : i32
    %c0_i32_1 = arith.constant 0 : i32
    return %c0_i32, %c0_i32_0 : i32, i32
  }
  func.func @transform_5(%arg0: i32) -> (i32, i32) {
    %c0_i32 = arith.constant 0 : i32
    %c0_i32_0 = arith.constant 0 : i32
    %c0_i32_1 = arith.constant 0 : i32
    return %c0_i32, %c0_i32_0 : i32, i32
  }
  func.func @transform_6(%arg0: i32) -> (i32, i32) {
    %c0_i32 = arith.constant 0 : i32
    %c0_i32_0 = arith.constant 0 : i32
    %c0_i32_1 = arith.constant 0 : i32
    return %c0_i32, %c0_i32_0 : i32, i32
  }
  func.func @transform_7(%arg0: i32) -> (i32, i32) {
    %c0_i32 = arith.constant 0 : i32
    %c0_i32_0 = arith.constant 0 : i32
    %c0_i32_1 = arith.constant 0 : i32
    return %c0_i32, %c0_i32_0 : i32, i32
  }
  func.func @transform_8(%arg0: i32) -> (i32, i32) {
    %c0_i32 = arith.constant 0 : i32
    %c0_i32_0 = arith.constant 0 : i32
    %c0_i32_1 = arith.constant 0 : i32
    return %c0_i32, %c0_i32_0 : i32, i32
  }
  func.func @transform_9(%arg0: i32) -> (i32, i32) {
    %c0_i32 = arith.constant 0 : i32
    %c0_i32_0 = arith.constant 0 : i32
    %c0_i32_1 = arith.constant 0 : i32
    return %c0_i32, %c0_i32_0 : i32, i32
  }
  func.func @transform_10(%arg0: i32) -> (i32, i32) {
    %c0_i32 = arith.constant 0 : i32
    %c0_i32_0 = arith.constant 0 : i32
    %c0_i32_1 = arith.constant 0 : i32
    return %c0_i32, %c0_i32_0 : i32, i32
  }
  func.func @transform_11(%arg0: i32) -> (i32, i32) {
    %c0_i32 = arith.constant 0 : i32
    %c0_i32_0 = arith.constant 0 : i32
    return %arg0, %c0_i32 : i32, i32
  }
}

</mosaic_0001>

<llo_original>
// kernel: fcn_forward.1
$region0: #{fcn_forward.1}
  #allocation0 [shape = 'u32[]', space=smem, size = 0x4, offset = 0x4, fixed_abs, tag = 'smem constant byte address 0x4 - core index']
  #allocation1 [shape = 'u32[144,128]{1,0:T(1,128)}', space=vmem, size = 0x12000, scoped, tag = 'internal scratch']
  %s0 = inlined_call_operand.vmem [shape: bf16[128,1024], index: 0, kind: input, shape index: {}]
  %s1 = inlined_call_operand.vmem [shape: bf16[1024,512], index: 1, kind: input, shape index: {}]
  %s2 = inlined_call_operand.vmem [shape: f32[1,512], index: 2, kind: input, shape index: {}]
  %s3 = inlined_call_operand.vmem [shape: bf16[512,256], index: 3, kind: input, shape index: {}]
  %s4 = inlined_call_operand.vmem [shape: f32[1,256], index: 4, kind: input, shape index: {}]
  %s5 = inlined_call_operand.vmem [shape: bf16[256,128], index: 5, kind: input, shape index: {}]
  %s6 = inlined_call_operand.vmem [shape: f32[1,128], index: 6, kind: input, shape index: {}]
  %s7 = inlined_call_operand.vmem [shape: bf16[128,128], index: 7, kind: input, shape index: {}]
  %s8 = inlined_call_operand.vmem [shape: f32[1,128], index: 8, kind: input, shape index: {}]
  %s9 = inlined_call_operand.vmem [shape: bf16[128,128], index: 9, kind: input, shape index: {}]
  %s10 = inlined_call_operand.vmem [shape: f32[1,128], index: 10, kind: input, shape index: {}]
  %s11 = inlined_call_operand.vmem [shape: f32[128,128], index: 11, kind: output, shape index: {}]
  %s12 = sld [smem:[#allocation0]]
  $region54: #{fcn_forward.1} parent=0
    _
  %s14 = ssub.s32 1, %s12
  %s15 = scalar_select 0, %s14, %s12
  // Predicated region
  $region2: #{fcn_forward.1} parent=0 // pred_check
    _
  $region3: #{fcn_forward.1} parent=0 // pred_check_branch
    %17 = sbr.rel (0) target = $region5
  $region4: #{fcn_forward.1} parent=0 // pred_region
    _
  $region5: #{fcn_forward.1} parent=0 // pred_fallthru
    _
  // Predicated region
  $region6: #{fcn_forward.1} parent=0 // pred_check
    _
  $region7: #{fcn_forward.1} parent=0 // pred_check_branch
    %19 = sbr.rel (0) target = $region9
  $region8: #{fcn_forward.1} parent=0 // pred_region
    _
  $region9: #{fcn_forward.1} parent=0 // pred_fallthru
    _
  // Predicated region
  $region10: #{fcn_forward.1} parent=0 // pred_check
    _
  $region11: #{fcn_forward.1} parent=0 // pred_check_branch
    %21 = sbr.rel (0) target = $region13
  $region12: #{fcn_forward.1} parent=0 // pred_region
    _
  $region13: #{fcn_forward.1} parent=0 // pred_fallthru
    _
  // Predicated region
  $region14: #{fcn_forward.1} parent=0 // pred_check
    _
  $region15: #{fcn_forward.1} parent=0 // pred_check_branch
    %23 = sbr.rel (0) target = $region17
  $region16: #{fcn_forward.1} parent=0 // pred_region
    _
  $region17: #{fcn_forward.1} parent=0 // pred_fallthru
    _
  // Predicated region
  $region18: #{fcn_forward.1} parent=0 // pred_check
    _
  $region19: #{fcn_forward.1} parent=0 // pred_check_branch
    %25 = sbr.rel (0) target = $region21
  $region20: #{fcn_forward.1} parent=0 // pred_region
    _
  $region21: #{fcn_forward.1} parent=0 // pred_fallthru
    _
  // Predicated region
  $region22: #{fcn_forward.1} parent=0 // pred_check
    _
  $region23: #{fcn_forward.1} parent=0 // pred_check_branch
    %27 = sbr.rel (0) target = $region25
  $region24: #{fcn_forward.1} parent=0 // pred_region
    _
  $region25: #{fcn_forward.1} parent=0 // pred_fallthru
    _
  // Predicated region
  $region26: #{fcn_forward.1} parent=0 // pred_check
    _
  $region27: #{fcn_forward.1} parent=0 // pred_check_branch
    %29 = sbr.rel (0) target = $region29
  $region28: #{fcn_forward.1} parent=0 // pred_region
    _
  $region29: #{fcn_forward.1} parent=0 // pred_fallthru
    _
  // Predicated region
  $region30: #{fcn_forward.1} parent=0 // pred_check
    _
  $region31: #{fcn_forward.1} parent=0 // pred_check_branch
    %31 = sbr.rel (0) target = $region33
  $region32: #{fcn_forward.1} parent=0 // pred_region
    _
  $region33: #{fcn_forward.1} parent=0 // pred_fallthru
    _
  // Predicated region
  $region34: #{fcn_forward.1} parent=0 // pred_check
    _
  $region35: #{fcn_forward.1} parent=0 // pred_check_branch
    %33 = sbr.rel (0) target = $region37
  $region36: #{fcn_forward.1} parent=0 // pred_region
    _
  $region37: #{fcn_forward.1} parent=0 // pred_fallthru
    _
  // Predicated region
  $region38: #{fcn_forward.1} parent=0 // pred_check
    _
  $region39: #{fcn_forward.1} parent=0 // pred_check_branch
    %35 = sbr.rel (0) target = $region41
  $region40: #{fcn_forward.1} parent=0 // pred_region
    _
  $region41: #{fcn_forward.1} parent=0 // pred_fallthru
    _
  // Predicated region
  $region42: #{fcn_forward.1} parent=0 // pred_check
    _
  $region43: #{fcn_forward.1} parent=0 // pred_check_branch
    %37 = sbr.rel (0) target = $region45
  $region44: #{fcn_forward.1} parent=0 // pred_region
    _
  $region45: #{fcn_forward.1} parent=0 // pred_fallthru
    _
  %v39 = vld [vmem:[%s0] sm:$0xff]
  %v40 = vld [vmem:[%s0 + $0x8] sm:$0xff]
  %v41 = vld [vmem:[%s0 + $0x10] sm:$0xff]
  %v42 = vld [vmem:[%s0 + $0x18] sm:$0xff]
  %v43 = vld [vmem:[%s0 + $0x20] sm:$0xff]
  %v44 = vld [vmem:[%s0 + $0x28] sm:$0xff]
  %v45 = vld [vmem:[%s0 + $0x30] sm:$0xff]
  %v46 = vld [vmem:[%s0 + $0x38] sm:$0xff]
  %v47 = vld [vmem:[%s0 + $0x40] sm:$0xff]
  %v48 = vld [vmem:[%s0 + $0x48] sm:$0xff]
  %v49 = vld [vmem:[%s0 + $0x50] sm:$0xff]
  %v50 = vld [vmem:[%s0 + $0x58] sm:$0xff]
  %v51 = vld [vmem:[%s0 + $0x60] sm:$0xff]
  %v52 = vld [vmem:[%s0 + $0x68] sm:$0xff]
  %v53 = vld [vmem:[%s0 + $0x70] sm:$0xff]
  %v54 = vld [vmem:[%s0 + $0x78] sm:$0xff]
  %v55 = vld [vmem:[%s0 + $0x80] sm:$0xff]
  %v56 = vld [vmem:[%s0 + $0x88] sm:$0xff]
  %v57 = vld [vmem:[%s0 + $0x90] sm:$0xff]
  %v58 = vld [vmem:[%s0 + $0x98] sm:$0xff]
  %v59 = vld [vmem:[%s0 + $0xa0] sm:$0xff]
  %v60 = vld [vmem:[%s0 + $0xa8] sm:$0xff]
  %v61 = vld [vmem:[%s0 + $0xb0] sm:$0xff]
  %v62 = vld [vmem:[%s0 + $0xb8] sm:$0xff]
  %v63 = vld [vmem:[%s0 + $0xc0] sm:$0xff]
  %v64 = vld [vmem:[%s0 + $0xc8] sm:$0xff]
  %v65 = vld [vmem:[%s0 + $0xd0] sm:$0xff]
  %v66 = vld [vmem:[%s0 + $0xd8] sm:$0xff]
  %v67 = vld [vmem:[%s0 + $0xe0] sm:$0xff]
  %v68 = vld [vmem:[%s0 + $0xe8] sm:$0xff]
  %v69 = vld [vmem:[%s0 + $0xf0] sm:$0xff]
  %v70 = vld [vmem:[%s0 + $0xf8] sm:$0xff]
  %v71 = vld [vmem:[%s0 + $0x100] sm:$0xff]
  %v72 = vld [vmem:[%s0 + $0x108] sm:$0xff]
  %v73 = vld [vmem:[%s0 + $0x110] sm:$0xff]
  %v74 = vld [vmem:[%s0 + $0x118] sm:$0xff]
  %v75 = vld [vmem:[%s0 + $0x120] sm:$0xff]
  %v76 = vld [vmem:[%s0 + $0x128] sm:$0xff]
  %v77 = vld [vmem:[%s0 + $0x130] sm:$0xff]
  %v78 = vld [vmem:[%s0 + $0x138] sm:$0xff]
  %v79 = vld [vmem:[%s0 + $0x140] sm:$0xff]
  %v80 = vld [vmem:[%s0 + $0x148] sm:$0xff]
  %v81 = vld [vmem:[%s0 + $0x150] sm:$0xff]
  %v82 = vld [vmem:[%s0 + $0x158] sm:$0xff]
  %v83 = vld [vmem:[%s0 + $0x160] sm:$0xff]
  %v84 = vld [vmem:[%s0 + $0x168] sm:$0xff]
  %v85 = vld [vmem:[%s0 + $0x170] sm:$0xff]
  %v86 = vld [vmem:[%s0 + $0x178] sm:$0xff]
  %v87 = vld [vmem:[%s0 + $0x180] sm:$0xff]
  %v88 = vld [vmem:[%s0 + $0x188] sm:$0xff]
  %v89 = vld [vmem:[%s0 + $0x190] sm:$0xff]
  %v90 = vld [vmem:[%s0 + $0x198] sm:$0xff]
  %v91 = vld [vmem:[%s0 + $0x1a0] sm:$0xff]
  %v92 = vld [vmem:[%s0 + $0x1a8] sm:$0xff]
  %v93 = vld [vmem:[%s0 + $0x1b0] sm:$0xff]
  %v94 = vld [vmem:[%s0 + $0x1b8] sm:$0xff]
  %v95 = vld [vmem:[%s0 + $0x1c0] sm:$0xff]
  %v96 = vld [vmem:[%s0 + $0x1c8] sm:$0xff]
  %v97 = vld [vmem:[%s0 + $0x1d0] sm:$0xff]
  %v98 = vld [vmem:[%s0 + $0x1d8] sm:$0xff]
  %v99 = vld [vmem:[%s0 + $0x1e0] sm:$0xff]
  %v100 = vld [vmem:[%s0 + $0x1e8] sm:$0xff]
  %v101 = vld [vmem:[%s0 + $0x1f0] sm:$0xff]
  %v102 = vld [vmem:[%s0 + $0x1f8] sm:$0xff]
  %v103 = vld [vmem:[%s1] sm:$0xff]
  %v104 = vld [vmem:[%s1 + $0x8] sm:$0xff]
  %v105 = vld [vmem:[%s1 + $0x10] sm:$0xff]
  %v106 = vld [vmem:[%s1 + $0x18] sm:$0xff]
  %v107 = vld [vmem:[%s1 + $0x20] sm:$0xff]
  %v108 = vld [vmem:[%s1 + $0x28] sm:$0xff]
  %v109 = vld [vmem:[%s1 + $0x30] sm:$0xff]
  %v110 = vld [vmem:[%s1 + $0x38] sm:$0xff]
  %v111 = vld [vmem:[%s1 + $0x40] sm:$0xff]
  %v112 = vld [vmem:[%s1 + $0x48] sm:$0xff]
  %v113 = vld [vmem:[%s1 + $0x50] sm:$0xff]
  %v114 = vld [vmem:[%s1 + $0x58] sm:$0xff]
  %v115 = vld [vmem:[%s1 + $0x60] sm:$0xff]
  %v116 = vld [vmem:[%s1 + $0x68] sm:$0xff]
  %v117 = vld [vmem:[%s1 + $0x70] sm:$0xff]
  %v118 = vld [vmem:[%s1 + $0x78] sm:$0xff]
  %v119 = vld [vmem:[%s1 + $0x80] sm:$0xff]
  %v120 = vld [vmem:[%s1 + $0x88] sm:$0xff]
  %v121 = vld [vmem:[%s1 + $0x90] sm:$0xff]
  %v122 = vld [vmem:[%s1 + $0x98] sm:$0xff]
  %v123 = vld [vmem:[%s1 + $0xa0] sm:$0xff]
  %v124 = vld [vmem:[%s1 + $0xa8] sm:$0xff]
  %v125 = vld [vmem:[%s1 + $0xb0] sm:$0xff]
  %v126 = vld [vmem:[%s1 + $0xb8] sm:$0xff]
  %v127 = vld [vmem:[%s1 + $0xc0] sm:$0xff]
  %v128 = vld [vmem:[%s1 + $0xc8] sm:$0xff]
  %v129 = vld [vmem:[%s1 + $0xd0] sm:$0xff]
  %v130 = vld [vmem:[%s1 + $0xd8] sm:$0xff]
  %v131 = vld [vmem:[%s1 + $0xe0] sm:$0xff]
  %v132 = vld [vmem:[%s1 + $0xe8] sm:$0xff]
  %v133 = vld [vmem:[%s1 + $0xf0] sm:$0xff]
  %v134 = vld [vmem:[%s1 + $0xf8] sm:$0xff]
  %v135 = vld [vmem:[%s1 + $0x100] sm:$0xff]
  %v136 = vld [vmem:[%s1 + $0x108] sm:$0xff]
  %v137 = vld [vmem:[%s1 + $0x110] sm:$0xff]
  %v138 = vld [vmem:[%s1 + $0x118] sm:$0xff]
  %v139 = vld [vmem:[%s1 + $0x120] sm:$0xff]
  %v140 = vld [vmem:[%s1 + $0x128] sm:$0xff]
  %v141 = vld [vmem:[%s1 + $0x130] sm:$0xff]
  %v142 = vld [vmem:[%s1 + $0x138] sm:$0xff]
  %v143 = vld [vmem:[%s1 + $0x140] sm:$0xff]
  %v144 = vld [vmem:[%s1 + $0x148] sm:$0xff]
  %v145 = vld [vmem:[%s1 + $0x150] sm:$0xff]
  %v146 = vld [vmem:[%s1 + $0x158] sm:$0xff]
  %v147 = vld [vmem:[%s1 + $0x160] sm:$0xff]
  %v148 = vld [vmem:[%s1 + $0x168] sm:$0xff]
  %v149 = vld [vmem:[%s1 + $0x170] sm:$0xff]
  %v150 = vld [vmem:[%s1 + $0x178] sm:$0xff]
  %v151 = vld [vmem:[%s1 + $0x180] sm:$0xff]
  %v152 = vld [vmem:[%s1 + $0x188] sm:$0xff]
  %v153 = vld [vmem:[%s1 + $0x190] sm:$0xff]
  %v154 = vld [vmem:[%s1 + $0x198] sm:$0xff]
  %v155 = vld [vmem:[%s1 + $0x1a0] sm:$0xff]
  %v156 = vld [vmem:[%s1 + $0x1a8] sm:$0xff]
  %v157 = vld [vmem:[%s1 + $0x1b0] sm:$0xff]
  %v158 = vld [vmem:[%s1 + $0x1b8] sm:$0xff]
  %v159 = vld [vmem:[%s1 + $0x1c0] sm:$0xff]
  %v160 = vld [vmem:[%s1 + $0x1c8] sm:$0xff]
  %v161 = vld [vmem:[%s1 + $0x1d0] sm:$0xff]
  %v162 = vld [vmem:[%s1 + $0x1d8] sm:$0xff]
  %v163 = vld [vmem:[%s1 + $0x1e0] sm:$0xff]
  %v164 = vld [vmem:[%s1 + $0x1e8] sm:$0xff]
  %v165 = vld [vmem:[%s1 + $0x1f0] sm:$0xff]
  %v166 = vld [vmem:[%s1 + $0x1f8] sm:$0xff]
  %v167 = vld [vmem:[%s1 + $0x200] sm:$0xff]
  %v168 = vld [vmem:[%s1 + $0x208] sm:$0xff]
  %v169 = vld [vmem:[%s1 + $0x210] sm:$0xff]
  %v170 = vld [vmem:[%s1 + $0x218] sm:$0xff]
  %v171 = vld [vmem:[%s1 + $0x220] sm:$0xff]
  %v172 = vld [vmem:[%s1 + $0x228] sm:$0xff]
  %v173 = vld [vmem:[%s1 + $0x230] sm:$0xff]
  %v174 = vld [vmem:[%s1 + $0x238] sm:$0xff]
  %v175 = vld [vmem:[%s1 + $0x240] sm:$0xff]
  %v176 = vld [vmem:[%s1 + $0x248] sm:$0xff]
  %v177 = vld [vmem:[%s1 + $0x250] sm:$0xff]
  %v178 = vld [vmem:[%s1 + $0x258] sm:$0xff]
  %v179 = vld [vmem:[%s1 + $0x260] sm:$0xff]
  %v180 = vld [vmem:[%s1 + $0x268] sm:$0xff]
  %v181 = vld [vmem:[%s1 + $0x270] sm:$0xff]
  %v182 = vld [vmem:[%s1 + $0x278] sm:$0xff]
  %v183 = vld [vmem:[%s1 + $0x280] sm:$0xff]
  %v184 = vld [vmem:[%s1 + $0x288] sm:$0xff]
  %v185 = vld [vmem:[%s1 + $0x290] sm:$0xff]
  %v186 = vld [vmem:[%s1 + $0x298] sm:$0xff]
  %v187 = vld [vmem:[%s1 + $0x2a0] sm:$0xff]
  %v188 = vld [vmem:[%s1 + $0x2a8] sm:$0xff]
  %v189 = vld [vmem:[%s1 + $0x2b0] sm:$0xff]
  %v190 = vld [vmem:[%s1 + $0x2b8] sm:$0xff]
  %v191 = vld [vmem:[%s1 + $0x2c0] sm:$0xff]
  %v192 = vld [vmem:[%s1 + $0x2c8] sm:$0xff]
  %v193 = vld [vmem:[%s1 + $0x2d0] sm:$0xff]
  %v194 = vld [vmem:[%s1 + $0x2d8] sm:$0xff]
  %v195 = vld [vmem:[%s1 + $0x2e0] sm:$0xff]
  %v196 = vld [vmem:[%s1 + $0x2e8] sm:$0xff]
  %v197 = vld [vmem:[%s1 + $0x2f0] sm:$0xff]
  %v198 = vld [vmem:[%s1 + $0x2f8] sm:$0xff]
  %v199 = vld [vmem:[%s1 + $0x300] sm:$0xff]
  %v200 = vld [vmem:[%s1 + $0x308] sm:$0xff]
  %v201 = vld [vmem:[%s1 + $0x310] sm:$0xff]
  %v202 = vld [vmem:[%s1 + $0x318] sm:$0xff]
  %v203 = vld [vmem:[%s1 + $0x320] sm:$0xff]
  %v204 = vld [vmem:[%s1 + $0x328] sm:$0xff]
  %v205 = vld [vmem:[%s1 + $0x330] sm:$0xff]
  %v206 = vld [vmem:[%s1 + $0x338] sm:$0xff]
  %v207 = vld [vmem:[%s1 + $0x340] sm:$0xff]
  %v208 = vld [vmem:[%s1 + $0x348] sm:$0xff]
  %v209 = vld [vmem:[%s1 + $0x350] sm:$0xff]
  %v210 = vld [vmem:[%s1 + $0x358] sm:$0xff]
  %v211 = vld [vmem:[%s1 + $0x360] sm:$0xff]
  %v212 = vld [vmem:[%s1 + $0x368] sm:$0xff]
  %v213 = vld [vmem:[%s1 + $0x370] sm:$0xff]
  %v214 = vld [vmem:[%s1 + $0x378] sm:$0xff]
  %v215 = vld [vmem:[%s1 + $0x380] sm:$0xff]
  %v216 = vld [vmem:[%s1 + $0x388] sm:$0xff]
  %v217 = vld [vmem:[%s1 + $0x390] sm:$0xff]
  %v218 = vld [vmem:[%s1 + $0x398] sm:$0xff]
  %v219 = vld [vmem:[%s1 + $0x3a0] sm:$0xff]
  %v220 = vld [vmem:[%s1 + $0x3a8] sm:$0xff]
  %v221 = vld [vmem:[%s1 + $0x3b0] sm:$0xff]
  %v222 = vld [vmem:[%s1 + $0x3b8] sm:$0xff]
  %v223 = vld [vmem:[%s1 + $0x3c0] sm:$0xff]
  %v224 = vld [vmem:[%s1 + $0x3c8] sm:$0xff]
  %v225 = vld [vmem:[%s1 + $0x3d0] sm:$0xff]
  %v226 = vld [vmem:[%s1 + $0x3d8] sm:$0xff]
  %v227 = vld [vmem:[%s1 + $0x3e0] sm:$0xff]
  %v228 = vld [vmem:[%s1 + $0x3e8] sm:$0xff]
  %v229 = vld [vmem:[%s1 + $0x3f0] sm:$0xff]
  %v230 = vld [vmem:[%s1 + $0x3f8] sm:$0xff]
  %v231 = vld [vmem:[%s1 + $0x400] sm:$0xff]
  %v232 = vld [vmem:[%s1 + $0x408] sm:$0xff]
  %v233 = vld [vmem:[%s1 + $0x410] sm:$0xff]
  %v234 = vld [vmem:[%s1 + $0x418] sm:$0xff]
  %v235 = vld [vmem:[%s1 + $0x420] sm:$0xff]
  %v236 = vld [vmem:[%s1 + $0x428] sm:$0xff]
  %v237 = vld [vmem:[%s1 + $0x430] sm:$0xff]
  %v238 = vld [vmem:[%s1 + $0x438] sm:$0xff]
  %v239 = vld [vmem:[%s1 + $0x440] sm:$0xff]
  %v240 = vld [vmem:[%s1 + $0x448] sm:$0xff]
  %v241 = vld [vmem:[%s1 + $0x450] sm:$0xff]
  %v242 = vld [vmem:[%s1 + $0x458] sm:$0xff]
  %v243 = vld [vmem:[%s1 + $0x460] sm:$0xff]
  %v244 = vld [vmem:[%s1 + $0x468] sm:$0xff]
  %v245 = vld [vmem:[%s1 + $0x470] sm:$0xff]
  %v246 = vld [vmem:[%s1 + $0x478] sm:$0xff]
  %v247 = vld [vmem:[%s1 + $0x480] sm:$0xff]
  %v248 = vld [vmem:[%s1 + $0x488] sm:$0xff]
  %v249 = vld [vmem:[%s1 + $0x490] sm:$0xff]
  %v250 = vld [vmem:[%s1 + $0x498] sm:$0xff]
  %v251 = vld [vmem:[%s1 + $0x4a0] sm:$0xff]
  %v252 = vld [vmem:[%s1 + $0x4a8] sm:$0xff]
  %v253 = vld [vmem:[%s1 + $0x4b0] sm:$0xff]
  %v254 = vld [vmem:[%s1 + $0x4b8] sm:$0xff]
  %v255 = vld [vmem:[%s1 + $0x4c0] sm:$0xff]
  %v256 = vld [vmem:[%s1 + $0x4c8] sm:$0xff]
  %v257 = vld [vmem:[%s1 + $0x4d0] sm:$0xff]
  %v258 = vld [vmem:[%s1 + $0x4d8] sm:$0xff]
  %v259 = vld [vmem:[%s1 + $0x4e0] sm:$0xff]
  %v260 = vld [vmem:[%s1 + $0x4e8] sm:$0xff]
  %v261 = vld [vmem:[%s1 + $0x4f0] sm:$0xff]
  %v262 = vld [vmem:[%s1 + $0x4f8] sm:$0xff]
  %v263 = vld [vmem:[%s1 + $0x500] sm:$0xff]
  %v264 = vld [vmem:[%s1 + $0x508] sm:$0xff]
  %v265 = vld [vmem:[%s1 + $0x510] sm:$0xff]
  %v266 = vld [vmem:[%s1 + $0x518] sm:$0xff]
  %v267 = vld [vmem:[%s1 + $0x520] sm:$0xff]
  %v268 = vld [vmem:[%s1 + $0x528] sm:$0xff]
  %v269 = vld [vmem:[%s1 + $0x530] sm:$0xff]
  %v270 = vld [vmem:[%s1 + $0x538] sm:$0xff]
  %v271 = vld [vmem:[%s1 + $0x540] sm:$0xff]
  %v272 = vld [vmem:[%s1 + $0x548] sm:$0xff]
  %v273 = vld [vmem:[%s1 + $0x550] sm:$0xff]
  %v274 = vld [vmem:[%s1 + $0x558] sm:$0xff]
  %v275 = vld [vmem:[%s1 + $0x560] sm:$0xff]
  %v276 = vld [vmem:[%s1 + $0x568] sm:$0xff]
  %v277 = vld [vmem:[%s1 + $0x570] sm:$0xff]
  %v278 = vld [vmem:[%s1 + $0x578] sm:$0xff]
  %v279 = vld [vmem:[%s1 + $0x580] sm:$0xff]
  %v280 = vld [vmem:[%s1 + $0x588] sm:$0xff]
  %v281 = vld [vmem:[%s1 + $0x590] sm:$0xff]
  %v282 = vld [vmem:[%s1 + $0x598] sm:$0xff]
  %v283 = vld [vmem:[%s1 + $0x5a0] sm:$0xff]
  %v284 = vld [vmem:[%s1 + $0x5a8] sm:$0xff]
  %v285 = vld [vmem:[%s1 + $0x5b0] sm:$0xff]
  %v286 = vld [vmem:[%s1 + $0x5b8] sm:$0xff]
  %v287 = vld [vmem:[%s1 + $0x5c0] sm:$0xff]
  %v288 = vld [vmem:[%s1 + $0x5c8] sm:$0xff]
  %v289 = vld [vmem:[%s1 + $0x5d0] sm:$0xff]
  %v290 = vld [vmem:[%s1 + $0x5d8] sm:$0xff]
  %v291 = vld [vmem:[%s1 + $0x5e0] sm:$0xff]
  %v292 = vld [vmem:[%s1 + $0x5e8] sm:$0xff]
  %v293 = vld [vmem:[%s1 + $0x5f0] sm:$0xff]
  %v294 = vld [vmem:[%s1 + $0x5f8] sm:$0xff]
  %v295 = vld [vmem:[%s1 + $0x600] sm:$0xff]
  %v296 = vld [vmem:[%s1 + $0x608] sm:$0xff]
  %v297 = vld [vmem:[%s1 + $0x610] sm:$0xff]
  %v298 = vld [vmem:[%s1 + $0x618] sm:$0xff]
  %v299 = vld [vmem:[%s1 + $0x620] sm:$0xff]
  %v300 = vld [vmem:[%s1 + $0x628] sm:$0xff]
  %v301 = vld [vmem:[%s1 + $0x630] sm:$0xff]
  %v302 = vld [vmem:[%s1 + $0x638] sm:$0xff]
  %v303 = vld [vmem:[%s1 + $0x640] sm:$0xff]
  %v304 = vld [vmem:[%s1 + $0x648] sm:$0xff]
  %v305 = vld [vmem:[%s1 + $0x650] sm:$0xff]
  %v306 = vld [vmem:[%s1 + $0x658] sm:$0xff]
  %v307 = vld [vmem:[%s1 + $0x660] sm:$0xff]
  %v308 = vld [vmem:[%s1 + $0x668] sm:$0xff]
  %v309 = vld [vmem:[%s1 + $0x670] sm:$0xff]
  %v310 = vld [vmem:[%s1 + $0x678] sm:$0xff]
  %v311 = vld [vmem:[%s1 + $0x680] sm:$0xff]
  %v312 = vld [vmem:[%s1 + $0x688] sm:$0xff]
  %v313 = vld [vmem:[%s1 + $0x690] sm:$0xff]
  %v314 = vld [vmem:[%s1 + $0x698] sm:$0xff]
  %v315 = vld [vmem:[%s1 + $0x6a0] sm:$0xff]
  %v316 = vld [vmem:[%s1 + $0x6a8] sm:$0xff]
  %v317 = vld [vmem:[%s1 + $0x6b0] sm:$0xff]
  %v318 = vld [vmem:[%s1 + $0x6b8] sm:$0xff]
  %v319 = vld [vmem:[%s1 + $0x6c0] sm:$0xff]
  %v320 = vld [vmem:[%s1 + $0x6c8] sm:$0xff]
  %v321 = vld [vmem:[%s1 + $0x6d0] sm:$0xff]
  %v322 = vld [vmem:[%s1 + $0x6d8] sm:$0xff]
  %v323 = vld [vmem:[%s1 + $0x6e0] sm:$0xff]
  %v324 = vld [vmem:[%s1 + $0x6e8] sm:$0xff]
  %v325 = vld [vmem:[%s1 + $0x6f0] sm:$0xff]
  %v326 = vld [vmem:[%s1 + $0x6f8] sm:$0xff]
  %v327 = vld [vmem:[%s1 + $0x700] sm:$0xff]
  %v328 = vld [vmem:[%s1 + $0x708] sm:$0xff]
  %v329 = vld [vmem:[%s1 + $0x710] sm:$0xff]
  %v330 = vld [vmem:[%s1 + $0x718] sm:$0xff]
  %v331 = vld [vmem:[%s1 + $0x720] sm:$0xff]
  %v332 = vld [vmem:[%s1 + $0x728] sm:$0xff]
  %v333 = vld [vmem:[%s1 + $0x730] sm:$0xff]
  %v334 = vld [vmem:[%s1 + $0x738] sm:$0xff]
  %v335 = vld [vmem:[%s1 + $0x740] sm:$0xff]
  %v336 = vld [vmem:[%s1 + $0x748] sm:$0xff]
  %v337 = vld [vmem:[%s1 + $0x750] sm:$0xff]
  %v338 = vld [vmem:[%s1 + $0x758] sm:$0xff]
  %v339 = vld [vmem:[%s1 + $0x760] sm:$0xff]
  %v340 = vld [vmem:[%s1 + $0x768] sm:$0xff]
  %v341 = vld [vmem:[%s1 + $0x770] sm:$0xff]
  %v342 = vld [vmem:[%s1 + $0x778] sm:$0xff]
  %v343 = vld [vmem:[%s1 + $0x780] sm:$0xff]
  %v344 = vld [vmem:[%s1 + $0x788] sm:$0xff]
  %v345 = vld [vmem:[%s1 + $0x790] sm:$0xff]
  %v346 = vld [vmem:[%s1 + $0x798] sm:$0xff]
  %v347 = vld [vmem:[%s1 + $0x7a0] sm:$0xff]
  %v348 = vld [vmem:[%s1 + $0x7a8] sm:$0xff]
  %v349 = vld [vmem:[%s1 + $0x7b0] sm:$0xff]
  %v350 = vld [vmem:[%s1 + $0x7b8] sm:$0xff]
  %v351 = vld [vmem:[%s1 + $0x7c0] sm:$0xff]
  %v352 = vld [vmem:[%s1 + $0x7c8] sm:$0xff]
  %v353 = vld [vmem:[%s1 + $0x7d0] sm:$0xff]
  %v354 = vld [vmem:[%s1 + $0x7d8] sm:$0xff]
  %v355 = vld [vmem:[%s1 + $0x7e0] sm:$0xff]
  %v356 = vld [vmem:[%s1 + $0x7e8] sm:$0xff]
  %v357 = vld [vmem:[%s1 + $0x7f0] sm:$0xff]
  %v358 = vld [vmem:[%s1 + $0x7f8] sm:$0xff]
  %v359 = vld [vmem:[%s2] sm:$0xf]
  %v361 = vlaneseq
  %v362 = vshrl.u32 %v361, 7
  %v363 = vsub.s32 0, %v362
  %v364 = vrot.slane %v359, %v363
  %v365 = vlaneseq
  %v366 = vshrl.u32 %v365, 7
  %v367 = vsub.s32 1, %v366
  %v368 = vrot.slane %v359, %v367
  %v369 = vlaneseq
  %v370 = vshrl.u32 %v369, 7
  %v371 = vsub.s32 2, %v370
  %v372 = vrot.slane %v359, %v371
  %v373 = vlaneseq
  %v374 = vshrl.u32 %v373, 7
  %v375 = vsub.s32 3, %v374
  %v376 = vrot.slane %v359, %v375
  %v445 = vunpack.c.l.b16 %v39
  %v446 = vunpack.c.h.b16 %v39
  %v447 = vunpack.c.l.b16 %v40
  %v448 = vunpack.c.h.b16 %v40
  %v449 = vunpack.c.l.b16 %v41
  %v450 = vunpack.c.h.b16 %v41
  %v451 = vunpack.c.l.b16 %v42
  %v452 = vunpack.c.h.b16 %v42
  %v453 = vunpack.c.l.b16 %v43
  %v454 = vunpack.c.h.b16 %v43
  %v455 = vunpack.c.l.b16 %v44
  %v456 = vunpack.c.h.b16 %v44
  %v457 = vunpack.c.l.b16 %v45
  %v458 = vunpack.c.h.b16 %v45
  %v459 = vunpack.c.l.b16 %v46
  %v460 = vunpack.c.h.b16 %v46
  %v461 = vunpack.c.l.b16 %v47
  %v462 = vunpack.c.h.b16 %v47
  %v463 = vunpack.c.l.b16 %v48
  %v464 = vunpack.c.h.b16 %v48
  %v465 = vunpack.c.l.b16 %v49
  %v466 = vunpack.c.h.b16 %v49
  %v467 = vunpack.c.l.b16 %v50
  %v468 = vunpack.c.h.b16 %v50
  %v469 = vunpack.c.l.b16 %v51
  %v470 = vunpack.c.h.b16 %v51
  %v471 = vunpack.c.l.b16 %v52
  %v472 = vunpack.c.h.b16 %v52
  %v473 = vunpack.c.l.b16 %v53
  %v474 = vunpack.c.h.b16 %v53
  %v475 = vunpack.c.l.b16 %v54
  %v476 = vunpack.c.h.b16 %v54
  %v477 = vunpack.c.l.b16 %v55
  %v478 = vunpack.c.h.b16 %v55
  %v479 = vunpack.c.l.b16 %v56
  %v480 = vunpack.c.h.b16 %v56
  %v481 = vunpack.c.l.b16 %v57
  %v482 = vunpack.c.h.b16 %v57
  %v483 = vunpack.c.l.b16 %v58
  %v484 = vunpack.c.h.b16 %v58
  %v485 = vunpack.c.l.b16 %v59
  %v486 = vunpack.c.h.b16 %v59
  %v487 = vunpack.c.l.b16 %v60
  %v488 = vunpack.c.h.b16 %v60
  %v489 = vunpack.c.l.b16 %v61
  %v490 = vunpack.c.h.b16 %v61
  %v491 = vunpack.c.l.b16 %v62
  %v492 = vunpack.c.h.b16 %v62
  %v493 = vunpack.c.l.b16 %v63
  %v494 = vunpack.c.h.b16 %v63
  %v495 = vunpack.c.l.b16 %v64
  %v496 = vunpack.c.h.b16 %v64
  %v497 = vunpack.c.l.b16 %v65
  %v498 = vunpack.c.h.b16 %v65
  %v499 = vunpack.c.l.b16 %v66
  %v500 = vunpack.c.h.b16 %v66
  %v501 = vunpack.c.l.b16 %v67
  %v502 = vunpack.c.h.b16 %v67
  %v503 = vunpack.c.l.b16 %v68
  %v504 = vunpack.c.h.b16 %v68
  %v505 = vunpack.c.l.b16 %v69
  %v506 = vunpack.c.h.b16 %v69
  %v507 = vunpack.c.l.b16 %v70
  %v508 = vunpack.c.h.b16 %v70
  %v509 = vunpack.c.l.b16 %v71
  %v510 = vunpack.c.h.b16 %v71
  %v511 = vunpack.c.l.b16 %v72
  %v512 = vunpack.c.h.b16 %v72
  %v513 = vunpack.c.l.b16 %v73
  %v514 = vunpack.c.h.b16 %v73
  %v515 = vunpack.c.l.b16 %v74
  %v516 = vunpack.c.h.b16 %v74
  %v517 = vunpack.c.l.b16 %v75
  %v518 = vunpack.c.h.b16 %v75
  %v519 = vunpack.c.l.b16 %v76
  %v520 = vunpack.c.h.b16 %v76
  %v521 = vunpack.c.l.b16 %v77
  %v522 = vunpack.c.h.b16 %v77
  %v523 = vunpack.c.l.b16 %v78
  %v524 = vunpack.c.h.b16 %v78
  %v525 = vunpack.c.l.b16 %v79
  %v526 = vunpack.c.h.b16 %v79
  %v527 = vunpack.c.l.b16 %v80
  %v528 = vunpack.c.h.b16 %v80
  %v529 = vunpack.c.l.b16 %v81
  %v530 = vunpack.c.h.b16 %v81
  %v531 = vunpack.c.l.b16 %v82
  %v532 = vunpack.c.h.b16 %v82
  %v533 = vunpack.c.l.b16 %v83
  %v534 = vunpack.c.h.b16 %v83
  %v535 = vunpack.c.l.b16 %v84
  %v536 = vunpack.c.h.b16 %v84
  %v537 = vunpack.c.l.b16 %v85
  %v538 = vunpack.c.h.b16 %v85
  %v539 = vunpack.c.l.b16 %v86
  %v540 = vunpack.c.h.b16 %v86
  %v541 = vunpack.c.l.b16 %v87
  %v542 = vunpack.c.h.b16 %v87
  %v543 = vunpack.c.l.b16 %v88
  %v544 = vunpack.c.h.b16 %v88
  %v545 = vunpack.c.l.b16 %v89
  %v546 = vunpack.c.h.b16 %v89
  %v547 = vunpack.c.l.b16 %v90
  %v548 = vunpack.c.h.b16 %v90
  %v549 = vunpack.c.l.b16 %v91
  %v550 = vunpack.c.h.b16 %v91
  %v551 = vunpack.c.l.b16 %v92
  %v552 = vunpack.c.h.b16 %v92
  %v553 = vunpack.c.l.b16 %v93
  %v554 = vunpack.c.h.b16 %v93
  %v555 = vunpack.c.l.b16 %v94
  %v556 = vunpack.c.h.b16 %v94
  %v557 = vunpack.c.l.b16 %v95
  %v558 = vunpack.c.h.b16 %v95
  %v559 = vunpack.c.l.b16 %v96
  %v560 = vunpack.c.h.b16 %v96
  %v561 = vunpack.c.l.b16 %v97
  %v562 = vunpack.c.h.b16 %v97
  %v563 = vunpack.c.l.b16 %v98
  %v564 = vunpack.c.h.b16 %v98
  %v565 = vunpack.c.l.b16 %v99
  %v566 = vunpack.c.h.b16 %v99
  %v567 = vunpack.c.l.b16 %v100
  %v568 = vunpack.c.h.b16 %v100
  %v569 = vunpack.c.l.b16 %v101
  %v570 = vunpack.c.h.b16 %v101
  %v571 = vunpack.c.l.b16 %v102
  %v572 = vunpack.c.h.b16 %v102
  %v573 = vpack.c.b16 %v453, %v445
  %v574 = vpack.c.b16 %v454, %v446
  %v575 = vpack.c.b16 %v455, %v447
  %v576 = vpack.c.b16 %v456, %v448
  %v577 = vpack.c.b16 %v457, %v449
  %v578 = vpack.c.b16 %v458, %v450
  %v579 = vpack.c.b16 %v459, %v451
  %v580 = vpack.c.b16 %v460, %v452
  %v581 = vpack.c.b16 %v469, %v461
  %v582 = vpack.c.b16 %v470, %v462
  %v583 = vpack.c.b16 %v471, %v463
  %v584 = vpack.c.b16 %v472, %v464
  %v585 = vpack.c.b16 %v473, %v465
  %v586 = vpack.c.b16 %v474, %v466
  %v587 = vpack.c.b16 %v475, %v467
  %v588 = vpack.c.b16 %v476, %v468
  %v589 = vpack.c.b16 %v485, %v477
  %v590 = vpack.c.b16 %v486, %v478
  %v591 = vpack.c.b16 %v487, %v479
  %v592 = vpack.c.b16 %v488, %v480
  %v593 = vpack.c.b16 %v489, %v481
  %v594 = vpack.c.b16 %v490, %v482
  %v595 = vpack.c.b16 %v491, %v483
  %v596 = vpack.c.b16 %v492, %v484
  %v597 = vpack.c.b16 %v501, %v493
  %v598 = vpack.c.b16 %v502, %v494
  %v599 = vpack.c.b16 %v503, %v495
  %v600 = vpack.c.b16 %v504, %v496
  %v601 = vpack.c.b16 %v505, %v497
  %v602 = vpack.c.b16 %v506, %v498
  %v603 = vpack.c.b16 %v507, %v499
  %v604 = vpack.c.b16 %v508, %v500
  %v605 = vpack.c.b16 %v517, %v509
  %v606 = vpack.c.b16 %v518, %v510
  %v607 = vpack.c.b16 %v519, %v511
  %v608 = vpack.c.b16 %v520, %v512
  %v609 = vpack.c.b16 %v521, %v513
  %v610 = vpack.c.b16 %v522, %v514
  %v611 = vpack.c.b16 %v523, %v515
  %v612 = vpack.c.b16 %v524, %v516
  %v613 = vpack.c.b16 %v533, %v525
  %v614 = vpack.c.b16 %v534, %v526
  %v615 = vpack.c.b16 %v535, %v527
  %v616 = vpack.c.b16 %v536, %v528
  %v617 = vpack.c.b16 %v537, %v529
  %v618 = vpack.c.b16 %v538, %v530
  %v619 = vpack.c.b16 %v539, %v531
  %v620 = vpack.c.b16 %v540, %v532
  %v621 = vpack.c.b16 %v549, %v541
  %v622 = vpack.c.b16 %v550, %v542
  %v623 = vpack.c.b16 %v551, %v543
  %v624 = vpack.c.b16 %v552, %v544
  %v625 = vpack.c.b16 %v553, %v545
  %v626 = vpack.c.b16 %v554, %v546
  %v627 = vpack.c.b16 %v555, %v547
  %v628 = vpack.c.b16 %v556, %v548
  %v629 = vpack.c.b16 %v565, %v557
  %v630 = vpack.c.b16 %v566, %v558
  %v631 = vpack.c.b16 %v567, %v559
  %v632 = vpack.c.b16 %v568, %v560
  %v633 = vpack.c.b16 %v569, %v561
  %v634 = vpack.c.b16 %v570, %v562
  %v635 = vpack.c.b16 %v571, %v563
  %v636 = vpack.c.b16 %v572, %v564
  %v957 = vunpack.c.l.b16 %v103
  %v958 = vunpack.c.h.b16 %v103
  %v959 = vunpack.c.l.b16 %v104
  %v960 = vunpack.c.h.b16 %v104
  %v961 = vunpack.c.l.b16 %v105
  %v962 = vunpack.c.h.b16 %v105
  %v963 = vunpack.c.l.b16 %v106
  %v964 = vunpack.c.h.b16 %v106
  %v965 = vunpack.c.l.b16 %v107
  %v966 = vunpack.c.h.b16 %v107
  %v967 = vunpack.c.l.b16 %v108
  %v968 = vunpack.c.h.b16 %v108
  %v969 = vunpack.c.l.b16 %v109
  %v970 = vunpack.c.h.b16 %v109
  %v971 = vunpack.c.l.b16 %v110
  %v972 = vunpack.c.h.b16 %v110
  %v973 = vunpack.c.l.b16 %v111
  %v974 = vunpack.c.h.b16 %v111
  %v975 = vunpack.c.l.b16 %v112
  %v976 = vunpack.c.h.b16 %v112
  %v977 = vunpack.c.l.b16 %v113
  %v978 = vunpack.c.h.b16 %v113
  %v979 = vunpack.c.l.b16 %v114
  %v980 = vunpack.c.h.b16 %v114
  %v981 = vunpack.c.l.b16 %v115
  %v982 = vunpack.c.h.b16 %v115
  %v983 = vunpack.c.l.b16 %v116
  %v984 = vunpack.c.h.b16 %v116
  %v985 = vunpack.c.l.b16 %v117
  %v986 = vunpack.c.h.b16 %v117
  %v987 = vunpack.c.l.b16 %v118
  %v988 = vunpack.c.h.b16 %v118
  %v989 = vunpack.c.l.b16 %v119
  %v990 = vunpack.c.h.b16 %v119
  %v991 = vunpack.c.l.b16 %v120
  %v992 = vunpack.c.h.b16 %v120
  %v993 = vunpack.c.l.b16 %v121
  %v994 = vunpack.c.h.b16 %v121
  %v995 = vunpack.c.l.b16 %v122
  %v996 = vunpack.c.h.b16 %v122
  %v997 = vunpack.c.l.b16 %v123
  %v998 = vunpack.c.h.b16 %v123
  %v999 = vunpack.c.l.b16 %v124
  %v1000 = vunpack.c.h.b16 %v124
  %v1001 = vunpack.c.l.b16 %v125
  %v1002 = vunpack.c.h.b16 %v125
  %v1003 = vunpack.c.l.b16 %v126
  %v1004 = vunpack.c.h.b16 %v126
  %v1005 = vunpack.c.l.b16 %v127
  %v1006 = vunpack.c.h.b16 %v127
  %v1007 = vunpack.c.l.b16 %v128
  %v1008 = vunpack.c.h.b16 %v128
  %v1009 = vunpack.c.l.b16 %v129
  %v1010 = vunpack.c.h.b16 %v129
  %v1011 = vunpack.c.l.b16 %v130
  %v1012 = vunpack.c.h.b16 %v130
  %v1013 = vunpack.c.l.b16 %v131
  %v1014 = vunpack.c.h.b16 %v131
  %v1015 = vunpack.c.l.b16 %v132
  %v1016 = vunpack.c.h.b16 %v132
  %v1017 = vunpack.c.l.b16 %v133
  %v1018 = vunpack.c.h.b16 %v133
  %v1019 = vunpack.c.l.b16 %v134
  %v1020 = vunpack.c.h.b16 %v134
  %v1021 = vunpack.c.l.b16 %v135
  %v1022 = vunpack.c.h.b16 %v135
  %v1023 = vunpack.c.l.b16 %v136
  %v1024 = vunpack.c.h.b16 %v136
  %v1025 = vunpack.c.l.b16 %v137
  %v1026 = vunpack.c.h.b16 %v137
  %v1027 = vunpack.c.l.b16 %v138
  %v1028 = vunpack.c.h.b16 %v138
  %v1029 = vunpack.c.l.b16 %v139
  %v1030 = vunpack.c.h.b16 %v139
  %v1031 = vunpack.c.l.b16 %v140
  %v1032 = vunpack.c.h.b16 %v140
  %v1033 = vunpack.c.l.b16 %v141
  %v1034 = vunpack.c.h.b16 %v141
  %v1035 = vunpack.c.l.b16 %v142
  %v1036 = vunpack.c.h.b16 %v142
  %v1037 = vunpack.c.l.b16 %v143
  %v1038 = vunpack.c.h.b16 %v143
  %v1039 = vunpack.c.l.b16 %v144
  %v1040 = vunpack.c.h.b16 %v144
  %v1041 = vunpack.c.l.b16 %v145
  %v1042 = vunpack.c.h.b16 %v145
  %v1043 = vunpack.c.l.b16 %v146
  %v1044 = vunpack.c.h.b16 %v146
  %v1045 = vunpack.c.l.b16 %v147
  %v1046 = vunpack.c.h.b16 %v147
  %v1047 = vunpack.c.l.b16 %v148
  %v1048 = vunpack.c.h.b16 %v148
  %v1049 = vunpack.c.l.b16 %v149
  %v1050 = vunpack.c.h.b16 %v149
  %v1051 = vunpack.c.l.b16 %v150
  %v1052 = vunpack.c.h.b16 %v150
  %v1053 = vunpack.c.l.b16 %v151
  %v1054 = vunpack.c.h.b16 %v151
  %v1055 = vunpack.c.l.b16 %v152
  %v1056 = vunpack.c.h.b16 %v152
  %v1057 = vunpack.c.l.b16 %v153
  %v1058 = vunpack.c.h.b16 %v153
  %v1059 = vunpack.c.l.b16 %v154
  %v1060 = vunpack.c.h.b16 %v154
  %v1061 = vunpack.c.l.b16 %v155
  %v1062 = vunpack.c.h.b16 %v155
  %v1063 = vunpack.c.l.b16 %v156
  %v1064 = vunpack.c.h.b16 %v156
  %v1065 = vunpack.c.l.b16 %v157
  %v1066 = vunpack.c.h.b16 %v157
  %v1067 = vunpack.c.l.b16 %v158
  %v1068 = vunpack.c.h.b16 %v158
  %v1069 = vunpack.c.l.b16 %v159
  %v1070 = vunpack.c.h.b16 %v159
  %v1071 = vunpack.c.l.b16 %v160
  %v1072 = vunpack.c.h.b16 %v160
  %v1073 = vunpack.c.l.b16 %v161
  %v1074 = vunpack.c.h.b16 %v161
  %v1075 = vunpack.c.l.b16 %v162
  %v1076 = vunpack.c.h.b16 %v162
  %v1077 = vunpack.c.l.b16 %v163
  %v1078 = vunpack.c.h.b16 %v163
  %v1079 = vunpack.c.l.b16 %v164
  %v1080 = vunpack.c.h.b16 %v164
  %v1081 = vunpack.c.l.b16 %v165
  %v1082 = vunpack.c.h.b16 %v165
  %v1083 = vunpack.c.l.b16 %v166
  %v1084 = vunpack.c.h.b16 %v166
  %v1085 = vunpack.c.l.b16 %v167
  %v1086 = vunpack.c.h.b16 %v167
  %v1087 = vunpack.c.l.b16 %v168
  %v1088 = vunpack.c.h.b16 %v168
  %v1089 = vunpack.c.l.b16 %v169
  %v1090 = vunpack.c.h.b16 %v169
  %v1091 = vunpack.c.l.b16 %v170
  %v1092 = vunpack.c.h.b16 %v170
  %v1093 = vunpack.c.l.b16 %v171
  %v1094 = vunpack.c.h.b16 %v171
  %v1095 = vunpack.c.l.b16 %v172
  %v1096 = vunpack.c.h.b16 %v172
  %v1097 = vunpack.c.l.b16 %v173
  %v1098 = vunpack.c.h.b16 %v173
  %v1099 = vunpack.c.l.b16 %v174
  %v1100 = vunpack.c.h.b16 %v174
  %v1101 = vunpack.c.l.b16 %v175
  %v1102 = vunpack.c.h.b16 %v175
  %v1103 = vunpack.c.l.b16 %v176
  %v1104 = vunpack.c.h.b16 %v176
  %v1105 = vunpack.c.l.b16 %v177
  %v1106 = vunpack.c.h.b16 %v177
  %v1107 = vunpack.c.l.b16 %v178
  %v1108 = vunpack.c.h.b16 %v178
  %v1109 = vunpack.c.l.b16 %v179
  %v1110 = vunpack.c.h.b16 %v179
  %v1111 = vunpack.c.l.b16 %v180
  %v1112 = vunpack.c.h.b16 %v180
  %v1113 = vunpack.c.l.b16 %v181
  %v1114 = vunpack.c.h.b16 %v181
  %v1115 = vunpack.c.l.b16 %v182
  %v1116 = vunpack.c.h.b16 %v182
  %v1117 = vunpack.c.l.b16 %v183
  %v1118 = vunpack.c.h.b16 %v183
  %v1119 = vunpack.c.l.b16 %v184
  %v1120 = vunpack.c.h.b16 %v184
  %v1121 = vunpack.c.l.b16 %v185
  %v1122 = vunpack.c.h.b16 %v185
  %v1123 = vunpack.c.l.b16 %v186
  %v1124 = vunpack.c.h.b16 %v186
  %v1125 = vunpack.c.l.b16 %v187
  %v1126 = vunpack.c.h.b16 %v187
  %v1127 = vunpack.c.l.b16 %v188
  %v1128 = vunpack.c.h.b16 %v188
  %v1129 = vunpack.c.l.b16 %v189
  %v1130 = vunpack.c.h.b16 %v189
  %v1131 = vunpack.c.l.b16 %v190
  %v1132 = vunpack.c.h.b16 %v190
  %v1133 = vunpack.c.l.b16 %v191
  %v1134 = vunpack.c.h.b16 %v191
  %v1135 = vunpack.c.l.b16 %v192
  %v1136 = vunpack.c.h.b16 %v192
  %v1137 = vunpack.c.l.b16 %v193
  %v1138 = vunpack.c.h.b16 %v193
  %v1139 = vunpack.c.l.b16 %v194
  %v1140 = vunpack.c.h.b16 %v194
  %v1141 = vunpack.c.l.b16 %v195
  %v1142 = vunpack.c.h.b16 %v195
  %v1143 = vunpack.c.l.b16 %v196
  %v1144 = vunpack.c.h.b16 %v196
  %v1145 = vunpack.c.l.b16 %v197
  %v1146 = vunpack.c.h.b16 %v197
  %v1147 = vunpack.c.l.b16 %v198
  %v1148 = vunpack.c.h.b16 %v198
  %v1149 = vunpack.c.l.b16 %v199
  %v1150 = vunpack.c.h.b16 %v199
  %v1151 = vunpack.c.l.b16 %v200
  %v1152 = vunpack.c.h.b16 %v200
  %v1153 = vunpack.c.l.b16 %v201
  %v1154 = vunpack.c.h.b16 %v201
  %v1155 = vunpack.c.l.b16 %v202
  %v1156 = vunpack.c.h.b16 %v202
  %v1157 = vunpack.c.l.b16 %v203
  %v1158 = vunpack.c.h.b16 %v203
  %v1159 = vunpack.c.l.b16 %v204
  %v1160 = vunpack.c.h.b16 %v204
  %v1161 = vunpack.c.l.b16 %v205
  %v1162 = vunpack.c.h.b16 %v205
  %v1163 = vunpack.c.l.b16 %v206
  %v1164 = vunpack.c.h.b16 %v206
  %v1165 = vunpack.c.l.b16 %v207
  %v1166 = vunpack.c.h.b16 %v207
  %v1167 = vunpack.c.l.b16 %v208
  %v1168 = vunpack.c.h.b16 %v208
  %v1169 = vunpack.c.l.b16 %v209
  %v1170 = vunpack.c.h.b16 %v209
  %v1171 = vunpack.c.l.b16 %v210
  %v1172 = vunpack.c.h.b16 %v210
  %v1173 = vunpack.c.l.b16 %v211
  %v1174 = vunpack.c.h.b16 %v211
  %v1175 = vunpack.c.l.b16 %v212
  %v1176 = vunpack.c.h.b16 %v212
  %v1177 = vunpack.c.l.b16 %v213
  %v1178 = vunpack.c.h.b16 %v213
  %v1179 = vunpack.c.l.b16 %v214
  %v1180 = vunpack.c.h.b16 %v214
  %v1181 = vunpack.c.l.b16 %v215
  %v1182 = vunpack.c.h.b16 %v215
  %v1183 = vunpack.c.l.b16 %v216
  %v1184 = vunpack.c.h.b16 %v216
  %v1185 = vunpack.c.l.b16 %v217
  %v1186 = vunpack.c.h.b16 %v217
  %v1187 = vunpack.c.l.b16 %v218
  %v1188 = vunpack.c.h.b16 %v218
  %v1189 = vunpack.c.l.b16 %v219
  %v1190 = vunpack.c.h.b16 %v219
  %v1191 = vunpack.c.l.b16 %v220
  %v1192 = vunpack.c.h.b16 %v220
  %v1193 = vunpack.c.l.b16 %v221
  %v1194 = vunpack.c.h.b16 %v221
  %v1195 = vunpack.c.l.b16 %v222
  %v1196 = vunpack.c.h.b16 %v222
  %v1197 = vunpack.c.l.b16 %v223
  %v1198 = vunpack.c.h.b16 %v223
  %v1199 = vunpack.c.l.b16 %v224
  %v1200 = vunpack.c.h.b16 %v224
  %v1201 = vunpack.c.l.b16 %v225
  %v1202 = vunpack.c.h.b16 %v225
  %v1203 = vunpack.c.l.b16 %v226
  %v1204 = vunpack.c.h.b16 %v226
  %v1205 = vunpack.c.l.b16 %v227
  %v1206 = vunpack.c.h.b16 %v227
  %v1207 = vunpack.c.l.b16 %v228
  %v1208 = vunpack.c.h.b16 %v228
  %v1209 = vunpack.c.l.b16 %v229
  %v1210 = vunpack.c.h.b16 %v229
  %v1211 = vunpack.c.l.b16 %v230
  %v1212 = vunpack.c.h.b16 %v230
  %v1213 = vunpack.c.l.b16 %v231
  %v1214 = vunpack.c.h.b16 %v231
  %v1215 = vunpack.c.l.b16 %v232
  %v1216 = vunpack.c.h.b16 %v232
  %v1217 = vunpack.c.l.b16 %v233
  %v1218 = vunpack.c.h.b16 %v233
  %v1219 = vunpack.c.l.b16 %v234
  %v1220 = vunpack.c.h.b16 %v234
  %v1221 = vunpack.c.l.b16 %v235
  %v1222 = vunpack.c.h.b16 %v235
  %v1223 = vunpack.c.l.b16 %v236
  %v1224 = vunpack.c.h.b16 %v236
  %v1225 = vunpack.c.l.b16 %v237
  %v1226 = vunpack.c.h.b16 %v237
  %v1227 = vunpack.c.l.b16 %v238
  %v1228 = vunpack.c.h.b16 %v238
  %v1229 = vunpack.c.l.b16 %v239
  %v1230 = vunpack.c.h.b16 %v239
  %v1231 = vunpack.c.l.b16 %v240
  %v1232 = vunpack.c.h.b16 %v240
  %v1233 = vunpack.c.l.b16 %v241
  %v1234 = vunpack.c.h.b16 %v241
  %v1235 = vunpack.c.l.b16 %v242
  %v1236 = vunpack.c.h.b16 %v242
  %v1237 = vunpack.c.l.b16 %v243
  %v1238 = vunpack.c.h.b16 %v243
  %v1239 = vunpack.c.l.b16 %v244
  %v1240 = vunpack.c.h.b16 %v244
  %v1241 = vunpack.c.l.b16 %v245
  %v1242 = vunpack.c.h.b16 %v245
  %v1243 = vunpack.c.l.b16 %v246
  %v1244 = vunpack.c.h.b16 %v246
  %v1245 = vunpack.c.l.b16 %v247
  %v1246 = vunpack.c.h.b16 %v247
  %v1247 = vunpack.c.l.b16 %v248
  %v1248 = vunpack.c.h.b16 %v248
  %v1249 = vunpack.c.l.b16 %v249
  %v1250 = vunpack.c.h.b16 %v249
  %v1251 = vunpack.c.l.b16 %v250
  %v1252 = vunpack.c.h.b16 %v250
  %v1253 = vunpack.c.l.b16 %v251
  %v1254 = vunpack.c.h.b16 %v251
  %v1255 = vunpack.c.l.b16 %v252
  %v1256 = vunpack.c.h.b16 %v252
  %v1257 = vunpack.c.l.b16 %v253
  %v1258 = vunpack.c.h.b16 %v253
  %v1259 = vunpack.c.l.b16 %v254
  %v1260 = vunpack.c.h.b16 %v254
  %v1261 = vunpack.c.l.b16 %v255
  %v1262 = vunpack.c.h.b16 %v255
  %v1263 = vunpack.c.l.b16 %v256
  %v1264 = vunpack.c.h.b16 %v256
  %v1265 = vunpack.c.l.b16 %v257
  %v1266 = vunpack.c.h.b16 %v257
  %v1267 = vunpack.c.l.b16 %v258
  %v1268 = vunpack.c.h.b16 %v258
  %v1269 = vunpack.c.l.b16 %v259
  %v1270 = vunpack.c.h.b16 %v259
  %v1271 = vunpack.c.l.b16 %v260
  %v1272 = vunpack.c.h.b16 %v260
  %v1273 = vunpack.c.l.b16 %v261
  %v1274 = vunpack.c.h.b16 %v261
  %v1275 = vunpack.c.l.b16 %v262
  %v1276 = vunpack.c.h.b16 %v262
  %v1277 = vunpack.c.l.b16 %v263
  %v1278 = vunpack.c.h.b16 %v263
  %v1279 = vunpack.c.l.b16 %v264
  %v1280 = vunpack.c.h.b16 %v264
  %v1281 = vunpack.c.l.b16 %v265
  %v1282 = vunpack.c.h.b16 %v265
  %v1283 = vunpack.c.l.b16 %v266
  %v1284 = vunpack.c.h.b16 %v266
  %v1285 = vunpack.c.l.b16 %v267
  %v1286 = vunpack.c.h.b16 %v267
  %v1287 = vunpack.c.l.b16 %v268
  %v1288 = vunpack.c.h.b16 %v268
  %v1289 = vunpack.c.l.b16 %v269
  %v1290 = vunpack.c.h.b16 %v269
  %v1291 = vunpack.c.l.b16 %v270
  %v1292 = vunpack.c.h.b16 %v270
  %v1293 = vunpack.c.l.b16 %v271
  %v1294 = vunpack.c.h.b16 %v271
  %v1295 = vunpack.c.l.b16 %v272
  %v1296 = vunpack.c.h.b16 %v272
  %v1297 = vunpack.c.l.b16 %v273
  %v1298 = vunpack.c.h.b16 %v273
  %v1299 = vunpack.c.l.b16 %v274
  %v1300 = vunpack.c.h.b16 %v274
  %v1301 = vunpack.c.l.b16 %v275
  %v1302 = vunpack.c.h.b16 %v275
  %v1303 = vunpack.c.l.b16 %v276
  %v1304 = vunpack.c.h.b16 %v276
  %v1305 = vunpack.c.l.b16 %v277
  %v1306 = vunpack.c.h.b16 %v277
  %v1307 = vunpack.c.l.b16 %v278
  %v1308 = vunpack.c.h.b16 %v278
  %v1309 = vunpack.c.l.b16 %v279
  %v1310 = vunpack.c.h.b16 %v279
  %v1311 = vunpack.c.l.b16 %v280
  %v1312 = vunpack.c.h.b16 %v280
  %v1313 = vunpack.c.l.b16 %v281
  %v1314 = vunpack.c.h.b16 %v281
  %v1315 = vunpack.c.l.b16 %v282
  %v1316 = vunpack.c.h.b16 %v282
  %v1317 = vunpack.c.l.b16 %v283
  %v1318 = vunpack.c.h.b16 %v283
  %v1319 = vunpack.c.l.b16 %v284
  %v1320 = vunpack.c.h.b16 %v284
  %v1321 = vunpack.c.l.b16 %v285
  %v1322 = vunpack.c.h.b16 %v285
  %v1323 = vunpack.c.l.b16 %v286
  %v1324 = vunpack.c.h.b16 %v286
  %v1325 = vunpack.c.l.b16 %v287
  %v1326 = vunpack.c.h.b16 %v287
  %v1327 = vunpack.c.l.b16 %v288
  %v1328 = vunpack.c.h.b16 %v288
  %v1329 = vunpack.c.l.b16 %v289
  %v1330 = vunpack.c.h.b16 %v289
  %v1331 = vunpack.c.l.b16 %v290
  %v1332 = vunpack.c.h.b16 %v290
  %v1333 = vunpack.c.l.b16 %v291
  %v1334 = vunpack.c.h.b16 %v291
  %v1335 = vunpack.c.l.b16 %v292
  %v1336 = vunpack.c.h.b16 %v292
  %v1337 = vunpack.c.l.b16 %v293
  %v1338 = vunpack.c.h.b16 %v293
  %v1339 = vunpack.c.l.b16 %v294
  %v1340 = vunpack.c.h.b16 %v294
  %v1341 = vunpack.c.l.b16 %v295
  %v1342 = vunpack.c.h.b16 %v295
  %v1343 = vunpack.c.l.b16 %v296
  %v1344 = vunpack.c.h.b16 %v296
  %v1345 = vunpack.c.l.b16 %v297
  %v1346 = vunpack.c.h.b16 %v297
  %v1347 = vunpack.c.l.b16 %v298
  %v1348 = vunpack.c.h.b16 %v298
  %v1349 = vunpack.c.l.b16 %v299
  %v1350 = vunpack.c.h.b16 %v299
  %v1351 = vunpack.c.l.b16 %v300
  %v1352 = vunpack.c.h.b16 %v300
  %v1353 = vunpack.c.l.b16 %v301
  %v1354 = vunpack.c.h.b16 %v301
  %v1355 = vunpack.c.l.b16 %v302
  %v1356 = vunpack.c.h.b16 %v302
  %v1357 = vunpack.c.l.b16 %v303
  %v1358 = vunpack.c.h.b16 %v303
  %v1359 = vunpack.c.l.b16 %v304
  %v1360 = vunpack.c.h.b16 %v304
  %v1361 = vunpack.c.l.b16 %v305
  %v1362 = vunpack.c.h.b16 %v305
  %v1363 = vunpack.c.l.b16 %v306
  %v1364 = vunpack.c.h.b16 %v306
  %v1365 = vunpack.c.l.b16 %v307
  %v1366 = vunpack.c.h.b16 %v307
  %v1367 = vunpack.c.l.b16 %v308
  %v1368 = vunpack.c.h.b16 %v308
  %v1369 = vunpack.c.l.b16 %v309
  %v1370 = vunpack.c.h.b16 %v309
  %v1371 = vunpack.c.l.b16 %v310
  %v1372 = vunpack.c.h.b16 %v310
  %v1373 = vunpack.c.l.b16 %v311
  %v1374 = vunpack.c.h.b16 %v311
  %v1375 = vunpack.c.l.b16 %v312
  %v1376 = vunpack.c.h.b16 %v312
  %v1377 = vunpack.c.l.b16 %v313
  %v1378 = vunpack.c.h.b16 %v313
  %v1379 = vunpack.c.l.b16 %v314
  %v1380 = vunpack.c.h.b16 %v314
  %v1381 = vunpack.c.l.b16 %v315
  %v1382 = vunpack.c.h.b16 %v315
  %v1383 = vunpack.c.l.b16 %v316
  %v1384 = vunpack.c.h.b16 %v316
  %v1385 = vunpack.c.l.b16 %v317
  %v1386 = vunpack.c.h.b16 %v317
  %v1387 = vunpack.c.l.b16 %v318
  %v1388 = vunpack.c.h.b16 %v318
  %v1389 = vunpack.c.l.b16 %v319
  %v1390 = vunpack.c.h.b16 %v319
  %v1391 = vunpack.c.l.b16 %v320
  %v1392 = vunpack.c.h.b16 %v320
  %v1393 = vunpack.c.l.b16 %v321
  %v1394 = vunpack.c.h.b16 %v321
  %v1395 = vunpack.c.l.b16 %v322
  %v1396 = vunpack.c.h.b16 %v322
  %v1397 = vunpack.c.l.b16 %v323
  %v1398 = vunpack.c.h.b16 %v323
  %v1399 = vunpack.c.l.b16 %v324
  %v1400 = vunpack.c.h.b16 %v324
  %v1401 = vunpack.c.l.b16 %v325
  %v1402 = vunpack.c.h.b16 %v325
  %v1403 = vunpack.c.l.b16 %v326
  %v1404 = vunpack.c.h.b16 %v326
  %v1405 = vunpack.c.l.b16 %v327
  %v1406 = vunpack.c.h.b16 %v327
  %v1407 = vunpack.c.l.b16 %v328
  %v1408 = vunpack.c.h.b16 %v328
  %v1409 = vunpack.c.l.b16 %v329
  %v1410 = vunpack.c.h.b16 %v329
  %v1411 = vunpack.c.l.b16 %v330
  %v1412 = vunpack.c.h.b16 %v330
  %v1413 = vunpack.c.l.b16 %v331
  %v1414 = vunpack.c.h.b16 %v331
  %v1415 = vunpack.c.l.b16 %v332
  %v1416 = vunpack.c.h.b16 %v332
  %v1417 = vunpack.c.l.b16 %v333
  %v1418 = vunpack.c.h.b16 %v333
  %v1419 = vunpack.c.l.b16 %v334
  %v1420 = vunpack.c.h.b16 %v334
  %v1421 = vunpack.c.l.b16 %v335
  %v1422 = vunpack.c.h.b16 %v335
  %v1423 = vunpack.c.l.b16 %v336
  %v1424 = vunpack.c.h.b16 %v336
  %v1425 = vunpack.c.l.b16 %v337
  %v1426 = vunpack.c.h.b16 %v337
  %v1427 = vunpack.c.l.b16 %v338
  %v1428 = vunpack.c.h.b16 %v338
  %v1429 = vunpack.c.l.b16 %v339
  %v1430 = vunpack.c.h.b16 %v339
  %v1431 = vunpack.c.l.b16 %v340
  %v1432 = vunpack.c.h.b16 %v340
  %v1433 = vunpack.c.l.b16 %v341
  %v1434 = vunpack.c.h.b16 %v341
  %v1435 = vunpack.c.l.b16 %v342
  %v1436 = vunpack.c.h.b16 %v342
  %v1437 = vunpack.c.l.b16 %v343
  %v1438 = vunpack.c.h.b16 %v343
  %v1439 = vunpack.c.l.b16 %v344
  %v1440 = vunpack.c.h.b16 %v344
  %v1441 = vunpack.c.l.b16 %v345
  %v1442 = vunpack.c.h.b16 %v345
  %v1443 = vunpack.c.l.b16 %v346
  %v1444 = vunpack.c.h.b16 %v346
  %v1445 = vunpack.c.l.b16 %v347
  %v1446 = vunpack.c.h.b16 %v347
  %v1447 = vunpack.c.l.b16 %v348
  %v1448 = vunpack.c.h.b16 %v348
  %v1449 = vunpack.c.l.b16 %v349
  %v1450 = vunpack.c.h.b16 %v349
  %v1451 = vunpack.c.l.b16 %v350
  %v1452 = vunpack.c.h.b16 %v350
  %v1453 = vunpack.c.l.b16 %v351
  %v1454 = vunpack.c.h.b16 %v351
  %v1455 = vunpack.c.l.b16 %v352
  %v1456 = vunpack.c.h.b16 %v352
  %v1457 = vunpack.c.l.b16 %v353
  %v1458 = vunpack.c.h.b16 %v353
  %v1459 = vunpack.c.l.b16 %v354
  %v1460 = vunpack.c.h.b16 %v354
  %v1461 = vunpack.c.l.b16 %v355
  %v1462 = vunpack.c.h.b16 %v355
  %v1463 = vunpack.c.l.b16 %v356
  %v1464 = vunpack.c.h.b16 %v356
  %v1465 = vunpack.c.l.b16 %v357
  %v1466 = vunpack.c.h.b16 %v357
  %v1467 = vunpack.c.l.b16 %v358
  %v1468 = vunpack.c.h.b16 %v358
  %v1469 = vpack.c.b16 %v961, %v957
  %v1470 = vpack.c.b16 %v962, %v958
  %v1471 = vpack.c.b16 %v963, %v959
  %v1472 = vpack.c.b16 %v964, %v960
  %v1473 = vpack.c.b16 %v969, %v965
  %v1474 = vpack.c.b16 %v970, %v966
  %v1475 = vpack.c.b16 %v971, %v967
  %v1476 = vpack.c.b16 %v972, %v968
  %v1477 = vpack.c.b16 %v977, %v973
  %v1478 = vpack.c.b16 %v978, %v974
  %v1479 = vpack.c.b16 %v979, %v975
  %v1480 = vpack.c.b16 %v980, %v976
  %v1481 = vpack.c.b16 %v985, %v981
  %v1482 = vpack.c.b16 %v986, %v982
  %v1483 = vpack.c.b16 %v987, %v983
  %v1484 = vpack.c.b16 %v988, %v984
  %v1485 = vpack.c.b16 %v993, %v989
  %v1486 = vpack.c.b16 %v994, %v990
  %v1487 = vpack.c.b16 %v995, %v991
  %v1488 = vpack.c.b16 %v996, %v992
  %v1489 = vpack.c.b16 %v1001, %v997
  %v1490 = vpack.c.b16 %v1002, %v998
  %v1491 = vpack.c.b16 %v1003, %v999
  %v1492 = vpack.c.b16 %v1004, %v1000
  %v1493 = vpack.c.b16 %v1009, %v1005
  %v1494 = vpack.c.b16 %v1010, %v1006
  %v1495 = vpack.c.b16 %v1011, %v1007
  %v1496 = vpack.c.b16 %v1012, %v1008
  %v1497 = vpack.c.b16 %v1017, %v1013
  %v1498 = vpack.c.b16 %v1018, %v1014
  %v1499 = vpack.c.b16 %v1019, %v1015
  %v1500 = vpack.c.b16 %v1020, %v1016
  %v1501 = vpack.c.b16 %v1025, %v1021
  %v1502 = vpack.c.b16 %v1026, %v1022
  %v1503 = vpack.c.b16 %v1027, %v1023
  %v1504 = vpack.c.b16 %v1028, %v1024
  %v1505 = vpack.c.b16 %v1033, %v1029
  %v1506 = vpack.c.b16 %v1034, %v1030
  %v1507 = vpack.c.b16 %v1035, %v1031
  %v1508 = vpack.c.b16 %v1036, %v1032
  %v1509 = vpack.c.b16 %v1041, %v1037
  %v1510 = vpack.c.b16 %v1042, %v1038
  %v1511 = vpack.c.b16 %v1043, %v1039
  %v1512 = vpack.c.b16 %v1044, %v1040
  %v1513 = vpack.c.b16 %v1049, %v1045
  %v1514 = vpack.c.b16 %v1050, %v1046
  %v1515 = vpack.c.b16 %v1051, %v1047
  %v1516 = vpack.c.b16 %v1052, %v1048
  %v1517 = vpack.c.b16 %v1057, %v1053
  %v1518 = vpack.c.b16 %v1058, %v1054
  %v1519 = vpack.c.b16 %v1059, %v1055
  %v1520 = vpack.c.b16 %v1060, %v1056
  %v1521 = vpack.c.b16 %v1065, %v1061
  %v1522 = vpack.c.b16 %v1066, %v1062
  %v1523 = vpack.c.b16 %v1067, %v1063
  %v1524 = vpack.c.b16 %v1068, %v1064
  %v1525 = vpack.c.b16 %v1073, %v1069
  %v1526 = vpack.c.b16 %v1074, %v1070
  %v1527 = vpack.c.b16 %v1075, %v1071
  %v1528 = vpack.c.b16 %v1076, %v1072
  %v1529 = vpack.c.b16 %v1081, %v1077
  %v1530 = vpack.c.b16 %v1082, %v1078
  %v1531 = vpack.c.b16 %v1083, %v1079
  %v1532 = vpack.c.b16 %v1084, %v1080
  %v1533 = vpack.c.b16 %v1089, %v1085
  %v1534 = vpack.c.b16 %v1090, %v1086
  %v1535 = vpack.c.b16 %v1091, %v1087
  %v1536 = vpack.c.b16 %v1092, %v1088
  %v1537 = vpack.c.b16 %v1097, %v1093
  %v1538 = vpack.c.b16 %v1098, %v1094
  %v1539 = vpack.c.b16 %v1099, %v1095
  %v1540 = vpack.c.b16 %v1100, %v1096
  %v1541 = vpack.c.b16 %v1105, %v1101
  %v1542 = vpack.c.b16 %v1106, %v1102
  %v1543 = vpack.c.b16 %v1107, %v1103
  %v1544 = vpack.c.b16 %v1108, %v1104
  %v1545 = vpack.c.b16 %v1113, %v1109
  %v1546 = vpack.c.b16 %v1114, %v1110
  %v1547 = vpack.c.b16 %v1115, %v1111
  %v1548 = vpack.c.b16 %v1116, %v1112
  %v1549 = vpack.c.b16 %v1121, %v1117
  %v1550 = vpack.c.b16 %v1122, %v1118
  %v1551 = vpack.c.b16 %v1123, %v1119
  %v1552 = vpack.c.b16 %v1124, %v1120
  %v1553 = vpack.c.b16 %v1129, %v1125
  %v1554 = vpack.c.b16 %v1130, %v1126
  %v1555 = vpack.c.b16 %v1131, %v1127
  %v1556 = vpack.c.b16 %v1132, %v1128
  %v1557 = vpack.c.b16 %v1137, %v1133
  %v1558 = vpack.c.b16 %v1138, %v1134
  %v1559 = vpack.c.b16 %v1139, %v1135
  %v1560 = vpack.c.b16 %v1140, %v1136
  %v1561 = vpack.c.b16 %v1145, %v1141
  %v1562 = vpack.c.b16 %v1146, %v1142
  %v1563 = vpack.c.b16 %v1147, %v1143
  %v1564 = vpack.c.b16 %v1148, %v1144
  %v1565 = vpack.c.b16 %v1153, %v1149
  %v1566 = vpack.c.b16 %v1154, %v1150
  %v1567 = vpack.c.b16 %v1155, %v1151
  %v1568 = vpack.c.b16 %v1156, %v1152
  %v1569 = vpack.c.b16 %v1161, %v1157
  %v1570 = vpack.c.b16 %v1162, %v1158
  %v1571 = vpack.c.b16 %v1163, %v1159
  %v1572 = vpack.c.b16 %v1164, %v1160
  %v1573 = vpack.c.b16 %v1169, %v1165
  %v1574 = vpack.c.b16 %v1170, %v1166
  %v1575 = vpack.c.b16 %v1171, %v1167
  %v1576 = vpack.c.b16 %v1172, %v1168
  %v1577 = vpack.c.b16 %v1177, %v1173
  %v1578 = vpack.c.b16 %v1178, %v1174
  %v1579 = vpack.c.b16 %v1179, %v1175
  %v1580 = vpack.c.b16 %v1180, %v1176
  %v1581 = vpack.c.b16 %v1185, %v1181
  %v1582 = vpack.c.b16 %v1186, %v1182
  %v1583 = vpack.c.b16 %v1187, %v1183
  %v1584 = vpack.c.b16 %v1188, %v1184
  %v1585 = vpack.c.b16 %v1193, %v1189
  %v1586 = vpack.c.b16 %v1194, %v1190
  %v1587 = vpack.c.b16 %v1195, %v1191
  %v1588 = vpack.c.b16 %v1196, %v1192
  %v1589 = vpack.c.b16 %v1201, %v1197
  %v1590 = vpack.c.b16 %v1202, %v1198
  %v1591 = vpack.c.b16 %v1203, %v1199
  %v1592 = vpack.c.b16 %v1204, %v1200
  %v1593 = vpack.c.b16 %v1209, %v1205
  %v1594 = vpack.c.b16 %v1210, %v1206
  %v1595 = vpack.c.b16 %v1211, %v1207
  %v1596 = vpack.c.b16 %v1212, %v1208
  %v1597 = vpack.c.b16 %v1217, %v1213
  %v1598 = vpack.c.b16 %v1218, %v1214
  %v1599 = vpack.c.b16 %v1219, %v1215
  %v1600 = vpack.c.b16 %v1220, %v1216
  %v1601 = vpack.c.b16 %v1225, %v1221
  %v1602 = vpack.c.b16 %v1226, %v1222
  %v1603 = vpack.c.b16 %v1227, %v1223
  %v1604 = vpack.c.b16 %v1228, %v1224
  %v1605 = vpack.c.b16 %v1233, %v1229
  %v1606 = vpack.c.b16 %v1234, %v1230
  %v1607 = vpack.c.b16 %v1235, %v1231
  %v1608 = vpack.c.b16 %v1236, %v1232
  %v1609 = vpack.c.b16 %v1241, %v1237
  %v1610 = vpack.c.b16 %v1242, %v1238
  %v1611 = vpack.c.b16 %v1243, %v1239
  %v1612 = vpack.c.b16 %v1244, %v1240
  %v1613 = vpack.c.b16 %v1249, %v1245
  %v1614 = vpack.c.b16 %v1250, %v1246
  %v1615 = vpack.c.b16 %v1251, %v1247
  %v1616 = vpack.c.b16 %v1252, %v1248
  %v1617 = vpack.c.b16 %v1257, %v1253
  %v1618 = vpack.c.b16 %v1258, %v1254
  %v1619 = vpack.c.b16 %v1259, %v1255
  %v1620 = vpack.c.b16 %v1260, %v1256
  %v1621 = vpack.c.b16 %v1265, %v1261
  %v1622 = vpack.c.b16 %v1266, %v1262
  %v1623 = vpack.c.b16 %v1267, %v1263
  %v1624 = vpack.c.b16 %v1268, %v1264
  %v1625 = vpack.c.b16 %v1273, %v1269
  %v1626 = vpack.c.b16 %v1274, %v1270
  %v1627 = vpack.c.b16 %v1275, %v1271
  %v1628 = vpack.c.b16 %v1276, %v1272
  %v1629 = vpack.c.b16 %v1281, %v1277
  %v1630 = vpack.c.b16 %v1282, %v1278
  %v1631 = vpack.c.b16 %v1283, %v1279
  %v1632 = vpack.c.b16 %v1284, %v1280
  %v1633 = vpack.c.b16 %v1289, %v1285
  %v1634 = vpack.c.b16 %v1290, %v1286
  %v1635 = vpack.c.b16 %v1291, %v1287
  %v1636 = vpack.c.b16 %v1292, %v1288
  %v1637 = vpack.c.b16 %v1297, %v1293
  %v1638 = vpack.c.b16 %v1298, %v1294
  %v1639 = vpack.c.b16 %v1299, %v1295
  %v1640 = vpack.c.b16 %v1300, %v1296
  %v1641 = vpack.c.b16 %v1305, %v1301
  %v1642 = vpack.c.b16 %v1306, %v1302
  %v1643 = vpack.c.b16 %v1307, %v1303
  %v1644 = vpack.c.b16 %v1308, %v1304
  %v1645 = vpack.c.b16 %v1313, %v1309
  %v1646 = vpack.c.b16 %v1314, %v1310
  %v1647 = vpack.c.b16 %v1315, %v1311
  %v1648 = vpack.c.b16 %v1316, %v1312
  %v1649 = vpack.c.b16 %v1321, %v1317
  %v1650 = vpack.c.b16 %v1322, %v1318
  %v1651 = vpack.c.b16 %v1323, %v1319
  %v1652 = vpack.c.b16 %v1324, %v1320
  %v1653 = vpack.c.b16 %v1329, %v1325
  %v1654 = vpack.c.b16 %v1330, %v1326
  %v1655 = vpack.c.b16 %v1331, %v1327
  %v1656 = vpack.c.b16 %v1332, %v1328
  %v1657 = vpack.c.b16 %v1337, %v1333
  %v1658 = vpack.c.b16 %v1338, %v1334
  %v1659 = vpack.c.b16 %v1339, %v1335
  %v1660 = vpack.c.b16 %v1340, %v1336
  %v1661 = vpack.c.b16 %v1345, %v1341
  %v1662 = vpack.c.b16 %v1346, %v1342
  %v1663 = vpack.c.b16 %v1347, %v1343
  %v1664 = vpack.c.b16 %v1348, %v1344
  %v1665 = vpack.c.b16 %v1353, %v1349
  %v1666 = vpack.c.b16 %v1354, %v1350
  %v1667 = vpack.c.b16 %v1355, %v1351
  %v1668 = vpack.c.b16 %v1356, %v1352
  %v1669 = vpack.c.b16 %v1361, %v1357
  %v1670 = vpack.c.b16 %v1362, %v1358
  %v1671 = vpack.c.b16 %v1363, %v1359
  %v1672 = vpack.c.b16 %v1364, %v1360
  %v1673 = vpack.c.b16 %v1369, %v1365
  %v1674 = vpack.c.b16 %v1370, %v1366
  %v1675 = vpack.c.b16 %v1371, %v1367
  %v1676 = vpack.c.b16 %v1372, %v1368
  %v1677 = vpack.c.b16 %v1377, %v1373
  %v1678 = vpack.c.b16 %v1378, %v1374
  %v1679 = vpack.c.b16 %v1379, %v1375
  %v1680 = vpack.c.b16 %v1380, %v1376
  %v1681 = vpack.c.b16 %v1385, %v1381
  %v1682 = vpack.c.b16 %v1386, %v1382
  %v1683 = vpack.c.b16 %v1387, %v1383
  %v1684 = vpack.c.b16 %v1388, %v1384
  %v1685 = vpack.c.b16 %v1393, %v1389
  %v1686 = vpack.c.b16 %v1394, %v1390
  %v1687 = vpack.c.b16 %v1395, %v1391
  %v1688 = vpack.c.b16 %v1396, %v1392
  %v1689 = vpack.c.b16 %v1401, %v1397
  %v1690 = vpack.c.b16 %v1402, %v1398
  %v1691 = vpack.c.b16 %v1403, %v1399
  %v1692 = vpack.c.b16 %v1404, %v1400
  %v1693 = vpack.c.b16 %v1409, %v1405
  %v1694 = vpack.c.b16 %v1410, %v1406
  %v1695 = vpack.c.b16 %v1411, %v1407
  %v1696 = vpack.c.b16 %v1412, %v1408
  %v1697 = vpack.c.b16 %v1417, %v1413
  %v1698 = vpack.c.b16 %v1418, %v1414
  %v1699 = vpack.c.b16 %v1419, %v1415
  %v1700 = vpack.c.b16 %v1420, %v1416
  %v1701 = vpack.c.b16 %v1425, %v1421
  %v1702 = vpack.c.b16 %v1426, %v1422
  %v1703 = vpack.c.b16 %v1427, %v1423
  %v1704 = vpack.c.b16 %v1428, %v1424
  %v1705 = vpack.c.b16 %v1433, %v1429
  %v1706 = vpack.c.b16 %v1434, %v1430
  %v1707 = vpack.c.b16 %v1435, %v1431
  %v1708 = vpack.c.b16 %v1436, %v1432
  %v1709 = vpack.c.b16 %v1441, %v1437
  %v1710 = vpack.c.b16 %v1442, %v1438
  %v1711 = vpack.c.b16 %v1443, %v1439
  %v1712 = vpack.c.b16 %v1444, %v1440
  %v1713 = vpack.c.b16 %v1449, %v1445
  %v1714 = vpack.c.b16 %v1450, %v1446
  %v1715 = vpack.c.b16 %v1451, %v1447
  %v1716 = vpack.c.b16 %v1452, %v1448
  %v1717 = vpack.c.b16 %v1457, %v1453
  %v1718 = vpack.c.b16 %v1458, %v1454
  %v1719 = vpack.c.b16 %v1459, %v1455
  %v1720 = vpack.c.b16 %v1460, %v1456
  %v1721 = vpack.c.b16 %v1465, %v1461
  %v1722 = vpack.c.b16 %v1466, %v1462
  %v1723 = vpack.c.b16 %v1467, %v1463
  %v1724 = vpack.c.b16 %v1468, %v1464
  %1981 = vmatprep.subr.bf16.mxu0 %v1498
  %1982 = vmatpush1.bf16.msra.mxu0 %v1497
  %1983 = vmatprep.subr.bf16.mxu0 %v1494
  %1984 = vmatpush1.bf16.msra.mxu0 %v1493
  %1985 = vmatprep.subr.bf16.mxu0 %v1490
  %1986 = vmatpush1.bf16.msra.mxu0 %v1489
  %1987 = vmatprep.subr.bf16.mxu0 %v1486
  %1988 = vmatpush1.bf16.msra.mxu0 %v1485
  %1989 = vmatprep.subr.bf16.mxu0 %v1482
  %1990 = vmatpush1.bf16.msra.mxu0 %v1481
  %1991 = vmatprep.subr.bf16.mxu0 %v1478
  %1992 = vmatpush1.bf16.msra.mxu0 %v1477
  %1993 = vmatprep.subr.bf16.mxu0 %v1474
  %1994 = vmatpush1.bf16.msra.mxu0 %v1473
  %1995 = vmatprep.subr.bf16.mxu0 %v1470
  %1996 = vmatpush1.bf16.msra.mxu0 %v1469
  %1997 = vmatprep.subr.bf16.mxu0 %v1530
  %1998 = vmatpush2.bf16.msra.mxu0 %v1529
  %1999 = vmatprep.subr.bf16.mxu0 %v1526
  %2000 = vmatpush2.bf16.msra.mxu0 %v1525
  %2001 = vmatprep.subr.bf16.mxu0 %v1522
  %2002 = vmatpush2.bf16.msra.mxu0 %v1521
  %2003 = vmatprep.subr.bf16.mxu0 %v1518
  %2004 = vmatpush2.bf16.msra.mxu0 %v1517
  %2005 = vmatprep.subr.bf16.mxu0 %v1514
  %2006 = vmatpush2.bf16.msra.mxu0 %v1513
  %2007 = vmatprep.subr.bf16.mxu0 %v1510
  %2008 = vmatpush2.bf16.msra.mxu0 %v1509
  %2009 = vmatprep.subr.bf16.mxu0 %v1506
  %2010 = vmatpush2.bf16.msra.mxu0 %v1505
  %2011 = vmatprep.subr.bf16.mxu0 %v1502
  %2012 = vmatpush2.bf16.msra.mxu0 %v1501
  %2013 = vmatprep.mubr.bf16.mxu0 %v574
  %2014 = vmatmul.mubr.bf16.gmra.mxu0 %v573
  %v2015 = vpop.f32.mrf.mxu0
  %v2016 = vadd.f32 %v364, %v2015
  %v2017 = vpop.f32.mrf.mxu0
  %v2018 = vadd.f32 %v368, %v2017
  %v2019 = vpop.f32.mrf.mxu0
  %v2020 = vadd.f32 %v364, %v2019
  %v2021 = vpop.f32.mrf.mxu0
  %v2022 = vadd.f32 %v368, %v2021
  %2023 = vmatprep.mubr.bf16.mxu0 %v582
  %2024 = vmatmul.mubr.bf16.gmra.mxu0 %v581
  %v2025 = vpop.f32.mrf.mxu0
  %v2026 = vadd.f32 %v364, %v2025
  %v2027 = vpop.f32.mrf.mxu0
  %v2028 = vadd.f32 %v368, %v2027
  %v2029 = vpop.f32.mrf.mxu0
  %v2030 = vadd.f32 %v364, %v2029
  %v2031 = vpop.f32.mrf.mxu0
  %v2032 = vadd.f32 %v368, %v2031
  %2033 = vmatprep.mubr.bf16.mxu0 %v590
  %2034 = vmatmul.mubr.bf16.gmra.mxu0 %v589
  %v2035 = vpop.f32.mrf.mxu0
  %v2036 = vadd.f32 %v364, %v2035
  %v2037 = vpop.f32.mrf.mxu0
  %v2038 = vadd.f32 %v368, %v2037
  %v2039 = vpop.f32.mrf.mxu0
  %v2040 = vadd.f32 %v364, %v2039
  %v2041 = vpop.f32.mrf.mxu0
  %v2042 = vadd.f32 %v368, %v2041
  %2043 = vmatprep.mubr.bf16.mxu0 %v598
  %2044 = vmatmul.mubr.bf16.gmra.mxu0 %v597
  %v2045 = vpop.f32.mrf.mxu0
  %v2046 = vadd.f32 %v364, %v2045
  %v2047 = vpop.f32.mrf.mxu0
  %v2048 = vadd.f32 %v368, %v2047
  %v2049 = vpop.f32.mrf.mxu0
  %v2050 = vadd.f32 %v364, %v2049
  %v2051 = vpop.f32.mrf.mxu0
  %v2052 = vadd.f32 %v368, %v2051
  %2053 = vmatprep.mubr.bf16.mxu0 %v606
  %2054 = vmatmul.mubr.bf16.gmra.mxu0 %v605
  %v2055 = vpop.f32.mrf.mxu0
  %v2056 = vadd.f32 %v364, %v2055
  %v2057 = vpop.f32.mrf.mxu0
  %v2058 = vadd.f32 %v368, %v2057
  %v2059 = vpop.f32.mrf.mxu0
  %v2060 = vadd.f32 %v364, %v2059
  %v2061 = vpop.f32.mrf.mxu0
  %v2062 = vadd.f32 %v368, %v2061
  %2063 = vmatprep.mubr.bf16.mxu0 %v614
  %2064 = vmatmul.mubr.bf16.gmra.mxu0 %v613
  %v2065 = vpop.f32.mrf.mxu0
  %v2066 = vadd.f32 %v364, %v2065
  %v2067 = vpop.f32.mrf.mxu0
  %v2068 = vadd.f32 %v368, %v2067
  %v2069 = vpop.f32.mrf.mxu0
  %v2070 = vadd.f32 %v364, %v2069
  %v2071 = vpop.f32.mrf.mxu0
  %v2072 = vadd.f32 %v368, %v2071
  %2073 = vmatprep.mubr.bf16.mxu0 %v622
  %2074 = vmatmul.mubr.bf16.gmra.mxu0 %v621
  %v2075 = vpop.f32.mrf.mxu0
  %v2076 = vadd.f32 %v364, %v2075
  %v2077 = vpop.f32.mrf.mxu0
  %v2078 = vadd.f32 %v368, %v2077
  %v2079 = vpop.f32.mrf.mxu0
  %v2080 = vadd.f32 %v364, %v2079
  %v2081 = vpop.f32.mrf.mxu0
  %v2082 = vadd.f32 %v368, %v2081
  %2083 = vmatprep.mubr.bf16.mxu0 %v630
  %2084 = vmatmul.mubr.bf16.gmra.mxu0 %v629
  %v2085 = vpop.f32.mrf.mxu0
  %v2086 = vadd.f32 %v364, %v2085
  %v2087 = vpop.f32.mrf.mxu0
  %v2088 = vadd.f32 %v368, %v2087
  %v2089 = vpop.f32.mrf.mxu0
  %v2090 = vadd.f32 %v364, %v2089
  %v2091 = vpop.f32.mrf.mxu0
  %v2092 = vadd.f32 %v368, %v2091
  %2093 = vdwg.mxu0
  %2094 = vmatprep.subr.bf16.mxu0 %v1562
  %2095 = vmatpush1.bf16.msra.mxu0 %v1561
  %2096 = vmatprep.subr.bf16.mxu0 %v1558
  %2097 = vmatpush1.bf16.msra.mxu0 %v1557
  %2098 = vmatprep.subr.bf16.mxu0 %v1554
  %2099 = vmatpush1.bf16.msra.mxu0 %v1553
  %2100 = vmatprep.subr.bf16.mxu0 %v1550
  %2101 = vmatpush1.bf16.msra.mxu0 %v1549
  %2102 = vmatprep.subr.bf16.mxu0 %v1546
  %2103 = vmatpush1.bf16.msra.mxu0 %v1545
  %2104 = vmatprep.subr.bf16.mxu0 %v1542
  %2105 = vmatpush1.bf16.msra.mxu0 %v1541
  %2106 = vmatprep.subr.bf16.mxu0 %v1538
  %2107 = vmatpush1.bf16.msra.mxu0 %v1537
  %2108 = vmatprep.subr.bf16.mxu0 %v1534
  %2109 = vmatpush1.bf16.msra.mxu0 %v1533
  %2110 = vmatprep.subr.bf16.mxu0 %v1594
  %2111 = vmatpush2.bf16.msra.mxu0 %v1593
  %2112 = vmatprep.subr.bf16.mxu0 %v1590
  %2113 = vmatpush2.bf16.msra.mxu0 %v1589
  %2114 = vmatprep.subr.bf16.mxu0 %v1586
  %2115 = vmatpush2.bf16.msra.mxu0 %v1585
  %2116 = vmatprep.subr.bf16.mxu0 %v1582
  %2117 = vmatpush2.bf16.msra.mxu0 %v1581
  %2118 = vmatprep.subr.bf16.mxu0 %v1578
  %2119 = vmatpush2.bf16.msra.mxu0 %v1577
  %2120 = vmatprep.subr.bf16.mxu0 %v1574
  %2121 = vmatpush2.bf16.msra.mxu0 %v1573
  %2122 = vmatprep.subr.bf16.mxu0 %v1570
  %2123 = vmatpush2.bf16.msra.mxu0 %v1569
  %2124 = vmatprep.subr.bf16.mxu0 %v1566
  %2125 = vmatpush2.bf16.msra.mxu0 %v1565
  %2126 = vmatprep.mubr.bf16.mxu0 %v576
  %2127 = vmatmul.mubr.bf16.gmra.mxu0 %v575
  %v2128 = vpop.f32.mrf.mxu0
  %v2129 = vadd.f32 %v2016, %v2128
  %v2130 = vpop.f32.mrf.mxu0
  %v2131 = vadd.f32 %v2018, %v2130
  %v2132 = vpop.f32.mrf.mxu0
  %v2133 = vadd.f32 %v2020, %v2132
  %v2134 = vpop.f32.mrf.mxu0
  %v2135 = vadd.f32 %v2022, %v2134
  %2136 = vmatprep.mubr.bf16.mxu0 %v584
  %2137 = vmatmul.mubr.bf16.gmra.mxu0 %v583
  %v2138 = vpop.f32.mrf.mxu0
  %v2139 = vadd.f32 %v2026, %v2138
  %v2140 = vpop.f32.mrf.mxu0
  %v2141 = vadd.f32 %v2028, %v2140
  %v2142 = vpop.f32.mrf.mxu0
  %v2143 = vadd.f32 %v2030, %v2142
  %v2144 = vpop.f32.mrf.mxu0
  %v2145 = vadd.f32 %v2032, %v2144
  %2146 = vmatprep.mubr.bf16.mxu0 %v592
  %2147 = vmatmul.mubr.bf16.gmra.mxu0 %v591
  %v2148 = vpop.f32.mrf.mxu0
  %v2149 = vadd.f32 %v2036, %v2148
  %v2150 = vpop.f32.mrf.mxu0
  %v2151 = vadd.f32 %v2038, %v2150
  %v2152 = vpop.f32.mrf.mxu0
  %v2153 = vadd.f32 %v2040, %v2152
  %v2154 = vpop.f32.mrf.mxu0
  %v2155 = vadd.f32 %v2042, %v2154
  %2156 = vmatprep.mubr.bf16.mxu0 %v600
  %2157 = vmatmul.mubr.bf16.gmra.mxu0 %v599
  %v2158 = vpop.f32.mrf.mxu0
  %v2159 = vadd.f32 %v2046, %v2158
  %v2160 = vpop.f32.mrf.mxu0
  %v2161 = vadd.f32 %v2048, %v2160
  %v2162 = vpop.f32.mrf.mxu0
  %v2163 = vadd.f32 %v2050, %v2162
  %v2164 = vpop.f32.mrf.mxu0
  %v2165 = vadd.f32 %v2052, %v2164
  %2166 = vmatprep.mubr.bf16.mxu0 %v608
  %2167 = vmatmul.mubr.bf16.gmra.mxu0 %v607
  %v2168 = vpop.f32.mrf.mxu0
  %v2169 = vadd.f32 %v2056, %v2168
  %v2170 = vpop.f32.mrf.mxu0
  %v2171 = vadd.f32 %v2058, %v2170
  %v2172 = vpop.f32.mrf.mxu0
  %v2173 = vadd.f32 %v2060, %v2172
  %v2174 = vpop.f32.mrf.mxu0
  %v2175 = vadd.f32 %v2062, %v2174
  %2176 = vmatprep.mubr.bf16.mxu0 %v616
  %2177 = vmatmul.mubr.bf16.gmra.mxu0 %v615
  %v2178 = vpop.f32.mrf.mxu0
  %v2179 = vadd.f32 %v2066, %v2178
  %v2180 = vpop.f32.mrf.mxu0
  %v2181 = vadd.f32 %v2068, %v2180
  %v2182 = vpop.f32.mrf.mxu0
  %v2183 = vadd.f32 %v2070, %v2182
  %v2184 = vpop.f32.mrf.mxu0
  %v2185 = vadd.f32 %v2072, %v2184
  %2186 = vmatprep.mubr.bf16.mxu0 %v624
  %2187 = vmatmul.mubr.bf16.gmra.mxu0 %v623
  %v2188 = vpop.f32.mrf.mxu0
  %v2189 = vadd.f32 %v2076, %v2188
  %v2190 = vpop.f32.mrf.mxu0
  %v2191 = vadd.f32 %v2078, %v2190
  %v2192 = vpop.f32.mrf.mxu0
  %v2193 = vadd.f32 %v2080, %v2192
  %v2194 = vpop.f32.mrf.mxu0
  %v2195 = vadd.f32 %v2082, %v2194
  %2196 = vmatprep.mubr.bf16.mxu0 %v632
  %2197 = vmatmul.mubr.bf16.gmra.mxu0 %v631
  %v2198 = vpop.f32.mrf.mxu0
  %v2199 = vadd.f32 %v2086, %v2198
  %v2200 = vpop.f32.mrf.mxu0
  %v2201 = vadd.f32 %v2088, %v2200
  %v2202 = vpop.f32.mrf.mxu0
  %v2203 = vadd.f32 %v2090, %v2202
  %v2204 = vpop.f32.mrf.mxu0
  %v2205 = vadd.f32 %v2092, %v2204
  %2206 = vdwg.mxu0
  %2207 = vmatprep.subr.bf16.mxu0 %v1626
  %2208 = vmatpush1.bf16.msra.mxu0 %v1625
  %2209 = vmatprep.subr.bf16.mxu0 %v1622
  %2210 = vmatpush1.bf16.msra.mxu0 %v1621
  %2211 = vmatprep.subr.bf16.mxu0 %v1618
  %2212 = vmatpush1.bf16.msra.mxu0 %v1617
  %2213 = vmatprep.subr.bf16.mxu0 %v1614
  %2214 = vmatpush1.bf16.msra.mxu0 %v1613
  %2215 = vmatprep.subr.bf16.mxu0 %v1610
  %2216 = vmatpush1.bf16.msra.mxu0 %v1609
  %2217 = vmatprep.subr.bf16.mxu0 %v1606
  %2218 = vmatpush1.bf16.msra.mxu0 %v1605
  %2219 = vmatprep.subr.bf16.mxu0 %v1602
  %2220 = vmatpush1.bf16.msra.mxu0 %v1601
  %2221 = vmatprep.subr.bf16.mxu0 %v1598
  %2222 = vmatpush1.bf16.msra.mxu0 %v1597
  %2223 = vmatprep.subr.bf16.mxu0 %v1658
  %2224 = vmatpush2.bf16.msra.mxu0 %v1657
  %2225 = vmatprep.subr.bf16.mxu0 %v1654
  %2226 = vmatpush2.bf16.msra.mxu0 %v1653
  %2227 = vmatprep.subr.bf16.mxu0 %v1650
  %2228 = vmatpush2.bf16.msra.mxu0 %v1649
  %2229 = vmatprep.subr.bf16.mxu0 %v1646
  %2230 = vmatpush2.bf16.msra.mxu0 %v1645
  %2231 = vmatprep.subr.bf16.mxu0 %v1642
  %2232 = vmatpush2.bf16.msra.mxu0 %v1641
  %2233 = vmatprep.subr.bf16.mxu0 %v1638
  %2234 = vmatpush2.bf16.msra.mxu0 %v1637
  %2235 = vmatprep.subr.bf16.mxu0 %v1634
  %2236 = vmatpush2.bf16.msra.mxu0 %v1633
  %2237 = vmatprep.subr.bf16.mxu0 %v1630
  %2238 = vmatpush2.bf16.msra.mxu0 %v1629
  %2239 = vmatprep.mubr.bf16.mxu0 %v578
  %2240 = vmatmul.mubr.bf16.gmra.mxu0 %v577
  %v2241 = vpop.f32.mrf.mxu0
  %v2242 = vadd.f32 %v2129, %v2241
  %v2243 = vpop.f32.mrf.mxu0
  %v2244 = vadd.f32 %v2131, %v2243
  %v2245 = vpop.f32.mrf.mxu0
  %v2246 = vadd.f32 %v2133, %v2245
  %v2247 = vpop.f32.mrf.mxu0
  %v2248 = vadd.f32 %v2135, %v2247
  %2249 = vmatprep.mubr.bf16.mxu0 %v586
  %2250 = vmatmul.mubr.bf16.gmra.mxu0 %v585
  %v2251 = vpop.f32.mrf.mxu0
  %v2252 = vadd.f32 %v2139, %v2251
  %v2253 = vpop.f32.mrf.mxu0
  %v2254 = vadd.f32 %v2141, %v2253
  %v2255 = vpop.f32.mrf.mxu0
  %v2256 = vadd.f32 %v2143, %v2255
  %v2257 = vpop.f32.mrf.mxu0
  %v2258 = vadd.f32 %v2145, %v2257
  %2259 = vmatprep.mubr.bf16.mxu0 %v594
  %2260 = vmatmul.mubr.bf16.gmra.mxu0 %v593
  %v2261 = vpop.f32.mrf.mxu0
  %v2262 = vadd.f32 %v2149, %v2261
  %v2263 = vpop.f32.mrf.mxu0
  %v2264 = vadd.f32 %v2151, %v2263
  %v2265 = vpop.f32.mrf.mxu0
  %v2266 = vadd.f32 %v2153, %v2265
  %v2267 = vpop.f32.mrf.mxu0
  %v2268 = vadd.f32 %v2155, %v2267
  %2269 = vmatprep.mubr.bf16.mxu0 %v602
  %2270 = vmatmul.mubr.bf16.gmra.mxu0 %v601
  %v2271 = vpop.f32.mrf.mxu0
  %v2272 = vadd.f32 %v2159, %v2271
  %v2273 = vpop.f32.mrf.mxu0
  %v2274 = vadd.f32 %v2161, %v2273
  %v2275 = vpop.f32.mrf.mxu0
  %v2276 = vadd.f32 %v2163, %v2275
  %v2277 = vpop.f32.mrf.mxu0
  %v2278 = vadd.f32 %v2165, %v2277
  %2279 = vmatprep.mubr.bf16.mxu0 %v610
  %2280 = vmatmul.mubr.bf16.gmra.mxu0 %v609
  %v2281 = vpop.f32.mrf.mxu0
  %v2282 = vadd.f32 %v2169, %v2281
  %v2283 = vpop.f32.mrf.mxu0
  %v2284 = vadd.f32 %v2171, %v2283
  %v2285 = vpop.f32.mrf.mxu0
  %v2286 = vadd.f32 %v2173, %v2285
  %v2287 = vpop.f32.mrf.mxu0
  %v2288 = vadd.f32 %v2175, %v2287
  %2289 = vmatprep.mubr.bf16.mxu0 %v618
  %2290 = vmatmul.mubr.bf16.gmra.mxu0 %v617
  %v2291 = vpop.f32.mrf.mxu0
  %v2292 = vadd.f32 %v2179, %v2291
  %v2293 = vpop.f32.mrf.mxu0
  %v2294 = vadd.f32 %v2181, %v2293
  %v2295 = vpop.f32.mrf.mxu0
  %v2296 = vadd.f32 %v2183, %v2295
  %v2297 = vpop.f32.mrf.mxu0
  %v2298 = vadd.f32 %v2185, %v2297
  %2299 = vmatprep.mubr.bf16.mxu0 %v626
  %2300 = vmatmul.mubr.bf16.gmra.mxu0 %v625
  %v2301 = vpop.f32.mrf.mxu0
  %v2302 = vadd.f32 %v2189, %v2301
  %v2303 = vpop.f32.mrf.mxu0
  %v2304 = vadd.f32 %v2191, %v2303
  %v2305 = vpop.f32.mrf.mxu0
  %v2306 = vadd.f32 %v2193, %v2305
  %v2307 = vpop.f32.mrf.mxu0
  %v2308 = vadd.f32 %v2195, %v2307
  %2309 = vmatprep.mubr.bf16.mxu0 %v634
  %2310 = vmatmul.mubr.bf16.gmra.mxu0 %v633
  %v2311 = vpop.f32.mrf.mxu0
  %v2312 = vadd.f32 %v2199, %v2311
  %v2313 = vpop.f32.mrf.mxu0
  %v2314 = vadd.f32 %v2201, %v2313
  %v2315 = vpop.f32.mrf.mxu0
  %v2316 = vadd.f32 %v2203, %v2315
  %v2317 = vpop.f32.mrf.mxu0
  %v2318 = vadd.f32 %v2205, %v2317
  %2319 = vdwg.mxu0
  %2320 = vmatprep.subr.bf16.mxu0 %v1690
  %2321 = vmatpush1.bf16.msra.mxu0 %v1689
  %2322 = vmatprep.subr.bf16.mxu0 %v1686
  %2323 = vmatpush1.bf16.msra.mxu0 %v1685
  %2324 = vmatprep.subr.bf16.mxu0 %v1682
  %2325 = vmatpush1.bf16.msra.mxu0 %v1681
  %2326 = vmatprep.subr.bf16.mxu0 %v1678
  %2327 = vmatpush1.bf16.msra.mxu0 %v1677
  %2328 = vmatprep.subr.bf16.mxu0 %v1674
  %2329 = vmatpush1.bf16.msra.mxu0 %v1673
  %2330 = vmatprep.subr.bf16.mxu0 %v1670
  %2331 = vmatpush1.bf16.msra.mxu0 %v1669
  %2332 = vmatprep.subr.bf16.mxu0 %v1666
  %2333 = vmatpush1.bf16.msra.mxu0 %v1665
  %2334 = vmatprep.subr.bf16.mxu0 %v1662
  %2335 = vmatpush1.bf16.msra.mxu0 %v1661
  %2336 = vmatprep.subr.bf16.mxu0 %v1722
  %2337 = vmatpush2.bf16.msra.mxu0 %v1721
  %2338 = vmatprep.subr.bf16.mxu0 %v1718
  %2339 = vmatpush2.bf16.msra.mxu0 %v1717
  %2340 = vmatprep.subr.bf16.mxu0 %v1714
  %2341 = vmatpush2.bf16.msra.mxu0 %v1713
  %2342 = vmatprep.subr.bf16.mxu0 %v1710
  %2343 = vmatpush2.bf16.msra.mxu0 %v1709
  %2344 = vmatprep.subr.bf16.mxu0 %v1706
  %2345 = vmatpush2.bf16.msra.mxu0 %v1705
  %2346 = vmatprep.subr.bf16.mxu0 %v1702
  %2347 = vmatpush2.bf16.msra.mxu0 %v1701
  %2348 = vmatprep.subr.bf16.mxu0 %v1698
  %2349 = vmatpush2.bf16.msra.mxu0 %v1697
  %2350 = vmatprep.subr.bf16.mxu0 %v1694
  %2351 = vmatpush2.bf16.msra.mxu0 %v1693
  %2352 = vmatprep.mubr.bf16.mxu0 %v580
  %2353 = vmatmul.mubr.bf16.gmra.mxu0 %v579
  %v2354 = vpop.f32.mrf.mxu0
  %v2355 = vadd.f32 %v2242, %v2354
  %v2356 = vpop.f32.mrf.mxu0
  %v2357 = vadd.f32 %v2244, %v2356
  %v2358 = vpop.f32.mrf.mxu0
  %v2359 = vadd.f32 %v2246, %v2358
  %v2360 = vpop.f32.mrf.mxu0
  %v2361 = vadd.f32 %v2248, %v2360
  %2362 = vmatprep.mubr.bf16.mxu0 %v588
  %2363 = vmatmul.mubr.bf16.gmra.mxu0 %v587
  %v2364 = vpop.f32.mrf.mxu0
  %v2365 = vadd.f32 %v2252, %v2364
  %v2366 = vpop.f32.mrf.mxu0
  %v2367 = vadd.f32 %v2254, %v2366
  %v2368 = vpop.f32.mrf.mxu0
  %v2369 = vadd.f32 %v2256, %v2368
  %v2370 = vpop.f32.mrf.mxu0
  %v2371 = vadd.f32 %v2258, %v2370
  %2372 = vmatprep.mubr.bf16.mxu0 %v596
  %2373 = vmatmul.mubr.bf16.gmra.mxu0 %v595
  %v2374 = vpop.f32.mrf.mxu0
  %v2375 = vadd.f32 %v2262, %v2374
  %v2376 = vpop.f32.mrf.mxu0
  %v2377 = vadd.f32 %v2264, %v2376
  %v2378 = vpop.f32.mrf.mxu0
  %v2379 = vadd.f32 %v2266, %v2378
  %v2380 = vpop.f32.mrf.mxu0
  %v2381 = vadd.f32 %v2268, %v2380
  %2382 = vmatprep.mubr.bf16.mxu0 %v604
  %2383 = vmatmul.mubr.bf16.gmra.mxu0 %v603
  %v2384 = vpop.f32.mrf.mxu0
  %v2385 = vadd.f32 %v2272, %v2384
  %v2386 = vpop.f32.mrf.mxu0
  %v2387 = vadd.f32 %v2274, %v2386
  %v2388 = vpop.f32.mrf.mxu0
  %v2389 = vadd.f32 %v2276, %v2388
  %v2390 = vpop.f32.mrf.mxu0
  %v2391 = vadd.f32 %v2278, %v2390
  %2392 = vmatprep.mubr.bf16.mxu0 %v612
  %2393 = vmatmul.mubr.bf16.gmra.mxu0 %v611
  %v2394 = vpop.f32.mrf.mxu0
  %v2395 = vadd.f32 %v2282, %v2394
  %v2396 = vpop.f32.mrf.mxu0
  %v2397 = vadd.f32 %v2284, %v2396
  %v2398 = vpop.f32.mrf.mxu0
  %v2399 = vadd.f32 %v2286, %v2398
  %v2400 = vpop.f32.mrf.mxu0
  %v2401 = vadd.f32 %v2288, %v2400
  %2402 = vmatprep.mubr.bf16.mxu0 %v620
  %2403 = vmatmul.mubr.bf16.gmra.mxu0 %v619
  %v2404 = vpop.f32.mrf.mxu0
  %v2405 = vadd.f32 %v2292, %v2404
  %v2406 = vpop.f32.mrf.mxu0
  %v2407 = vadd.f32 %v2294, %v2406
  %v2408 = vpop.f32.mrf.mxu0
  %v2409 = vadd.f32 %v2296, %v2408
  %v2410 = vpop.f32.mrf.mxu0
  %v2411 = vadd.f32 %v2298, %v2410
  %2412 = vmatprep.mubr.bf16.mxu0 %v628
  %2413 = vmatmul.mubr.bf16.gmra.mxu0 %v627
  %v2414 = vpop.f32.mrf.mxu0
  %v2415 = vadd.f32 %v2302, %v2414
  %v2416 = vpop.f32.mrf.mxu0
  %v2417 = vadd.f32 %v2304, %v2416
  %v2418 = vpop.f32.mrf.mxu0
  %v2419 = vadd.f32 %v2306, %v2418
  %v2420 = vpop.f32.mrf.mxu0
  %v2421 = vadd.f32 %v2308, %v2420
  %2422 = vmatprep.mubr.bf16.mxu0 %v636
  %2423 = vmatmul.mubr.bf16.gmra.mxu0 %v635
  %v2424 = vpop.f32.mrf.mxu0
  %v2425 = vadd.f32 %v2312, %v2424
  %v2426 = vpop.f32.mrf.mxu0
  %v2427 = vadd.f32 %v2314, %v2426
  %v2428 = vpop.f32.mrf.mxu0
  %v2429 = vadd.f32 %v2316, %v2428
  %v2430 = vpop.f32.mrf.mxu0
  %v2431 = vadd.f32 %v2318, %v2430
  %2432 = vdwg.mxu0
  %2433 = vmatprep.subr.bf16.mxu0 %v1500
  %2434 = vmatpush1.bf16.msra.mxu0 %v1499
  %2435 = vmatprep.subr.bf16.mxu0 %v1496
  %2436 = vmatpush1.bf16.msra.mxu0 %v1495
  %2437 = vmatprep.subr.bf16.mxu0 %v1492
  %2438 = vmatpush1.bf16.msra.mxu0 %v1491
  %2439 = vmatprep.subr.bf16.mxu0 %v1488
  %2440 = vmatpush1.bf16.msra.mxu0 %v1487
  %2441 = vmatprep.subr.bf16.mxu0 %v1484
  %2442 = vmatpush1.bf16.msra.mxu0 %v1483
  %2443 = vmatprep.subr.bf16.mxu0 %v1480
  %2444 = vmatpush1.bf16.msra.mxu0 %v1479
  %2445 = vmatprep.subr.bf16.mxu0 %v1476
  %2446 = vmatpush1.bf16.msra.mxu0 %v1475
  %2447 = vmatprep.subr.bf16.mxu0 %v1472
  %2448 = vmatpush1.bf16.msra.mxu0 %v1471
  %2449 = vmatprep.subr.bf16.mxu0 %v1532
  %2450 = vmatpush2.bf16.msra.mxu0 %v1531
  %2451 = vmatprep.subr.bf16.mxu0 %v1528
  %2452 = vmatpush2.bf16.msra.mxu0 %v1527
  %2453 = vmatprep.subr.bf16.mxu0 %v1524
  %2454 = vmatpush2.bf16.msra.mxu0 %v1523
  %2455 = vmatprep.subr.bf16.mxu0 %v1520
  %2456 = vmatpush2.bf16.msra.mxu0 %v1519
  %2457 = vmatprep.subr.bf16.mxu0 %v1516
  %2458 = vmatpush2.bf16.msra.mxu0 %v1515
  %2459 = vmatprep.subr.bf16.mxu0 %v1512
  %2460 = vmatpush2.bf16.msra.mxu0 %v1511
  %2461 = vmatprep.subr.bf16.mxu0 %v1508
  %2462 = vmatpush2.bf16.msra.mxu0 %v1507
  %2463 = vmatprep.subr.bf16.mxu0 %v1504
  %2464 = vmatpush2.bf16.msra.mxu0 %v1503
  %2465 = vmatprep.mubr.bf16.mxu0 %v574
  %2466 = vmatmul.mubr.bf16.gmra.mxu0 %v573
  %v2467 = vpop.f32.mrf.mxu0
  %v2468 = vadd.f32 %v372, %v2467
  %v2469 = vpop.f32.mrf.mxu0
  %v2470 = vadd.f32 %v376, %v2469
  %v2471 = vpop.f32.mrf.mxu0
  %v2472 = vadd.f32 %v372, %v2471
  %v2473 = vpop.f32.mrf.mxu0
  %v2474 = vadd.f32 %v376, %v2473
  %2475 = vmatprep.mubr.bf16.mxu0 %v582
  %2476 = vmatmul.mubr.bf16.gmra.mxu0 %v581
  %v2477 = vpop.f32.mrf.mxu0
  %v2478 = vadd.f32 %v372, %v2477
  %v2479 = vpop.f32.mrf.mxu0
  %v2480 = vadd.f32 %v376, %v2479
  %v2481 = vpop.f32.mrf.mxu0
  %v2482 = vadd.f32 %v372, %v2481
  %v2483 = vpop.f32.mrf.mxu0
  %v2484 = vadd.f32 %v376, %v2483
  %2485 = vmatprep.mubr.bf16.mxu0 %v590
  %2486 = vmatmul.mubr.bf16.gmra.mxu0 %v589
  %v2487 = vpop.f32.mrf.mxu0
  %v2488 = vadd.f32 %v372, %v2487
  %v2489 = vpop.f32.mrf.mxu0
  %v2490 = vadd.f32 %v376, %v2489
  %v2491 = vpop.f32.mrf.mxu0
  %v2492 = vadd.f32 %v372, %v2491
  %v2493 = vpop.f32.mrf.mxu0
  %v2494 = vadd.f32 %v376, %v2493
  %2495 = vmatprep.mubr.bf16.mxu0 %v598
  %2496 = vmatmul.mubr.bf16.gmra.mxu0 %v597
  %v2497 = vpop.f32.mrf.mxu0
  %v2498 = vadd.f32 %v372, %v2497
  %v2499 = vpop.f32.mrf.mxu0
  %v2500 = vadd.f32 %v376, %v2499
  %v2501 = vpop.f32.mrf.mxu0
  %v2502 = vadd.f32 %v372, %v2501
  %v2503 = vpop.f32.mrf.mxu0
  %v2504 = vadd.f32 %v376, %v2503
  %2505 = vmatprep.mubr.bf16.mxu0 %v606
  %2506 = vmatmul.mubr.bf16.gmra.mxu0 %v605
  %v2507 = vpop.f32.mrf.mxu0
  %v2508 = vadd.f32 %v372, %v2507
  %v2509 = vpop.f32.mrf.mxu0
  %v2510 = vadd.f32 %v376, %v2509
  %v2511 = vpop.f32.mrf.mxu0
  %v2512 = vadd.f32 %v372, %v2511
  %v2513 = vpop.f32.mrf.mxu0
  %v2514 = vadd.f32 %v376, %v2513
  %2515 = vmatprep.mubr.bf16.mxu0 %v614
  %2516 = vmatmul.mubr.bf16.gmra.mxu0 %v613
  %v2517 = vpop.f32.mrf.mxu0
  %v2518 = vadd.f32 %v372, %v2517
  %v2519 = vpop.f32.mrf.mxu0
  %v2520 = vadd.f32 %v376, %v2519
  %v2521 = vpop.f32.mrf.mxu0
  %v2522 = vadd.f32 %v372, %v2521
  %v2523 = vpop.f32.mrf.mxu0
  %v2524 = vadd.f32 %v376, %v2523
  %2525 = vmatprep.mubr.bf16.mxu0 %v622
  %2526 = vmatmul.mubr.bf16.gmra.mxu0 %v621
  %v2527 = vpop.f32.mrf.mxu0
  %v2528 = vadd.f32 %v372, %v2527
  %v2529 = vpop.f32.mrf.mxu0
  %v2530 = vadd.f32 %v376, %v2529
  %v2531 = vpop.f32.mrf.mxu0
  %v2532 = vadd.f32 %v372, %v2531
  %v2533 = vpop.f32.mrf.mxu0
  %v2534 = vadd.f32 %v376, %v2533
  %2535 = vmatprep.mubr.bf16.mxu0 %v630
  %2536 = vmatmul.mubr.bf16.gmra.mxu0 %v629
  %v2537 = vpop.f32.mrf.mxu0
  %v2538 = vadd.f32 %v372, %v2537
  %v2539 = vpop.f32.mrf.mxu0
  %v2540 = vadd.f32 %v376, %v2539
  %v2541 = vpop.f32.mrf.mxu0
  %v2542 = vadd.f32 %v372, %v2541
  %v2543 = vpop.f32.mrf.mxu0
  %v2544 = vadd.f32 %v376, %v2543
  %2545 = vdwg.mxu0
  %2546 = vmatprep.subr.bf16.mxu0 %v1564
  %2547 = vmatpush1.bf16.msra.mxu0 %v1563
  %2548 = vmatprep.subr.bf16.mxu0 %v1560
  %2549 = vmatpush1.bf16.msra.mxu0 %v1559
  %2550 = vmatprep.subr.bf16.mxu0 %v1556
  %2551 = vmatpush1.bf16.msra.mxu0 %v1555
  %2552 = vmatprep.subr.bf16.mxu0 %v1552
  %2553 = vmatpush1.bf16.msra.mxu0 %v1551
  %2554 = vmatprep.subr.bf16.mxu0 %v1548
  %2555 = vmatpush1.bf16.msra.mxu0 %v1547
  %2556 = vmatprep.subr.bf16.mxu0 %v1544
  %2557 = vmatpush1.bf16.msra.mxu0 %v1543
  %2558 = vmatprep.subr.bf16.mxu0 %v1540
  %2559 = vmatpush1.bf16.msra.mxu0 %v1539
  %2560 = vmatprep.subr.bf16.mxu0 %v1536
  %2561 = vmatpush1.bf16.msra.mxu0 %v1535
  %2562 = vmatprep.subr.bf16.mxu0 %v1596
  %2563 = vmatpush2.bf16.msra.mxu0 %v1595
  %2564 = vmatprep.subr.bf16.mxu0 %v1592
  %2565 = vmatpush2.bf16.msra.mxu0 %v1591
  %2566 = vmatprep.subr.bf16.mxu0 %v1588
  %2567 = vmatpush2.bf16.msra.mxu0 %v1587
  %2568 = vmatprep.subr.bf16.mxu0 %v1584
  %2569 = vmatpush2.bf16.msra.mxu0 %v1583
  %2570 = vmatprep.subr.bf16.mxu0 %v1580
  %2571 = vmatpush2.bf16.msra.mxu0 %v1579
  %2572 = vmatprep.subr.bf16.mxu0 %v1576
  %2573 = vmatpush2.bf16.msra.mxu0 %v1575
  %2574 = vmatprep.subr.bf16.mxu0 %v1572
  %2575 = vmatpush2.bf16.msra.mxu0 %v1571
  %2576 = vmatprep.subr.bf16.mxu0 %v1568
  %2577 = vmatpush2.bf16.msra.mxu0 %v1567
  %2578 = vmatprep.mubr.bf16.mxu0 %v576
  %2579 = vmatmul.mubr.bf16.gmra.mxu0 %v575
  %v2580 = vpop.f32.mrf.mxu0
  %v2581 = vadd.f32 %v2468, %v2580
  %v2582 = vpop.f32.mrf.mxu0
  %v2583 = vadd.f32 %v2470, %v2582
  %v2584 = vpop.f32.mrf.mxu0
  %v2585 = vadd.f32 %v2472, %v2584
  %v2586 = vpop.f32.mrf.mxu0
  %v2587 = vadd.f32 %v2474, %v2586
  %2588 = vmatprep.mubr.bf16.mxu0 %v584
  %2589 = vmatmul.mubr.bf16.gmra.mxu0 %v583
  %v2590 = vpop.f32.mrf.mxu0
  %v2591 = vadd.f32 %v2478, %v2590
  %v2592 = vpop.f32.mrf.mxu0
  %v2593 = vadd.f32 %v2480, %v2592
  %v2594 = vpop.f32.mrf.mxu0
  %v2595 = vadd.f32 %v2482, %v2594
  %v2596 = vpop.f32.mrf.mxu0
  %v2597 = vadd.f32 %v2484, %v2596
  %2598 = vmatprep.mubr.bf16.mxu0 %v592
  %2599 = vmatmul.mubr.bf16.gmra.mxu0 %v591
  %v2600 = vpop.f32.mrf.mxu0
  %v2601 = vadd.f32 %v2488, %v2600
  %v2602 = vpop.f32.mrf.mxu0
  %v2603 = vadd.f32 %v2490, %v2602
  %v2604 = vpop.f32.mrf.mxu0
  %v2605 = vadd.f32 %v2492, %v2604
  %v2606 = vpop.f32.mrf.mxu0
  %v2607 = vadd.f32 %v2494, %v2606
  %2608 = vmatprep.mubr.bf16.mxu0 %v600
  %2609 = vmatmul.mubr.bf16.gmra.mxu0 %v599
  %v2610 = vpop.f32.mrf.mxu0
  %v2611 = vadd.f32 %v2498, %v2610
  %v2612 = vpop.f32.mrf.mxu0
  %v2613 = vadd.f32 %v2500, %v2612
  %v2614 = vpop.f32.mrf.mxu0
  %v2615 = vadd.f32 %v2502, %v2614
  %v2616 = vpop.f32.mrf.mxu0
  %v2617 = vadd.f32 %v2504, %v2616
  %2618 = vmatprep.mubr.bf16.mxu0 %v608
  %2619 = vmatmul.mubr.bf16.gmra.mxu0 %v607
  %v2620 = vpop.f32.mrf.mxu0
  %v2621 = vadd.f32 %v2508, %v2620
  %v2622 = vpop.f32.mrf.mxu0
  %v2623 = vadd.f32 %v2510, %v2622
  %v2624 = vpop.f32.mrf.mxu0
  %v2625 = vadd.f32 %v2512, %v2624
  %v2626 = vpop.f32.mrf.mxu0
  %v2627 = vadd.f32 %v2514, %v2626
  %2628 = vmatprep.mubr.bf16.mxu0 %v616
  %2629 = vmatmul.mubr.bf16.gmra.mxu0 %v615
  %v2630 = vpop.f32.mrf.mxu0
  %v2631 = vadd.f32 %v2518, %v2630
  %v2632 = vpop.f32.mrf.mxu0
  %v2633 = vadd.f32 %v2520, %v2632
  %v2634 = vpop.f32.mrf.mxu0
  %v2635 = vadd.f32 %v2522, %v2634
  %v2636 = vpop.f32.mrf.mxu0
  %v2637 = vadd.f32 %v2524, %v2636
  %2638 = vmatprep.mubr.bf16.mxu0 %v624
  %2639 = vmatmul.mubr.bf16.gmra.mxu0 %v623
  %v2640 = vpop.f32.mrf.mxu0
  %v2641 = vadd.f32 %v2528, %v2640
  %v2642 = vpop.f32.mrf.mxu0
  %v2643 = vadd.f32 %v2530, %v2642
  %v2644 = vpop.f32.mrf.mxu0
  %v2645 = vadd.f32 %v2532, %v2644
  %v2646 = vpop.f32.mrf.mxu0
  %v2647 = vadd.f32 %v2534, %v2646
  %2648 = vmatprep.mubr.bf16.mxu0 %v632
  %2649 = vmatmul.mubr.bf16.gmra.mxu0 %v631
  %v2650 = vpop.f32.mrf.mxu0
  %v2651 = vadd.f32 %v2538, %v2650
  %v2652 = vpop.f32.mrf.mxu0
  %v2653 = vadd.f32 %v2540, %v2652
  %v2654 = vpop.f32.mrf.mxu0
  %v2655 = vadd.f32 %v2542, %v2654
  %v2656 = vpop.f32.mrf.mxu0
  %v2657 = vadd.f32 %v2544, %v2656
  %2658 = vdwg.mxu0
  %2659 = vmatprep.subr.bf16.mxu0 %v1628
  %2660 = vmatpush1.bf16.msra.mxu0 %v1627
  %2661 = vmatprep.subr.bf16.mxu0 %v1624
  %2662 = vmatpush1.bf16.msra.mxu0 %v1623
  %2663 = vmatprep.subr.bf16.mxu0 %v1620
  %2664 = vmatpush1.bf16.msra.mxu0 %v1619
  %2665 = vmatprep.subr.bf16.mxu0 %v1616
  %2666 = vmatpush1.bf16.msra.mxu0 %v1615
  %2667 = vmatprep.subr.bf16.mxu0 %v1612
  %2668 = vmatpush1.bf16.msra.mxu0 %v1611
  %2669 = vmatprep.subr.bf16.mxu0 %v1608
  %2670 = vmatpush1.bf16.msra.mxu0 %v1607
  %2671 = vmatprep.subr.bf16.mxu0 %v1604
  %2672 = vmatpush1.bf16.msra.mxu0 %v1603
  %2673 = vmatprep.subr.bf16.mxu0 %v1600
  %2674 = vmatpush1.bf16.msra.mxu0 %v1599
  %2675 = vmatprep.subr.bf16.mxu0 %v1660
  %2676 = vmatpush2.bf16.msra.mxu0 %v1659
  %2677 = vmatprep.subr.bf16.mxu0 %v1656
  %2678 = vmatpush2.bf16.msra.mxu0 %v1655
  %2679 = vmatprep.subr.bf16.mxu0 %v1652
  %2680 = vmatpush2.bf16.msra.mxu0 %v1651
  %2681 = vmatprep.subr.bf16.mxu0 %v1648
  %2682 = vmatpush2.bf16.msra.mxu0 %v1647
  %2683 = vmatprep.subr.bf16.mxu0 %v1644
  %2684 = vmatpush2.bf16.msra.mxu0 %v1643
  %2685 = vmatprep.subr.bf16.mxu0 %v1640
  %2686 = vmatpush2.bf16.msra.mxu0 %v1639
  %2687 = vmatprep.subr.bf16.mxu0 %v1636
  %2688 = vmatpush2.bf16.msra.mxu0 %v1635
  %2689 = vmatprep.subr.bf16.mxu0 %v1632
  %2690 = vmatpush2.bf16.msra.mxu0 %v1631
  %2691 = vmatprep.mubr.bf16.mxu0 %v578
  %2692 = vmatmul.mubr.bf16.gmra.mxu0 %v577
  %v2693 = vpop.f32.mrf.mxu0
  %v2694 = vadd.f32 %v2581, %v2693
  %v2695 = vpop.f32.mrf.mxu0
  %v2696 = vadd.f32 %v2583, %v2695
  %v2697 = vpop.f32.mrf.mxu0
  %v2698 = vadd.f32 %v2585, %v2697
  %v2699 = vpop.f32.mrf.mxu0
  %v2700 = vadd.f32 %v2587, %v2699
  %2701 = vmatprep.mubr.bf16.mxu0 %v586
  %2702 = vmatmul.mubr.bf16.gmra.mxu0 %v585
  %v2703 = vpop.f32.mrf.mxu0
  %v2704 = vadd.f32 %v2591, %v2703
  %v2705 = vpop.f32.mrf.mxu0
  %v2706 = vadd.f32 %v2593, %v2705
  %v2707 = vpop.f32.mrf.mxu0
  %v2708 = vadd.f32 %v2595, %v2707
  %v2709 = vpop.f32.mrf.mxu0
  %v2710 = vadd.f32 %v2597, %v2709
  %2711 = vmatprep.mubr.bf16.mxu0 %v594
  %2712 = vmatmul.mubr.bf16.gmra.mxu0 %v593
  %v2713 = vpop.f32.mrf.mxu0
  %v2714 = vadd.f32 %v2601, %v2713
  %v2715 = vpop.f32.mrf.mxu0
  %v2716 = vadd.f32 %v2603, %v2715
  %v2717 = vpop.f32.mrf.mxu0
  %v2718 = vadd.f32 %v2605, %v2717
  %v2719 = vpop.f32.mrf.mxu0
  %v2720 = vadd.f32 %v2607, %v2719
  %2721 = vmatprep.mubr.bf16.mxu0 %v602
  %2722 = vmatmul.mubr.bf16.gmra.mxu0 %v601
  %v2723 = vpop.f32.mrf.mxu0
  %v2724 = vadd.f32 %v2611, %v2723
  %v2725 = vpop.f32.mrf.mxu0
  %v2726 = vadd.f32 %v2613, %v2725
  %v2727 = vpop.f32.mrf.mxu0
  %v2728 = vadd.f32 %v2615, %v2727
  %v2729 = vpop.f32.mrf.mxu0
  %v2730 = vadd.f32 %v2617, %v2729
  %2731 = vmatprep.mubr.bf16.mxu0 %v610
  %2732 = vmatmul.mubr.bf16.gmra.mxu0 %v609
  %v2733 = vpop.f32.mrf.mxu0
  %v2734 = vadd.f32 %v2621, %v2733
  %v2735 = vpop.f32.mrf.mxu0
  %v2736 = vadd.f32 %v2623, %v2735
  %v2737 = vpop.f32.mrf.mxu0
  %v2738 = vadd.f32 %v2625, %v2737
  %v2739 = vpop.f32.mrf.mxu0
  %v2740 = vadd.f32 %v2627, %v2739
  %2741 = vmatprep.mubr.bf16.mxu0 %v618
  %2742 = vmatmul.mubr.bf16.gmra.mxu0 %v617
  %v2743 = vpop.f32.mrf.mxu0
  %v2744 = vadd.f32 %v2631, %v2743
  %v2745 = vpop.f32.mrf.mxu0
  %v2746 = vadd.f32 %v2633, %v2745
  %v2747 = vpop.f32.mrf.mxu0
  %v2748 = vadd.f32 %v2635, %v2747
  %v2749 = vpop.f32.mrf.mxu0
  %v2750 = vadd.f32 %v2637, %v2749
  %2751 = vmatprep.mubr.bf16.mxu0 %v626
  %2752 = vmatmul.mubr.bf16.gmra.mxu0 %v625
  %v2753 = vpop.f32.mrf.mxu0
  %v2754 = vadd.f32 %v2641, %v2753
  %v2755 = vpop.f32.mrf.mxu0
  %v2756 = vadd.f32 %v2643, %v2755
  %v2757 = vpop.f32.mrf.mxu0
  %v2758 = vadd.f32 %v2645, %v2757
  %v2759 = vpop.f32.mrf.mxu0
  %v2760 = vadd.f32 %v2647, %v2759
  %2761 = vmatprep.mubr.bf16.mxu0 %v634
  %2762 = vmatmul.mubr.bf16.gmra.mxu0 %v633
  %v2763 = vpop.f32.mrf.mxu0
  %v2764 = vadd.f32 %v2651, %v2763
  %v2765 = vpop.f32.mrf.mxu0
  %v2766 = vadd.f32 %v2653, %v2765
  %v2767 = vpop.f32.mrf.mxu0
  %v2768 = vadd.f32 %v2655, %v2767
  %v2769 = vpop.f32.mrf.mxu0
  %v2770 = vadd.f32 %v2657, %v2769
  %2771 = vdwg.mxu0
  %2772 = vmatprep.subr.bf16.mxu0 %v1692
  %2773 = vmatpush1.bf16.msra.mxu0 %v1691
  %2774 = vmatprep.subr.bf16.mxu0 %v1688
  %2775 = vmatpush1.bf16.msra.mxu0 %v1687
  %2776 = vmatprep.subr.bf16.mxu0 %v1684
  %2777 = vmatpush1.bf16.msra.mxu0 %v1683
  %2778 = vmatprep.subr.bf16.mxu0 %v1680
  %2779 = vmatpush1.bf16.msra.mxu0 %v1679
  %2780 = vmatprep.subr.bf16.mxu0 %v1676
  %2781 = vmatpush1.bf16.msra.mxu0 %v1675
  %2782 = vmatprep.subr.bf16.mxu0 %v1672
  %2783 = vmatpush1.bf16.msra.mxu0 %v1671
  %2784 = vmatprep.subr.bf16.mxu0 %v1668
  %2785 = vmatpush1.bf16.msra.mxu0 %v1667
  %2786 = vmatprep.subr.bf16.mxu0 %v1664
  %2787 = vmatpush1.bf16.msra.mxu0 %v1663
  %2788 = vmatprep.subr.bf16.mxu0 %v1724
  %2789 = vmatpush2.bf16.msra.mxu0 %v1723
  %2790 = vmatprep.subr.bf16.mxu0 %v1720
  %2791 = vmatpush2.bf16.msra.mxu0 %v1719
  %2792 = vmatprep.subr.bf16.mxu0 %v1716
  %2793 = vmatpush2.bf16.msra.mxu0 %v1715
  %2794 = vmatprep.subr.bf16.mxu0 %v1712
  %2795 = vmatpush2.bf16.msra.mxu0 %v1711
  %2796 = vmatprep.subr.bf16.mxu0 %v1708
  %2797 = vmatpush2.bf16.msra.mxu0 %v1707
  %2798 = vmatprep.subr.bf16.mxu0 %v1704
  %2799 = vmatpush2.bf16.msra.mxu0 %v1703
  %2800 = vmatprep.subr.bf16.mxu0 %v1700
  %2801 = vmatpush2.bf16.msra.mxu0 %v1699
  %2802 = vmatprep.subr.bf16.mxu0 %v1696
  %2803 = vmatpush2.bf16.msra.mxu0 %v1695
  %2804 = vmatprep.mubr.bf16.mxu0 %v580
  %2805 = vmatmul.mubr.bf16.gmra.mxu0 %v579
  %v2806 = vpop.f32.mrf.mxu0
  %v2807 = vadd.f32 %v2694, %v2806
  %v2808 = vpop.f32.mrf.mxu0
  %v2809 = vadd.f32 %v2696, %v2808
  %v2810 = vpop.f32.mrf.mxu0
  %v2811 = vadd.f32 %v2698, %v2810
  %v2812 = vpop.f32.mrf.mxu0
  %v2813 = vadd.f32 %v2700, %v2812
  %2814 = vmatprep.mubr.bf16.mxu0 %v588
  %2815 = vmatmul.mubr.bf16.gmra.mxu0 %v587
  %v2816 = vpop.f32.mrf.mxu0
  %v2817 = vadd.f32 %v2704, %v2816
  %v2818 = vpop.f32.mrf.mxu0
  %v2819 = vadd.f32 %v2706, %v2818
  %v2820 = vpop.f32.mrf.mxu0
  %v2821 = vadd.f32 %v2708, %v2820
  %v2822 = vpop.f32.mrf.mxu0
  %v2823 = vadd.f32 %v2710, %v2822
  %2824 = vmatprep.mubr.bf16.mxu0 %v596
  %2825 = vmatmul.mubr.bf16.gmra.mxu0 %v595
  %v2826 = vpop.f32.mrf.mxu0
  %v2827 = vadd.f32 %v2714, %v2826
  %v2828 = vpop.f32.mrf.mxu0
  %v2829 = vadd.f32 %v2716, %v2828
  %v2830 = vpop.f32.mrf.mxu0
  %v2831 = vadd.f32 %v2718, %v2830
  %v2832 = vpop.f32.mrf.mxu0
  %v2833 = vadd.f32 %v2720, %v2832
  %2834 = vmatprep.mubr.bf16.mxu0 %v604
  %2835 = vmatmul.mubr.bf16.gmra.mxu0 %v603
  %v2836 = vpop.f32.mrf.mxu0
  %v2837 = vadd.f32 %v2724, %v2836
  %v2838 = vpop.f32.mrf.mxu0
  %v2839 = vadd.f32 %v2726, %v2838
  %v2840 = vpop.f32.mrf.mxu0
  %v2841 = vadd.f32 %v2728, %v2840
  %v2842 = vpop.f32.mrf.mxu0
  %v2843 = vadd.f32 %v2730, %v2842
  %2844 = vmatprep.mubr.bf16.mxu0 %v612
  %2845 = vmatmul.mubr.bf16.gmra.mxu0 %v611
  %v2846 = vpop.f32.mrf.mxu0
  %v2847 = vadd.f32 %v2734, %v2846
  %v2848 = vpop.f32.mrf.mxu0
  %v2849 = vadd.f32 %v2736, %v2848
  %v2850 = vpop.f32.mrf.mxu0
  %v2851 = vadd.f32 %v2738, %v2850
  %v2852 = vpop.f32.mrf.mxu0
  %v2853 = vadd.f32 %v2740, %v2852
  %2854 = vmatprep.mubr.bf16.mxu0 %v620
  %2855 = vmatmul.mubr.bf16.gmra.mxu0 %v619
  %v2856 = vpop.f32.mrf.mxu0
  %v2857 = vadd.f32 %v2744, %v2856
  %v2858 = vpop.f32.mrf.mxu0
  %v2859 = vadd.f32 %v2746, %v2858
  %v2860 = vpop.f32.mrf.mxu0
  %v2861 = vadd.f32 %v2748, %v2860
  %v2862 = vpop.f32.mrf.mxu0
  %v2863 = vadd.f32 %v2750, %v2862
  %2864 = vmatprep.mubr.bf16.mxu0 %v628
  %2865 = vmatmul.mubr.bf16.gmra.mxu0 %v627
  %v2866 = vpop.f32.mrf.mxu0
  %v2867 = vadd.f32 %v2754, %v2866
  %v2868 = vpop.f32.mrf.mxu0
  %v2869 = vadd.f32 %v2756, %v2868
  %v2870 = vpop.f32.mrf.mxu0
  %v2871 = vadd.f32 %v2758, %v2870
  %v2872 = vpop.f32.mrf.mxu0
  %v2873 = vadd.f32 %v2760, %v2872
  %2874 = vmatprep.mubr.bf16.mxu0 %v636
  %2875 = vmatmul.mubr.bf16.gmra.mxu0 %v635
  %v2876 = vpop.f32.mrf.mxu0
  %v2877 = vadd.f32 %v2764, %v2876
  %v2878 = vpop.f32.mrf.mxu0
  %v2879 = vadd.f32 %v2766, %v2878
  %v2880 = vpop.f32.mrf.mxu0
  %v2881 = vadd.f32 %v2768, %v2880
  %v2882 = vpop.f32.mrf.mxu0
  %v2883 = vadd.f32 %v2770, %v2882
  %2884 = vdwg.mxu0
  %v2885 = vmax.f32 %v2355, 0.0
  %v2886 = vmax.f32 %v2357, 0.0
  %v2887 = vmax.f32 %v2807, 0.0
  %v2888 = vmax.f32 %v2809, 0.0
  %v2889 = vmax.f32 %v2359, 0.0
  %v2890 = vmax.f32 %v2361, 0.0
  %v2891 = vmax.f32 %v2811, 0.0
  %v2892 = vmax.f32 %v2813, 0.0
  %v2893 = vmax.f32 %v2365, 0.0
  %v2894 = vmax.f32 %v2367, 0.0
  %v2895 = vmax.f32 %v2817, 0.0
  %v2896 = vmax.f32 %v2819, 0.0
  %v2897 = vmax.f32 %v2369, 0.0
  %v2898 = vmax.f32 %v2371, 0.0
  %v2899 = vmax.f32 %v2821, 0.0
  %v2900 = vmax.f32 %v2823, 0.0
  %v2901 = vmax.f32 %v2375, 0.0
  %v2902 = vmax.f32 %v2377, 0.0
  %v2903 = vmax.f32 %v2827, 0.0
  %v2904 = vmax.f32 %v2829, 0.0
  %v2905 = vmax.f32 %v2379, 0.0
  %v2906 = vmax.f32 %v2381, 0.0
  %v2907 = vmax.f32 %v2831, 0.0
  %v2908 = vmax.f32 %v2833, 0.0
  %v2909 = vmax.f32 %v2385, 0.0
  %v2910 = vmax.f32 %v2387, 0.0
  %v2911 = vmax.f32 %v2837, 0.0
  %v2912 = vmax.f32 %v2839, 0.0
  %v2913 = vmax.f32 %v2389, 0.0
  %v2914 = vmax.f32 %v2391, 0.0
  %v2915 = vmax.f32 %v2841, 0.0
  %v2916 = vmax.f32 %v2843, 0.0
  %v2917 = vmax.f32 %v2395, 0.0
  %v2918 = vmax.f32 %v2397, 0.0
  %v2919 = vmax.f32 %v2847, 0.0
  %v2920 = vmax.f32 %v2849, 0.0
  %v2921 = vmax.f32 %v2399, 0.0
  %v2922 = vmax.f32 %v2401, 0.0
  %v2923 = vmax.f32 %v2851, 0.0
  %v2924 = vmax.f32 %v2853, 0.0
  %v2925 = vmax.f32 %v2405, 0.0
  %v2926 = vmax.f32 %v2407, 0.0
  %v2927 = vmax.f32 %v2857, 0.0
  %v2928 = vmax.f32 %v2859, 0.0
  %v2929 = vmax.f32 %v2409, 0.0
  %v2930 = vmax.f32 %v2411, 0.0
  %v2931 = vmax.f32 %v2861, 0.0
  %v2932 = vmax.f32 %v2863, 0.0
  %v2933 = vmax.f32 %v2415, 0.0
  %v2934 = vmax.f32 %v2417, 0.0
  %v2935 = vmax.f32 %v2867, 0.0
  %v2936 = vmax.f32 %v2869, 0.0
  %v2937 = vmax.f32 %v2419, 0.0
  %v2938 = vmax.f32 %v2421, 0.0
  %v2939 = vmax.f32 %v2871, 0.0
  %v2940 = vmax.f32 %v2873, 0.0
  %v2941 = vmax.f32 %v2425, 0.0
  %v2942 = vmax.f32 %v2427, 0.0
  %v2943 = vmax.f32 %v2877, 0.0
  %v2944 = vmax.f32 %v2879, 0.0
  %v2945 = vmax.f32 %v2429, 0.0
  %v2946 = vmax.f32 %v2431, 0.0
  %v2947 = vmax.f32 %v2881, 0.0
  %v2948 = vmax.f32 %v2883, 0.0
  %v2949 = vpack.c.bf16 %v2889, %v2885
  %v2950 = vpack.c.bf16 %v2890, %v2886
  %v2951 = vpack.c.bf16 %v2891, %v2887
  %v2952 = vpack.c.bf16 %v2892, %v2888
  %v2953 = vpack.c.bf16 %v2897, %v2893
  %v2954 = vpack.c.bf16 %v2898, %v2894
  %v2955 = vpack.c.bf16 %v2899, %v2895
  %v2956 = vpack.c.bf16 %v2900, %v2896
  %v2957 = vpack.c.bf16 %v2905, %v2901
  %v2958 = vpack.c.bf16 %v2906, %v2902
  %v2959 = vpack.c.bf16 %v2907, %v2903
  %v2960 = vpack.c.bf16 %v2908, %v2904
  %v2961 = vpack.c.bf16 %v2913, %v2909
  %v2962 = vpack.c.bf16 %v2914, %v2910
  %v2963 = vpack.c.bf16 %v2915, %v2911
  %v2964 = vpack.c.bf16 %v2916, %v2912
  %v2965 = vpack.c.bf16 %v2921, %v2917
  %v2966 = vpack.c.bf16 %v2922, %v2918
  %v2967 = vpack.c.bf16 %v2923, %v2919
  %v2968 = vpack.c.bf16 %v2924, %v2920
  %v2969 = vpack.c.bf16 %v2929, %v2925
  %v2970 = vpack.c.bf16 %v2930, %v2926
  %v2971 = vpack.c.bf16 %v2931, %v2927
  %v2972 = vpack.c.bf16 %v2932, %v2928
  %v2973 = vpack.c.bf16 %v2937, %v2933
  %v2974 = vpack.c.bf16 %v2938, %v2934
  %v2975 = vpack.c.bf16 %v2939, %v2935
  %v2976 = vpack.c.bf16 %v2940, %v2936
  %v2977 = vpack.c.bf16 %v2945, %v2941
  %v2978 = vpack.c.bf16 %v2946, %v2942
  %v2979 = vpack.c.bf16 %v2947, %v2943
  %v2980 = vpack.c.bf16 %v2948, %v2944
  %v2981 = vld [vmem:[%s3] sm:$0xff]
  %v2982 = vld [vmem:[%s3 + $0x8] sm:$0xff]
  %v2983 = vld [vmem:[%s3 + $0x10] sm:$0xff]
  %v2984 = vld [vmem:[%s3 + $0x18] sm:$0xff]
  %v2985 = vld [vmem:[%s3 + $0x20] sm:$0xff]
  %v2986 = vld [vmem:[%s3 + $0x28] sm:$0xff]
  %v2987 = vld [vmem:[%s3 + $0x30] sm:$0xff]
  %v2988 = vld [vmem:[%s3 + $0x38] sm:$0xff]
  %v2989 = vld [vmem:[%s3 + $0x40] sm:$0xff]
  %v2990 = vld [vmem:[%s3 + $0x48] sm:$0xff]
  %v2991 = vld [vmem:[%s3 + $0x50] sm:$0xff]
  %v2992 = vld [vmem:[%s3 + $0x58] sm:$0xff]
  %v2993 = vld [vmem:[%s3 + $0x60] sm:$0xff]
  %v2994 = vld [vmem:[%s3 + $0x68] sm:$0xff]
  %v2995 = vld [vmem:[%s3 + $0x70] sm:$0xff]
  %v2996 = vld [vmem:[%s3 + $0x78] sm:$0xff]
  %v2997 = vld [vmem:[%s3 + $0x80] sm:$0xff]
  %v2998 = vld [vmem:[%s3 + $0x88] sm:$0xff]
  %v2999 = vld [vmem:[%s3 + $0x90] sm:$0xff]
  %v3000 = vld [vmem:[%s3 + $0x98] sm:$0xff]
  %v3001 = vld [vmem:[%s3 + $0xa0] sm:$0xff]
  %v3002 = vld [vmem:[%s3 + $0xa8] sm:$0xff]
  %v3003 = vld [vmem:[%s3 + $0xb0] sm:$0xff]
  %v3004 = vld [vmem:[%s3 + $0xb8] sm:$0xff]
  %v3005 = vld [vmem:[%s3 + $0xc0] sm:$0xff]
  %v3006 = vld [vmem:[%s3 + $0xc8] sm:$0xff]
  %v3007 = vld [vmem:[%s3 + $0xd0] sm:$0xff]
  %v3008 = vld [vmem:[%s3 + $0xd8] sm:$0xff]
  %v3009 = vld [vmem:[%s3 + $0xe0] sm:$0xff]
  %v3010 = vld [vmem:[%s3 + $0xe8] sm:$0xff]
  %v3011 = vld [vmem:[%s3 + $0xf0] sm:$0xff]
  %v3012 = vld [vmem:[%s3 + $0xf8] sm:$0xff]
  %v3013 = vld [vmem:[%s3 + $0x100] sm:$0xff]
  %v3014 = vld [vmem:[%s3 + $0x108] sm:$0xff]
  %v3015 = vld [vmem:[%s3 + $0x110] sm:$0xff]
  %v3016 = vld [vmem:[%s3 + $0x118] sm:$0xff]
  %v3017 = vld [vmem:[%s3 + $0x120] sm:$0xff]
  %v3018 = vld [vmem:[%s3 + $0x128] sm:$0xff]
  %v3019 = vld [vmem:[%s3 + $0x130] sm:$0xff]
  %v3020 = vld [vmem:[%s3 + $0x138] sm:$0xff]
  %v3021 = vld [vmem:[%s3 + $0x140] sm:$0xff]
  %v3022 = vld [vmem:[%s3 + $0x148] sm:$0xff]
  %v3023 = vld [vmem:[%s3 + $0x150] sm:$0xff]
  %v3024 = vld [vmem:[%s3 + $0x158] sm:$0xff]
  %v3025 = vld [vmem:[%s3 + $0x160] sm:$0xff]
  %v3026 = vld [vmem:[%s3 + $0x168] sm:$0xff]
  %v3027 = vld [vmem:[%s3 + $0x170] sm:$0xff]
  %v3028 = vld [vmem:[%s3 + $0x178] sm:$0xff]
  %v3029 = vld [vmem:[%s3 + $0x180] sm:$0xff]
  %v3030 = vld [vmem:[%s3 + $0x188] sm:$0xff]
  %v3031 = vld [vmem:[%s3 + $0x190] sm:$0xff]
  %v3032 = vld [vmem:[%s3 + $0x198] sm:$0xff]
  %v3033 = vld [vmem:[%s3 + $0x1a0] sm:$0xff]
  %v3034 = vld [vmem:[%s3 + $0x1a8] sm:$0xff]
  %v3035 = vld [vmem:[%s3 + $0x1b0] sm:$0xff]
  %v3036 = vld [vmem:[%s3 + $0x1b8] sm:$0xff]
  %v3037 = vld [vmem:[%s3 + $0x1c0] sm:$0xff]
  %v3038 = vld [vmem:[%s3 + $0x1c8] sm:$0xff]
  %v3039 = vld [vmem:[%s3 + $0x1d0] sm:$0xff]
  %v3040 = vld [vmem:[%s3 + $0x1d8] sm:$0xff]
  %v3041 = vld [vmem:[%s3 + $0x1e0] sm:$0xff]
  %v3042 = vld [vmem:[%s3 + $0x1e8] sm:$0xff]
  %v3043 = vld [vmem:[%s3 + $0x1f0] sm:$0xff]
  %v3044 = vld [vmem:[%s3 + $0x1f8] sm:$0xff]
  %v3045 = vld [vmem:[%s4] sm:$0x3]
  %v3047 = vlaneseq
  %v3048 = vshrl.u32 %v3047, 7
  %v3049 = vsub.s32 0, %v3048
  %v3050 = vrot.slane %v3045, %v3049
  %v3051 = vlaneseq
  %v3052 = vshrl.u32 %v3051, 7
  %v3053 = vsub.s32 1, %v3052
  %v3054 = vrot.slane %v3045, %v3053
  %v3121 = vunpack.c.l.b16 %v2981
  %v3122 = vunpack.c.h.b16 %v2981
  %v3123 = vunpack.c.l.b16 %v2982
  %v3124 = vunpack.c.h.b16 %v2982
  %v3125 = vunpack.c.l.b16 %v2983
  %v3126 = vunpack.c.h.b16 %v2983
  %v3127 = vunpack.c.l.b16 %v2984
  %v3128 = vunpack.c.h.b16 %v2984
  %v3129 = vunpack.c.l.b16 %v2985
  %v3130 = vunpack.c.h.b16 %v2985
  %v3131 = vunpack.c.l.b16 %v2986
  %v3132 = vunpack.c.h.b16 %v2986
  %v3133 = vunpack.c.l.b16 %v2987
  %v3134 = vunpack.c.h.b16 %v2987
  %v3135 = vunpack.c.l.b16 %v2988
  %v3136 = vunpack.c.h.b16 %v2988
  %v3137 = vunpack.c.l.b16 %v2989
  %v3138 = vunpack.c.h.b16 %v2989
  %v3139 = vunpack.c.l.b16 %v2990
  %v3140 = vunpack.c.h.b16 %v2990
  %v3141 = vunpack.c.l.b16 %v2991
  %v3142 = vunpack.c.h.b16 %v2991
  %v3143 = vunpack.c.l.b16 %v2992
  %v3144 = vunpack.c.h.b16 %v2992
  %v3145 = vunpack.c.l.b16 %v2993
  %v3146 = vunpack.c.h.b16 %v2993
  %v3147 = vunpack.c.l.b16 %v2994
  %v3148 = vunpack.c.h.b16 %v2994
  %v3149 = vunpack.c.l.b16 %v2995
  %v3150 = vunpack.c.h.b16 %v2995
  %v3151 = vunpack.c.l.b16 %v2996
  %v3152 = vunpack.c.h.b16 %v2996
  %v3153 = vunpack.c.l.b16 %v2997
  %v3154 = vunpack.c.h.b16 %v2997
  %v3155 = vunpack.c.l.b16 %v2998
  %v3156 = vunpack.c.h.b16 %v2998
  %v3157 = vunpack.c.l.b16 %v2999
  %v3158 = vunpack.c.h.b16 %v2999
  %v3159 = vunpack.c.l.b16 %v3000
  %v3160 = vunpack.c.h.b16 %v3000
  %v3161 = vunpack.c.l.b16 %v3001
  %v3162 = vunpack.c.h.b16 %v3001
  %v3163 = vunpack.c.l.b16 %v3002
  %v3164 = vunpack.c.h.b16 %v3002
  %v3165 = vunpack.c.l.b16 %v3003
  %v3166 = vunpack.c.h.b16 %v3003
  %v3167 = vunpack.c.l.b16 %v3004
  %v3168 = vunpack.c.h.b16 %v3004
  %v3169 = vunpack.c.l.b16 %v3005
  %v3170 = vunpack.c.h.b16 %v3005
  %v3171 = vunpack.c.l.b16 %v3006
  %v3172 = vunpack.c.h.b16 %v3006
  %v3173 = vunpack.c.l.b16 %v3007
  %v3174 = vunpack.c.h.b16 %v3007
  %v3175 = vunpack.c.l.b16 %v3008
  %v3176 = vunpack.c.h.b16 %v3008
  %v3177 = vunpack.c.l.b16 %v3009
  %v3178 = vunpack.c.h.b16 %v3009
  %v3179 = vunpack.c.l.b16 %v3010
  %v3180 = vunpack.c.h.b16 %v3010
  %v3181 = vunpack.c.l.b16 %v3011
  %v3182 = vunpack.c.h.b16 %v3011
  %v3183 = vunpack.c.l.b16 %v3012
  %v3184 = vunpack.c.h.b16 %v3012
  %v3185 = vunpack.c.l.b16 %v3013
  %v3186 = vunpack.c.h.b16 %v3013
  %v3187 = vunpack.c.l.b16 %v3014
  %v3188 = vunpack.c.h.b16 %v3014
  %v3189 = vunpack.c.l.b16 %v3015
  %v3190 = vunpack.c.h.b16 %v3015
  %v3191 = vunpack.c.l.b16 %v3016
  %v3192 = vunpack.c.h.b16 %v3016
  %v3193 = vunpack.c.l.b16 %v3017
  %v3194 = vunpack.c.h.b16 %v3017
  %v3195 = vunpack.c.l.b16 %v3018
  %v3196 = vunpack.c.h.b16 %v3018
  %v3197 = vunpack.c.l.b16 %v3019
  %v3198 = vunpack.c.h.b16 %v3019
  %v3199 = vunpack.c.l.b16 %v3020
  %v3200 = vunpack.c.h.b16 %v3020
  %v3201 = vunpack.c.l.b16 %v3021
  %v3202 = vunpack.c.h.b16 %v3021
  %v3203 = vunpack.c.l.b16 %v3022
  %v3204 = vunpack.c.h.b16 %v3022
  %v3205 = vunpack.c.l.b16 %v3023
  %v3206 = vunpack.c.h.b16 %v3023
  %v3207 = vunpack.c.l.b16 %v3024
  %v3208 = vunpack.c.h.b16 %v3024
  %v3209 = vunpack.c.l.b16 %v3025
  %v3210 = vunpack.c.h.b16 %v3025
  %v3211 = vunpack.c.l.b16 %v3026
  %v3212 = vunpack.c.h.b16 %v3026
  %v3213 = vunpack.c.l.b16 %v3027
  %v3214 = vunpack.c.h.b16 %v3027
  %v3215 = vunpack.c.l.b16 %v3028
  %v3216 = vunpack.c.h.b16 %v3028
  %v3217 = vunpack.c.l.b16 %v3029
  %v3218 = vunpack.c.h.b16 %v3029
  %v3219 = vunpack.c.l.b16 %v3030
  %v3220 = vunpack.c.h.b16 %v3030
  %v3221 = vunpack.c.l.b16 %v3031
  %v3222 = vunpack.c.h.b16 %v3031
  %v3223 = vunpack.c.l.b16 %v3032
  %v3224 = vunpack.c.h.b16 %v3032
  %v3225 = vunpack.c.l.b16 %v3033
  %v3226 = vunpack.c.h.b16 %v3033
  %v3227 = vunpack.c.l.b16 %v3034
  %v3228 = vunpack.c.h.b16 %v3034
  %v3229 = vunpack.c.l.b16 %v3035
  %v3230 = vunpack.c.h.b16 %v3035
  %v3231 = vunpack.c.l.b16 %v3036
  %v3232 = vunpack.c.h.b16 %v3036
  %v3233 = vunpack.c.l.b16 %v3037
  %v3234 = vunpack.c.h.b16 %v3037
  %v3235 = vunpack.c.l.b16 %v3038
  %v3236 = vunpack.c.h.b16 %v3038
  %v3237 = vunpack.c.l.b16 %v3039
  %v3238 = vunpack.c.h.b16 %v3039
  %v3239 = vunpack.c.l.b16 %v3040
  %v3240 = vunpack.c.h.b16 %v3040
  %v3241 = vunpack.c.l.b16 %v3041
  %v3242 = vunpack.c.h.b16 %v3041
  %v3243 = vunpack.c.l.b16 %v3042
  %v3244 = vunpack.c.h.b16 %v3042
  %v3245 = vunpack.c.l.b16 %v3043
  %v3246 = vunpack.c.h.b16 %v3043
  %v3247 = vunpack.c.l.b16 %v3044
  %v3248 = vunpack.c.h.b16 %v3044
  %v3249 = vpack.c.b16 %v3123, %v3121
  %v3250 = vpack.c.b16 %v3124, %v3122
  %v3251 = vpack.c.b16 %v3127, %v3125
  %v3252 = vpack.c.b16 %v3128, %v3126
  %v3253 = vpack.c.b16 %v3131, %v3129
  %v3254 = vpack.c.b16 %v3132, %v3130
  %v3255 = vpack.c.b16 %v3135, %v3133
  %v3256 = vpack.c.b16 %v3136, %v3134
  %v3257 = vpack.c.b16 %v3139, %v3137
  %v3258 = vpack.c.b16 %v3140, %v3138
  %v3259 = vpack.c.b16 %v3143, %v3141
  %v3260 = vpack.c.b16 %v3144, %v3142
  %v3261 = vpack.c.b16 %v3147, %v3145
  %v3262 = vpack.c.b16 %v3148, %v3146
  %v3263 = vpack.c.b16 %v3151, %v3149
  %v3264 = vpack.c.b16 %v3152, %v3150
  %v3265 = vpack.c.b16 %v3155, %v3153
  %v3266 = vpack.c.b16 %v3156, %v3154
  %v3267 = vpack.c.b16 %v3159, %v3157
  %v3268 = vpack.c.b16 %v3160, %v3158
  %v3269 = vpack.c.b16 %v3163, %v3161
  %v3270 = vpack.c.b16 %v3164, %v3162
  %v3271 = vpack.c.b16 %v3167, %v3165
  %v3272 = vpack.c.b16 %v3168, %v3166
  %v3273 = vpack.c.b16 %v3171, %v3169
  %v3274 = vpack.c.b16 %v3172, %v3170
  %v3275 = vpack.c.b16 %v3175, %v3173
  %v3276 = vpack.c.b16 %v3176, %v3174
  %v3277 = vpack.c.b16 %v3179, %v3177
  %v3278 = vpack.c.b16 %v3180, %v3178
  %v3279 = vpack.c.b16 %v3183, %v3181
  %v3280 = vpack.c.b16 %v3184, %v3182
  %v3281 = vpack.c.b16 %v3187, %v3185
  %v3282 = vpack.c.b16 %v3188, %v3186
  %v3283 = vpack.c.b16 %v3191, %v3189
  %v3284 = vpack.c.b16 %v3192, %v3190
  %v3285 = vpack.c.b16 %v3195, %v3193
  %v3286 = vpack.c.b16 %v3196, %v3194
  %v3287 = vpack.c.b16 %v3199, %v3197
  %v3288 = vpack.c.b16 %v3200, %v3198
  %v3289 = vpack.c.b16 %v3203, %v3201
  %v3290 = vpack.c.b16 %v3204, %v3202
  %v3291 = vpack.c.b16 %v3207, %v3205
  %v3292 = vpack.c.b16 %v3208, %v3206
  %v3293 = vpack.c.b16 %v3211, %v3209
  %v3294 = vpack.c.b16 %v3212, %v3210
  %v3295 = vpack.c.b16 %v3215, %v3213
  %v3296 = vpack.c.b16 %v3216, %v3214
  %v3297 = vpack.c.b16 %v3219, %v3217
  %v3298 = vpack.c.b16 %v3220, %v3218
  %v3299 = vpack.c.b16 %v3223, %v3221
  %v3300 = vpack.c.b16 %v3224, %v3222
  %v3301 = vpack.c.b16 %v3227, %v3225
  %v3302 = vpack.c.b16 %v3228, %v3226
  %v3303 = vpack.c.b16 %v3231, %v3229
  %v3304 = vpack.c.b16 %v3232, %v3230
  %v3305 = vpack.c.b16 %v3235, %v3233
  %v3306 = vpack.c.b16 %v3236, %v3234
  %v3307 = vpack.c.b16 %v3239, %v3237
  %v3308 = vpack.c.b16 %v3240, %v3238
  %v3309 = vpack.c.b16 %v3243, %v3241
  %v3310 = vpack.c.b16 %v3244, %v3242
  %v3311 = vpack.c.b16 %v3247, %v3245
  %v3312 = vpack.c.b16 %v3248, %v3246
  %3377 = vmatprep.subr.bf16.mxu0 %v3264
  %3378 = vmatpush1.bf16.msra.mxu0 %v3263
  %3379 = vmatprep.subr.bf16.mxu0 %v3262
  %3380 = vmatpush1.bf16.msra.mxu0 %v3261
  %3381 = vmatprep.subr.bf16.mxu0 %v3260
  %3382 = vmatpush1.bf16.msra.mxu0 %v3259
  %3383 = vmatprep.subr.bf16.mxu0 %v3258
  %3384 = vmatpush1.bf16.msra.mxu0 %v3257
  %3385 = vmatprep.subr.bf16.mxu0 %v3256
  %3386 = vmatpush1.bf16.msra.mxu0 %v3255
  %3387 = vmatprep.subr.bf16.mxu0 %v3254
  %3388 = vmatpush1.bf16.msra.mxu0 %v3253
  %3389 = vmatprep.subr.bf16.mxu0 %v3252
  %3390 = vmatpush1.bf16.msra.mxu0 %v3251
  %3391 = vmatprep.subr.bf16.mxu0 %v3250
  %3392 = vmatpush1.bf16.msra.mxu0 %v3249
  %3393 = vmatprep.subr.bf16.mxu0 %v3280
  %3394 = vmatpush2.bf16.msra.mxu0 %v3279
  %3395 = vmatprep.subr.bf16.mxu0 %v3278
  %3396 = vmatpush2.bf16.msra.mxu0 %v3277
  %3397 = vmatprep.subr.bf16.mxu0 %v3276
  %3398 = vmatpush2.bf16.msra.mxu0 %v3275
  %3399 = vmatprep.subr.bf16.mxu0 %v3274
  %3400 = vmatpush2.bf16.msra.mxu0 %v3273
  %3401 = vmatprep.subr.bf16.mxu0 %v3272
  %3402 = vmatpush2.bf16.msra.mxu0 %v3271
  %3403 = vmatprep.subr.bf16.mxu0 %v3270
  %3404 = vmatpush2.bf16.msra.mxu0 %v3269
  %3405 = vmatprep.subr.bf16.mxu0 %v3268
  %3406 = vmatpush2.bf16.msra.mxu0 %v3267
  %3407 = vmatprep.subr.bf16.mxu0 %v3266
  %3408 = vmatpush2.bf16.msra.mxu0 %v3265
  %3409 = vmatprep.mubr.bf16.mxu0 %v2950
  %3410 = vmatmul.mubr.bf16.gmra.mxu0 %v2949
  %v3411 = vpop.f32.mrf.mxu0
  %v3412 = vadd.f32 %v3050, %v3411
  %v3413 = vpop.f32.mrf.mxu0
  %v3414 = vadd.f32 %v3054, %v3413
  %v3415 = vpop.f32.mrf.mxu0
  %v3416 = vadd.f32 %v3050, %v3415
  %v3417 = vpop.f32.mrf.mxu0
  %v3418 = vadd.f32 %v3054, %v3417
  %3419 = vmatprep.mubr.bf16.mxu0 %v2954
  %3420 = vmatmul.mubr.bf16.gmra.mxu0 %v2953
  %v3421 = vpop.f32.mrf.mxu0
  %v3422 = vadd.f32 %v3050, %v3421
  %v3423 = vpop.f32.mrf.mxu0
  %v3424 = vadd.f32 %v3054, %v3423
  %v3425 = vpop.f32.mrf.mxu0
  %v3426 = vadd.f32 %v3050, %v3425
  %v3427 = vpop.f32.mrf.mxu0
  %v3428 = vadd.f32 %v3054, %v3427
  %3429 = vmatprep.mubr.bf16.mxu0 %v2958
  %3430 = vmatmul.mubr.bf16.gmra.mxu0 %v2957
  %v3431 = vpop.f32.mrf.mxu0
  %v3432 = vadd.f32 %v3050, %v3431
  %v3433 = vpop.f32.mrf.mxu0
  %v3434 = vadd.f32 %v3054, %v3433
  %v3435 = vpop.f32.mrf.mxu0
  %v3436 = vadd.f32 %v3050, %v3435
  %v3437 = vpop.f32.mrf.mxu0
  %v3438 = vadd.f32 %v3054, %v3437
  %3439 = vmatprep.mubr.bf16.mxu0 %v2962
  %3440 = vmatmul.mubr.bf16.gmra.mxu0 %v2961
  %v3441 = vpop.f32.mrf.mxu0
  %v3442 = vadd.f32 %v3050, %v3441
  %v3443 = vpop.f32.mrf.mxu0
  %v3444 = vadd.f32 %v3054, %v3443
  %v3445 = vpop.f32.mrf.mxu0
  %v3446 = vadd.f32 %v3050, %v3445
  %v3447 = vpop.f32.mrf.mxu0
  %v3448 = vadd.f32 %v3054, %v3447
  %3449 = vmatprep.mubr.bf16.mxu0 %v2966
  %3450 = vmatmul.mubr.bf16.gmra.mxu0 %v2965
  %v3451 = vpop.f32.mrf.mxu0
  %v3452 = vadd.f32 %v3050, %v3451
  %v3453 = vpop.f32.mrf.mxu0
  %v3454 = vadd.f32 %v3054, %v3453
  %v3455 = vpop.f32.mrf.mxu0
  %v3456 = vadd.f32 %v3050, %v3455
  %v3457 = vpop.f32.mrf.mxu0
  %v3458 = vadd.f32 %v3054, %v3457
  %3459 = vmatprep.mubr.bf16.mxu0 %v2970
  %3460 = vmatmul.mubr.bf16.gmra.mxu0 %v2969
  %v3461 = vpop.f32.mrf.mxu0
  %v3462 = vadd.f32 %v3050, %v3461
  %v3463 = vpop.f32.mrf.mxu0
  %v3464 = vadd.f32 %v3054, %v3463
  %v3465 = vpop.f32.mrf.mxu0
  %v3466 = vadd.f32 %v3050, %v3465
  %v3467 = vpop.f32.mrf.mxu0
  %v3468 = vadd.f32 %v3054, %v3467
  %3469 = vmatprep.mubr.bf16.mxu0 %v2974
  %3470 = vmatmul.mubr.bf16.gmra.mxu0 %v2973
  %v3471 = vpop.f32.mrf.mxu0
  %v3472 = vadd.f32 %v3050, %v3471
  %v3473 = vpop.f32.mrf.mxu0
  %v3474 = vadd.f32 %v3054, %v3473
  %v3475 = vpop.f32.mrf.mxu0
  %v3476 = vadd.f32 %v3050, %v3475
  %v3477 = vpop.f32.mrf.mxu0
  %v3478 = vadd.f32 %v3054, %v3477
  %3479 = vmatprep.mubr.bf16.mxu0 %v2978
  %3480 = vmatmul.mubr.bf16.gmra.mxu0 %v2977
  %v3481 = vpop.f32.mrf.mxu0
  %v3482 = vadd.f32 %v3050, %v3481
  %v3483 = vpop.f32.mrf.mxu0
  %v3484 = vadd.f32 %v3054, %v3483
  %v3485 = vpop.f32.mrf.mxu0
  %v3486 = vadd.f32 %v3050, %v3485
  %v3487 = vpop.f32.mrf.mxu0
  %v3488 = vadd.f32 %v3054, %v3487
  %3489 = vdwg.mxu0
  %3490 = vmatprep.subr.bf16.mxu0 %v3296
  %3491 = vmatpush1.bf16.msra.mxu0 %v3295
  %3492 = vmatprep.subr.bf16.mxu0 %v3294
  %3493 = vmatpush1.bf16.msra.mxu0 %v3293
  %3494 = vmatprep.subr.bf16.mxu0 %v3292
  %3495 = vmatpush1.bf16.msra.mxu0 %v3291
  %3496 = vmatprep.subr.bf16.mxu0 %v3290
  %3497 = vmatpush1.bf16.msra.mxu0 %v3289
  %3498 = vmatprep.subr.bf16.mxu0 %v3288
  %3499 = vmatpush1.bf16.msra.mxu0 %v3287
  %3500 = vmatprep.subr.bf16.mxu0 %v3286
  %3501 = vmatpush1.bf16.msra.mxu0 %v3285
  %3502 = vmatprep.subr.bf16.mxu0 %v3284
  %3503 = vmatpush1.bf16.msra.mxu0 %v3283
  %3504 = vmatprep.subr.bf16.mxu0 %v3282
  %3505 = vmatpush1.bf16.msra.mxu0 %v3281
  %3506 = vmatprep.subr.bf16.mxu0 %v3312
  %3507 = vmatpush2.bf16.msra.mxu0 %v3311
  %3508 = vmatprep.subr.bf16.mxu0 %v3310
  %3509 = vmatpush2.bf16.msra.mxu0 %v3309
  %3510 = vmatprep.subr.bf16.mxu0 %v3308
  %3511 = vmatpush2.bf16.msra.mxu0 %v3307
  %3512 = vmatprep.subr.bf16.mxu0 %v3306
  %3513 = vmatpush2.bf16.msra.mxu0 %v3305
  %3514 = vmatprep.subr.bf16.mxu0 %v3304
  %3515 = vmatpush2.bf16.msra.mxu0 %v3303
  %3516 = vmatprep.subr.bf16.mxu0 %v3302
  %3517 = vmatpush2.bf16.msra.mxu0 %v3301
  %3518 = vmatprep.subr.bf16.mxu0 %v3300
  %3519 = vmatpush2.bf16.msra.mxu0 %v3299
  %3520 = vmatprep.subr.bf16.mxu0 %v3298
  %3521 = vmatpush2.bf16.msra.mxu0 %v3297
  %3522 = vmatprep.mubr.bf16.mxu0 %v2952
  %3523 = vmatmul.mubr.bf16.gmra.mxu0 %v2951
  %v3524 = vpop.f32.mrf.mxu0
  %v3525 = vadd.f32 %v3412, %v3524
  %v3526 = vpop.f32.mrf.mxu0
  %v3527 = vadd.f32 %v3414, %v3526
  %v3528 = vpop.f32.mrf.mxu0
  %v3529 = vadd.f32 %v3416, %v3528
  %v3530 = vpop.f32.mrf.mxu0
  %v3531 = vadd.f32 %v3418, %v3530
  %3532 = vmatprep.mubr.bf16.mxu0 %v2956
  %3533 = vmatmul.mubr.bf16.gmra.mxu0 %v2955
  %v3534 = vpop.f32.mrf.mxu0
  %v3535 = vadd.f32 %v3422, %v3534
  %v3536 = vpop.f32.mrf.mxu0
  %v3537 = vadd.f32 %v3424, %v3536
  %v3538 = vpop.f32.mrf.mxu0
  %v3539 = vadd.f32 %v3426, %v3538
  %v3540 = vpop.f32.mrf.mxu0
  %v3541 = vadd.f32 %v3428, %v3540
  %3542 = vmatprep.mubr.bf16.mxu0 %v2960
  %3543 = vmatmul.mubr.bf16.gmra.mxu0 %v2959
  %v3544 = vpop.f32.mrf.mxu0
  %v3545 = vadd.f32 %v3432, %v3544
  %v3546 = vpop.f32.mrf.mxu0
  %v3547 = vadd.f32 %v3434, %v3546
  %v3548 = vpop.f32.mrf.mxu0
  %v3549 = vadd.f32 %v3436, %v3548
  %v3550 = vpop.f32.mrf.mxu0
  %v3551 = vadd.f32 %v3438, %v3550
  %3552 = vmatprep.mubr.bf16.mxu0 %v2964
  %3553 = vmatmul.mubr.bf16.gmra.mxu0 %v2963
  %v3554 = vpop.f32.mrf.mxu0
  %v3555 = vadd.f32 %v3442, %v3554
  %v3556 = vpop.f32.mrf.mxu0
  %v3557 = vadd.f32 %v3444, %v3556
  %v3558 = vpop.f32.mrf.mxu0
  %v3559 = vadd.f32 %v3446, %v3558
  %v3560 = vpop.f32.mrf.mxu0
  %v3561 = vadd.f32 %v3448, %v3560
  %3562 = vmatprep.mubr.bf16.mxu0 %v2968
  %3563 = vmatmul.mubr.bf16.gmra.mxu0 %v2967
  %v3564 = vpop.f32.mrf.mxu0
  %v3565 = vadd.f32 %v3452, %v3564
  %v3566 = vpop.f32.mrf.mxu0
  %v3567 = vadd.f32 %v3454, %v3566
  %v3568 = vpop.f32.mrf.mxu0
  %v3569 = vadd.f32 %v3456, %v3568
  %v3570 = vpop.f32.mrf.mxu0
  %v3571 = vadd.f32 %v3458, %v3570
  %3572 = vmatprep.mubr.bf16.mxu0 %v2972
  %3573 = vmatmul.mubr.bf16.gmra.mxu0 %v2971
  %v3574 = vpop.f32.mrf.mxu0
  %v3575 = vadd.f32 %v3462, %v3574
  %v3576 = vpop.f32.mrf.mxu0
  %v3577 = vadd.f32 %v3464, %v3576
  %v3578 = vpop.f32.mrf.mxu0
  %v3579 = vadd.f32 %v3466, %v3578
  %v3580 = vpop.f32.mrf.mxu0
  %v3581 = vadd.f32 %v3468, %v3580
  %3582 = vmatprep.mubr.bf16.mxu0 %v2976
  %3583 = vmatmul.mubr.bf16.gmra.mxu0 %v2975
  %v3584 = vpop.f32.mrf.mxu0
  %v3585 = vadd.f32 %v3472, %v3584
  %v3586 = vpop.f32.mrf.mxu0
  %v3587 = vadd.f32 %v3474, %v3586
  %v3588 = vpop.f32.mrf.mxu0
  %v3589 = vadd.f32 %v3476, %v3588
  %v3590 = vpop.f32.mrf.mxu0
  %v3591 = vadd.f32 %v3478, %v3590
  %3592 = vmatprep.mubr.bf16.mxu0 %v2980
  %3593 = vmatmul.mubr.bf16.gmra.mxu0 %v2979
  %v3594 = vpop.f32.mrf.mxu0
  %v3595 = vadd.f32 %v3482, %v3594
  %v3596 = vpop.f32.mrf.mxu0
  %v3597 = vadd.f32 %v3484, %v3596
  %v3598 = vpop.f32.mrf.mxu0
  %v3599 = vadd.f32 %v3486, %v3598
  %v3600 = vpop.f32.mrf.mxu0
  %v3601 = vadd.f32 %v3488, %v3600
  %3602 = vdwg.mxu0
  %v3603 = vmax.f32 %v3525, 0.0
  %v3604 = vmax.f32 %v3527, 0.0
  %v3605 = vmax.f32 %v3529, 0.0
  %v3606 = vmax.f32 %v3531, 0.0
  %v3607 = vmax.f32 %v3535, 0.0
  %v3608 = vmax.f32 %v3537, 0.0
  %v3609 = vmax.f32 %v3539, 0.0
  %v3610 = vmax.f32 %v3541, 0.0
  %v3611 = vmax.f32 %v3545, 0.0
  %v3612 = vmax.f32 %v3547, 0.0
  %v3613 = vmax.f32 %v3549, 0.0
  %v3614 = vmax.f32 %v3551, 0.0
  %v3615 = vmax.f32 %v3555, 0.0
  %v3616 = vmax.f32 %v3557, 0.0
  %v3617 = vmax.f32 %v3559, 0.0
  %v3618 = vmax.f32 %v3561, 0.0
  %v3619 = vmax.f32 %v3565, 0.0
  %v3620 = vmax.f32 %v3567, 0.0
  %v3621 = vmax.f32 %v3569, 0.0
  %v3622 = vmax.f32 %v3571, 0.0
  %v3623 = vmax.f32 %v3575, 0.0
  %v3624 = vmax.f32 %v3577, 0.0
  %v3625 = vmax.f32 %v3579, 0.0
  %v3626 = vmax.f32 %v3581, 0.0
  %v3627 = vmax.f32 %v3585, 0.0
  %v3628 = vmax.f32 %v3587, 0.0
  %v3629 = vmax.f32 %v3589, 0.0
  %v3630 = vmax.f32 %v3591, 0.0
  %v3631 = vmax.f32 %v3595, 0.0
  %v3632 = vmax.f32 %v3597, 0.0
  %v3633 = vmax.f32 %v3599, 0.0
  %v3634 = vmax.f32 %v3601, 0.0
  %v3635 = vpack.c.bf16 %v3605, %v3603
  %v3636 = vpack.c.bf16 %v3606, %v3604
  %v3637 = vpack.c.bf16 %v3609, %v3607
  %v3638 = vpack.c.bf16 %v3610, %v3608
  %v3639 = vpack.c.bf16 %v3613, %v3611
  %v3640 = vpack.c.bf16 %v3614, %v3612
  %v3641 = vpack.c.bf16 %v3617, %v3615
  %v3642 = vpack.c.bf16 %v3618, %v3616
  %v3643 = vpack.c.bf16 %v3621, %v3619
  %v3644 = vpack.c.bf16 %v3622, %v3620
  %v3645 = vpack.c.bf16 %v3625, %v3623
  %v3646 = vpack.c.bf16 %v3626, %v3624
  %v3647 = vpack.c.bf16 %v3629, %v3627
  %v3648 = vpack.c.bf16 %v3630, %v3628
  %v3649 = vpack.c.bf16 %v3633, %v3631
  %v3650 = vpack.c.bf16 %v3634, %v3632
  %v3651 = vld [vmem:[%s5] sm:$0xf]
  %v3652 = vld [vmem:[%s5 + $0x4] sm:$0xf]
  %v3653 = vld [vmem:[%s5 + $0x8] sm:$0xf]
  %v3654 = vld [vmem:[%s5 + $0xc] sm:$0xf]
  %v3655 = vld [vmem:[%s5 + $0x10] sm:$0xf]
  %v3656 = vld [vmem:[%s5 + $0x14] sm:$0xf]
  %v3657 = vld [vmem:[%s5 + $0x18] sm:$0xf]
  %v3658 = vld [vmem:[%s5 + $0x1c] sm:$0xf]
  %v3659 = vld [vmem:[%s5 + $0x20] sm:$0xf]
  %v3660 = vld [vmem:[%s5 + $0x24] sm:$0xf]
  %v3661 = vld [vmem:[%s5 + $0x28] sm:$0xf]
  %v3662 = vld [vmem:[%s5 + $0x2c] sm:$0xf]
  %v3663 = vld [vmem:[%s5 + $0x30] sm:$0xf]
  %v3664 = vld [vmem:[%s5 + $0x34] sm:$0xf]
  %v3665 = vld [vmem:[%s5 + $0x38] sm:$0xf]
  %v3666 = vld [vmem:[%s5 + $0x3c] sm:$0xf]
  %v3667 = vld [vmem:[%s5 + $0x40] sm:$0xf]
  %v3668 = vld [vmem:[%s5 + $0x44] sm:$0xf]
  %v3669 = vld [vmem:[%s5 + $0x48] sm:$0xf]
  %v3670 = vld [vmem:[%s5 + $0x4c] sm:$0xf]
  %v3671 = vld [vmem:[%s5 + $0x50] sm:$0xf]
  %v3672 = vld [vmem:[%s5 + $0x54] sm:$0xf]
  %v3673 = vld [vmem:[%s5 + $0x58] sm:$0xf]
  %v3674 = vld [vmem:[%s5 + $0x5c] sm:$0xf]
  %v3675 = vld [vmem:[%s5 + $0x60] sm:$0xf]
  %v3676 = vld [vmem:[%s5 + $0x64] sm:$0xf]
  %v3677 = vld [vmem:[%s5 + $0x68] sm:$0xf]
  %v3678 = vld [vmem:[%s5 + $0x6c] sm:$0xf]
  %v3679 = vld [vmem:[%s5 + $0x70] sm:$0xf]
  %v3680 = vld [vmem:[%s5 + $0x74] sm:$0xf]
  %v3681 = vld [vmem:[%s5 + $0x78] sm:$0xf]
  %v3682 = vld [vmem:[%s5 + $0x7c] sm:$0xf]
  %v3683 = vld [vmem:[%s6] sm:$0x1]
  %v3685 = vlaneseq
  %v3686 = vshrl.u32 %v3685, 7
  %v3687 = vsub.s32 0, %v3686
  %v3688 = vrot.slane %v3683, %v3687
  %v3722 = vunpack.c.l.b16 %v3651
  %v3723 = vunpack.c.l.b16 %v3652
  %v3724 = vunpack.c.l.b16 %v3653
  %v3725 = vunpack.c.l.b16 %v3654
  %v3726 = vunpack.c.l.b16 %v3655
  %v3727 = vunpack.c.l.b16 %v3656
  %v3728 = vunpack.c.l.b16 %v3657
  %v3729 = vunpack.c.l.b16 %v3658
  %v3730 = vunpack.c.l.b16 %v3659
  %v3731 = vunpack.c.l.b16 %v3660
  %v3732 = vunpack.c.l.b16 %v3661
  %v3733 = vunpack.c.l.b16 %v3662
  %v3734 = vunpack.c.l.b16 %v3663
  %v3735 = vunpack.c.l.b16 %v3664
  %v3736 = vunpack.c.l.b16 %v3665
  %v3737 = vunpack.c.l.b16 %v3666
  %v3738 = vunpack.c.l.b16 %v3667
  %v3739 = vunpack.c.l.b16 %v3668
  %v3740 = vunpack.c.l.b16 %v3669
  %v3741 = vunpack.c.l.b16 %v3670
  %v3742 = vunpack.c.l.b16 %v3671
  %v3743 = vunpack.c.l.b16 %v3672
  %v3744 = vunpack.c.l.b16 %v3673
  %v3745 = vunpack.c.l.b16 %v3674
  %v3746 = vunpack.c.l.b16 %v3675
  %v3747 = vunpack.c.l.b16 %v3676
  %v3748 = vunpack.c.l.b16 %v3677
  %v3749 = vunpack.c.l.b16 %v3678
  %v3750 = vunpack.c.l.b16 %v3679
  %v3751 = vunpack.c.l.b16 %v3680
  %v3752 = vunpack.c.l.b16 %v3681
  %v3753 = vunpack.c.l.b16 %v3682
  %v3754 = vpack.c.b16 %v3723, %v3722
  %v3755 = vpack.c.b16 %v3725, %v3724
  %v3756 = vpack.c.b16 %v3727, %v3726
  %v3757 = vpack.c.b16 %v3729, %v3728
  %v3758 = vpack.c.b16 %v3731, %v3730
  %v3759 = vpack.c.b16 %v3733, %v3732
  %v3760 = vpack.c.b16 %v3735, %v3734
  %v3761 = vpack.c.b16 %v3737, %v3736
  %v3762 = vpack.c.b16 %v3739, %v3738
  %v3763 = vpack.c.b16 %v3741, %v3740
  %v3764 = vpack.c.b16 %v3743, %v3742
  %v3765 = vpack.c.b16 %v3745, %v3744
  %v3766 = vpack.c.b16 %v3747, %v3746
  %v3767 = vpack.c.b16 %v3749, %v3748
  %v3768 = vpack.c.b16 %v3751, %v3750
  %v3769 = vpack.c.b16 %v3753, %v3752
  %3786 = vmatprep.subr.bf16.mxu0 0
  %3787 = vmatpush1.bf16.msra.mxu0 %v3761
  %3788 = vmatprep.subr.bf16.mxu0 0
  %3789 = vmatpush1.bf16.msra.mxu0 %v3760
  %3790 = vmatprep.subr.bf16.mxu0 0
  %3791 = vmatpush1.bf16.msra.mxu0 %v3759
  %3792 = vmatprep.subr.bf16.mxu0 0
  %3793 = vmatpush1.bf16.msra.mxu0 %v3758
  %3794 = vmatprep.subr.bf16.mxu0 0
  %3795 = vmatpush1.bf16.msra.mxu0 %v3757
  %3796 = vmatprep.subr.bf16.mxu0 0
  %3797 = vmatpush1.bf16.msra.mxu0 %v3756
  %3798 = vmatprep.subr.bf16.mxu0 0
  %3799 = vmatpush1.bf16.msra.mxu0 %v3755
  %3800 = vmatprep.subr.bf16.mxu0 0
  %3801 = vmatpush1.bf16.msra.mxu0 %v3754
  %3802 = vmatprep.subr.bf16.mxu0 0
  %3803 = vmatpush2.bf16.msra.mxu0 %v3769
  %3804 = vmatprep.subr.bf16.mxu0 0
  %3805 = vmatpush2.bf16.msra.mxu0 %v3768
  %3806 = vmatprep.subr.bf16.mxu0 0
  %3807 = vmatpush2.bf16.msra.mxu0 %v3767
  %3808 = vmatprep.subr.bf16.mxu0 0
  %3809 = vmatpush2.bf16.msra.mxu0 %v3766
  %3810 = vmatprep.subr.bf16.mxu0 0
  %3811 = vmatpush2.bf16.msra.mxu0 %v3765
  %3812 = vmatprep.subr.bf16.mxu0 0
  %3813 = vmatpush2.bf16.msra.mxu0 %v3764
  %3814 = vmatprep.subr.bf16.mxu0 0
  %3815 = vmatpush2.bf16.msra.mxu0 %v3763
  %3816 = vmatprep.subr.bf16.mxu0 0
  %3817 = vmatpush2.bf16.msra.mxu0 %v3762
  %3818 = vmatprep.mubr.bf16.mxu0 %v3636
  %3819 = vmatmul.mubr.bf16.gmra.mxu0 %v3635
  %v3820 = vpop.f32.mrf.mxu0
  %v3821 = vadd.f32 %v3688, %v3820
  %v3822 = vpop.f32.mrf.mxu0
  %v3823 = vpop.f32.mrf.mxu0
  %v3824 = vadd.f32 %v3688, %v3823
  %v3825 = vpop.f32.mrf.mxu0
  %3826 = vmatprep.mubr.bf16.mxu0 %v3638
  %3827 = vmatmul.mubr.bf16.gmra.mxu0 %v3637
  %v3828 = vpop.f32.mrf.mxu0
  %v3829 = vadd.f32 %v3688, %v3828
  %v3830 = vpop.f32.mrf.mxu0
  %v3831 = vpop.f32.mrf.mxu0
  %v3832 = vadd.f32 %v3688, %v3831
  %v3833 = vpop.f32.mrf.mxu0
  %3834 = vmatprep.mubr.bf16.mxu0 %v3640
  %3835 = vmatmul.mubr.bf16.gmra.mxu0 %v3639
  %v3836 = vpop.f32.mrf.mxu0
  %v3837 = vadd.f32 %v3688, %v3836
  %v3838 = vpop.f32.mrf.mxu0
  %v3839 = vpop.f32.mrf.mxu0
  %v3840 = vadd.f32 %v3688, %v3839
  %v3841 = vpop.f32.mrf.mxu0
  %3842 = vmatprep.mubr.bf16.mxu0 %v3642
  %3843 = vmatmul.mubr.bf16.gmra.mxu0 %v3641
  %v3844 = vpop.f32.mrf.mxu0
  %v3845 = vadd.f32 %v3688, %v3844
  %v3846 = vpop.f32.mrf.mxu0
  %v3847 = vpop.f32.mrf.mxu0
  %v3848 = vadd.f32 %v3688, %v3847
  %v3849 = vpop.f32.mrf.mxu0
  %3850 = vmatprep.mubr.bf16.mxu0 %v3644
  %3851 = vmatmul.mubr.bf16.gmra.mxu0 %v3643
  %v3852 = vpop.f32.mrf.mxu0
  %v3853 = vadd.f32 %v3688, %v3852
  %v3854 = vpop.f32.mrf.mxu0
  %v3855 = vpop.f32.mrf.mxu0
  %v3856 = vadd.f32 %v3688, %v3855
  %v3857 = vpop.f32.mrf.mxu0
  %3858 = vmatprep.mubr.bf16.mxu0 %v3646
  %3859 = vmatmul.mubr.bf16.gmra.mxu0 %v3645
  %v3860 = vpop.f32.mrf.mxu0
  %v3861 = vadd.f32 %v3688, %v3860
  %v3862 = vpop.f32.mrf.mxu0
  %v3863 = vpop.f32.mrf.mxu0
  %v3864 = vadd.f32 %v3688, %v3863
  %v3865 = vpop.f32.mrf.mxu0
  %3866 = vmatprep.mubr.bf16.mxu0 %v3648
  %3867 = vmatmul.mubr.bf16.gmra.mxu0 %v3647
  %v3868 = vpop.f32.mrf.mxu0
  %v3869 = vadd.f32 %v3688, %v3868
  %v3870 = vpop.f32.mrf.mxu0
  %v3871 = vpop.f32.mrf.mxu0
  %v3872 = vadd.f32 %v3688, %v3871
  %v3873 = vpop.f32.mrf.mxu0
  %3874 = vmatprep.mubr.bf16.mxu0 %v3650
  %3875 = vmatmul.mubr.bf16.gmra.mxu0 %v3649
  %v3876 = vpop.f32.mrf.mxu0
  %v3877 = vadd.f32 %v3688, %v3876
  %v3878 = vpop.f32.mrf.mxu0
  %v3879 = vpop.f32.mrf.mxu0
  %v3880 = vadd.f32 %v3688, %v3879
  %v3881 = vpop.f32.mrf.mxu0
  %3882 = vdwg.mxu0
  %v3883 = vmax.f32 %v3821, 0.0
  %v3884 = vmax.f32 %v3824, 0.0
  %v3885 = vmax.f32 %v3829, 0.0
  %v3886 = vmax.f32 %v3832, 0.0
  %v3887 = vmax.f32 %v3837, 0.0
  %v3888 = vmax.f32 %v3840, 0.0
  %v3889 = vmax.f32 %v3845, 0.0
  %v3890 = vmax.f32 %v3848, 0.0
  %v3891 = vmax.f32 %v3853, 0.0
  %v3892 = vmax.f32 %v3856, 0.0
  %v3893 = vmax.f32 %v3861, 0.0
  %v3894 = vmax.f32 %v3864, 0.0
  %v3895 = vmax.f32 %v3869, 0.0
  %v3896 = vmax.f32 %v3872, 0.0
  %v3897 = vmax.f32 %v3877, 0.0
  %v3898 = vmax.f32 %v3880, 0.0
  %v3899 = vpack.c.bf16 %v3884, %v3883
  %v3900 = vpack.c.bf16 %v3886, %v3885
  %v3901 = vpack.c.bf16 %v3888, %v3887
  %v3902 = vpack.c.bf16 %v3890, %v3889
  %v3903 = vpack.c.bf16 %v3892, %v3891
  %v3904 = vpack.c.bf16 %v3894, %v3893
  %v3905 = vpack.c.bf16 %v3896, %v3895
  %v3906 = vpack.c.bf16 %v3898, %v3897
  %v3907 = vld [vmem:[%s7] sm:$0xf]
  %v3908 = vld [vmem:[%s7 + $0x4] sm:$0xf]
  %v3909 = vld [vmem:[%s7 + $0x8] sm:$0xf]
  %v3910 = vld [vmem:[%s7 + $0xc] sm:$0xf]
  %v3911 = vld [vmem:[%s7 + $0x10] sm:$0xf]
  %v3912 = vld [vmem:[%s7 + $0x14] sm:$0xf]
  %v3913 = vld [vmem:[%s7 + $0x18] sm:$0xf]
  %v3914 = vld [vmem:[%s7 + $0x1c] sm:$0xf]
  %v3915 = vld [vmem:[%s7 + $0x20] sm:$0xf]
  %v3916 = vld [vmem:[%s7 + $0x24] sm:$0xf]
  %v3917 = vld [vmem:[%s7 + $0x28] sm:$0xf]
  %v3918 = vld [vmem:[%s7 + $0x2c] sm:$0xf]
  %v3919 = vld [vmem:[%s7 + $0x30] sm:$0xf]
  %v3920 = vld [vmem:[%s7 + $0x34] sm:$0xf]
  %v3921 = vld [vmem:[%s7 + $0x38] sm:$0xf]
  %v3922 = vld [vmem:[%s7 + $0x3c] sm:$0xf]
  %v3923 = vld [vmem:[%s8] sm:$0x1]
  %v3925 = vlaneseq
  %v3926 = vshrl.u32 %v3925, 7
  %v3927 = vsub.s32 0, %v3926
  %v3928 = vrot.slane %v3923, %v3927
  %v3946 = vunpack.c.l.b16 %v3907
  %v3947 = vunpack.c.l.b16 %v3908
  %v3948 = vunpack.c.l.b16 %v3909
  %v3949 = vunpack.c.l.b16 %v3910
  %v3950 = vunpack.c.l.b16 %v3911
  %v3951 = vunpack.c.l.b16 %v3912
  %v3952 = vunpack.c.l.b16 %v3913
  %v3953 = vunpack.c.l.b16 %v3914
  %v3954 = vunpack.c.l.b16 %v3915
  %v3955 = vunpack.c.l.b16 %v3916
  %v3956 = vunpack.c.l.b16 %v3917
  %v3957 = vunpack.c.l.b16 %v3918
  %v3958 = vunpack.c.l.b16 %v3919
  %v3959 = vunpack.c.l.b16 %v3920
  %v3960 = vunpack.c.l.b16 %v3921
  %v3961 = vunpack.c.l.b16 %v3922
  %v3962 = vpack.c.b16 %v3947, %v3946
  %v3963 = vpack.c.b16 %v3949, %v3948
  %v3964 = vpack.c.b16 %v3951, %v3950
  %v3965 = vpack.c.b16 %v3953, %v3952
  %v3966 = vpack.c.b16 %v3955, %v3954
  %v3967 = vpack.c.b16 %v3957, %v3956
  %v3968 = vpack.c.b16 %v3959, %v3958
  %v3969 = vpack.c.b16 %v3961, %v3960
  %3978 = vmatprep.subr.bf16.mxu0 0
  %3979 = vmatpush1.bf16.msra.mxu0 %v3969
  %3980 = vmatprep.subr.bf16.mxu0 0
  %3981 = vmatpush1.bf16.msra.mxu0 %v3968
  %3982 = vmatprep.subr.bf16.mxu0 0
  %3983 = vmatpush1.bf16.msra.mxu0 %v3967
  %3984 = vmatprep.subr.bf16.mxu0 0
  %3985 = vmatpush1.bf16.msra.mxu0 %v3966
  %3986 = vmatprep.subr.bf16.mxu0 0
  %3987 = vmatpush1.bf16.msra.mxu0 %v3965
  %3988 = vmatprep.subr.bf16.mxu0 0
  %3989 = vmatpush1.bf16.msra.mxu0 %v3964
  %3990 = vmatprep.subr.bf16.mxu0 0
  %3991 = vmatpush1.bf16.msra.mxu0 %v3963
  %3992 = vmatprep.subr.bf16.mxu0 0
  %3993 = vmatpush1.bf16.msra.mxu0 %v3962
  %3994 = vmatprep.subr.bf16.mxu0 0
  %3995 = vmatpush2.bf16.msra.mxu0 0
  %3996 = vmatprep.subr.bf16.mxu0 0
  %3997 = vmatpush2.bf16.msra.mxu0 0
  %3998 = vmatprep.subr.bf16.mxu0 0
  %3999 = vmatpush2.bf16.msra.mxu0 0
  %4000 = vmatprep.subr.bf16.mxu0 0
  %4001 = vmatpush2.bf16.msra.mxu0 0
  %4002 = vmatprep.subr.bf16.mxu0 0
  %4003 = vmatpush2.bf16.msra.mxu0 0
  %4004 = vmatprep.subr.bf16.mxu0 0
  %4005 = vmatpush2.bf16.msra.mxu0 0
  %4006 = vmatprep.subr.bf16.mxu0 0
  %4007 = vmatpush2.bf16.msra.mxu0 0
  %4008 = vmatprep.subr.bf16.mxu0 0
  %4009 = vmatpush2.bf16.msra.mxu0 0
  %4010 = vmatprep.mubr.bf16.mxu0 0
  %4011 = vmatmul.mubr.bf16.gmra.mxu0 %v3899
  %v4012 = vpop.f32.mrf.mxu0
  %v4013 = vadd.f32 %v3928, %v4012
  %v4014 = vpop.f32.mrf.mxu0
  %v4015 = vpop.f32.mrf.mxu0
  %v4016 = vadd.f32 %v3928, %v4015
  %v4017 = vpop.f32.mrf.mxu0
  %4018 = vmatprep.mubr.bf16.mxu0 0
  %4019 = vmatmul.mubr.bf16.gmra.mxu0 %v3900
  %v4020 = vpop.f32.mrf.mxu0
  %v4021 = vadd.f32 %v3928, %v4020
  %v4022 = vpop.f32.mrf.mxu0
  %v4023 = vpop.f32.mrf.mxu0
  %v4024 = vadd.f32 %v3928, %v4023
  %v4025 = vpop.f32.mrf.mxu0
  %4026 = vmatprep.mubr.bf16.mxu0 0
  %4027 = vmatmul.mubr.bf16.gmra.mxu0 %v3901
  %v4028 = vpop.f32.mrf.mxu0
  %v4029 = vadd.f32 %v3928, %v4028
  %v4030 = vpop.f32.mrf.mxu0
  %v4031 = vpop.f32.mrf.mxu0
  %v4032 = vadd.f32 %v3928, %v4031
  %v4033 = vpop.f32.mrf.mxu0
  %4034 = vmatprep.mubr.bf16.mxu0 0
  %4035 = vmatmul.mubr.bf16.gmra.mxu0 %v3902
  %v4036 = vpop.f32.mrf.mxu0
  %v4037 = vadd.f32 %v3928, %v4036
  %v4038 = vpop.f32.mrf.mxu0
  %v4039 = vpop.f32.mrf.mxu0
  %v4040 = vadd.f32 %v3928, %v4039
  %v4041 = vpop.f32.mrf.mxu0
  %4042 = vmatprep.mubr.bf16.mxu0 0
  %4043 = vmatmul.mubr.bf16.gmra.mxu0 %v3903
  %v4044 = vpop.f32.mrf.mxu0
  %v4045 = vadd.f32 %v3928, %v4044
  %v4046 = vpop.f32.mrf.mxu0
  %v4047 = vpop.f32.mrf.mxu0
  %v4048 = vadd.f32 %v3928, %v4047
  %v4049 = vpop.f32.mrf.mxu0
  %4050 = vmatprep.mubr.bf16.mxu0 0
  %4051 = vmatmul.mubr.bf16.gmra.mxu0 %v3904
  %v4052 = vpop.f32.mrf.mxu0
  %v4053 = vadd.f32 %v3928, %v4052
  %v4054 = vpop.f32.mrf.mxu0
  %v4055 = vpop.f32.mrf.mxu0
  %v4056 = vadd.f32 %v3928, %v4055
  %v4057 = vpop.f32.mrf.mxu0
  %4058 = vmatprep.mubr.bf16.mxu0 0
  %4059 = vmatmul.mubr.bf16.gmra.mxu0 %v3905
  %v4060 = vpop.f32.mrf.mxu0
  %v4061 = vadd.f32 %v3928, %v4060
  %v4062 = vpop.f32.mrf.mxu0
  %v4063 = vpop.f32.mrf.mxu0
  %v4064 = vadd.f32 %v3928, %v4063
  %v4065 = vpop.f32.mrf.mxu0
  %4066 = vmatprep.mubr.bf16.mxu0 0
  %4067 = vmatmul.mubr.bf16.gmra.mxu0 %v3906
  %v4068 = vpop.f32.mrf.mxu0
  %v4069 = vadd.f32 %v3928, %v4068
  %v4070 = vpop.f32.mrf.mxu0
  %v4071 = vpop.f32.mrf.mxu0
  %v4072 = vadd.f32 %v3928, %v4071
  %v4073 = vpop.f32.mrf.mxu0
  %4074 = vdwg.mxu0
  %v4075 = vmax.f32 %v4013, 0.0
  %v4076 = vmax.f32 %v4016, 0.0
  %v4077 = vmax.f32 %v4021, 0.0
  %v4078 = vmax.f32 %v4024, 0.0
  %v4079 = vmax.f32 %v4029, 0.0
  %v4080 = vmax.f32 %v4032, 0.0
  %v4081 = vmax.f32 %v4037, 0.0
  %v4082 = vmax.f32 %v4040, 0.0
  %v4083 = vmax.f32 %v4045, 0.0
  %v4084 = vmax.f32 %v4048, 0.0
  %v4085 = vmax.f32 %v4053, 0.0
  %v4086 = vmax.f32 %v4056, 0.0
  %v4087 = vmax.f32 %v4061, 0.0
  %v4088 = vmax.f32 %v4064, 0.0
  %v4089 = vmax.f32 %v4069, 0.0
  %v4090 = vmax.f32 %v4072, 0.0
  %v4091 = vpack.c.bf16 %v4076, %v4075
  %v4092 = vpack.c.bf16 %v4078, %v4077
  %v4093 = vpack.c.bf16 %v4080, %v4079
  %v4094 = vpack.c.bf16 %v4082, %v4081
  %v4095 = vpack.c.bf16 %v4084, %v4083
  %v4096 = vpack.c.bf16 %v4086, %v4085
  %v4097 = vpack.c.bf16 %v4088, %v4087
  %v4098 = vpack.c.bf16 %v4090, %v4089
  %v4099 = vld [vmem:[%s9] sm:$0xf]
  %v4100 = vld [vmem:[%s9 + $0x4] sm:$0xf]
  %v4101 = vld [vmem:[%s9 + $0x8] sm:$0xf]
  %v4102 = vld [vmem:[%s9 + $0xc] sm:$0xf]
  %v4103 = vld [vmem:[%s9 + $0x10] sm:$0xf]
  %v4104 = vld [vmem:[%s9 + $0x14] sm:$0xf]
  %v4105 = vld [vmem:[%s9 + $0x18] sm:$0xf]
  %v4106 = vld [vmem:[%s9 + $0x1c] sm:$0xf]
  %v4107 = vld [vmem:[%s9 + $0x20] sm:$0xf]
  %v4108 = vld [vmem:[%s9 + $0x24] sm:$0xf]
  %v4109 = vld [vmem:[%s9 + $0x28] sm:$0xf]
  %v4110 = vld [vmem:[%s9 + $0x2c] sm:$0xf]
  %v4111 = vld [vmem:[%s9 + $0x30] sm:$0xf]
  %v4112 = vld [vmem:[%s9 + $0x34] sm:$0xf]
  %v4113 = vld [vmem:[%s9 + $0x38] sm:$0xf]
  %v4114 = vld [vmem:[%s9 + $0x3c] sm:$0xf]
  %v4115 = vld [vmem:[%s10] sm:$0x1]
  %v4117 = vlaneseq
  %v4118 = vshrl.u32 %v4117, 7
  %v4119 = vsub.s32 0, %v4118
  %v4120 = vrot.slane %v4115, %v4119
  %v4138 = vunpack.c.l.b16 %v4099
  %v4139 = vunpack.c.l.b16 %v4100
  %v4140 = vunpack.c.l.b16 %v4101
  %v4141 = vunpack.c.l.b16 %v4102
  %v4142 = vunpack.c.l.b16 %v4103
  %v4143 = vunpack.c.l.b16 %v4104
  %v4144 = vunpack.c.l.b16 %v4105
  %v4145 = vunpack.c.l.b16 %v4106
  %v4146 = vunpack.c.l.b16 %v4107
  %v4147 = vunpack.c.l.b16 %v4108
  %v4148 = vunpack.c.l.b16 %v4109
  %v4149 = vunpack.c.l.b16 %v4110
  %v4150 = vunpack.c.l.b16 %v4111
  %v4151 = vunpack.c.l.b16 %v4112
  %v4152 = vunpack.c.l.b16 %v4113
  %v4153 = vunpack.c.l.b16 %v4114
  %v4154 = vpack.c.b16 %v4139, %v4138
  %v4155 = vpack.c.b16 %v4141, %v4140
  %v4156 = vpack.c.b16 %v4143, %v4142
  %v4157 = vpack.c.b16 %v4145, %v4144
  %v4158 = vpack.c.b16 %v4147, %v4146
  %v4159 = vpack.c.b16 %v4149, %v4148
  %v4160 = vpack.c.b16 %v4151, %v4150
  %v4161 = vpack.c.b16 %v4153, %v4152
  %4170 = vmatprep.subr.bf16.mxu0 0
  %4171 = vmatpush1.bf16.msra.mxu0 %v4161
  %4172 = vmatprep.subr.bf16.mxu0 0
  %4173 = vmatpush1.bf16.msra.mxu0 %v4160
  %4174 = vmatprep.subr.bf16.mxu0 0
  %4175 = vmatpush1.bf16.msra.mxu0 %v4159
  %4176 = vmatprep.subr.bf16.mxu0 0
  %4177 = vmatpush1.bf16.msra.mxu0 %v4158
  %4178 = vmatprep.subr.bf16.mxu0 0
  %4179 = vmatpush1.bf16.msra.mxu0 %v4157
  %4180 = vmatprep.subr.bf16.mxu0 0
  %4181 = vmatpush1.bf16.msra.mxu0 %v4156
  %4182 = vmatprep.subr.bf16.mxu0 0
  %4183 = vmatpush1.bf16.msra.mxu0 %v4155
  %4184 = vmatprep.subr.bf16.mxu0 0
  %4185 = vmatpush1.bf16.msra.mxu0 %v4154
  %4186 = vmatprep.subr.bf16.mxu0 0
  %4187 = vmatpush2.bf16.msra.mxu0 0
  %4188 = vmatprep.subr.bf16.mxu0 0
  %4189 = vmatpush2.bf16.msra.mxu0 0
  %4190 = vmatprep.subr.bf16.mxu0 0
  %4191 = vmatpush2.bf16.msra.mxu0 0
  %4192 = vmatprep.subr.bf16.mxu0 0
  %4193 = vmatpush2.bf16.msra.mxu0 0
  %4194 = vmatprep.subr.bf16.mxu0 0
  %4195 = vmatpush2.bf16.msra.mxu0 0
  %4196 = vmatprep.subr.bf16.mxu0 0
  %4197 = vmatpush2.bf16.msra.mxu0 0
  %4198 = vmatprep.subr.bf16.mxu0 0
  %4199 = vmatpush2.bf16.msra.mxu0 0
  %4200 = vmatprep.subr.bf16.mxu0 0
  %4201 = vmatpush2.bf16.msra.mxu0 0
  %4202 = vmatprep.mubr.bf16.mxu0 0
  %4203 = vmatmul.mubr.bf16.gmra.mxu0 %v4091
  %v4204 = vpop.f32.mrf.mxu0
  %v4205 = vadd.f32 %v4120, %v4204
  %v4206 = vpop.f32.mrf.mxu0
  %v4207 = vpop.f32.mrf.mxu0
  %v4208 = vadd.f32 %v4120, %v4207
  %v4209 = vpop.f32.mrf.mxu0
  %4210 = vmatprep.mubr.bf16.mxu0 0
  %4211 = vmatmul.mubr.bf16.gmra.mxu0 %v4092
  %v4212 = vpop.f32.mrf.mxu0
  %v4213 = vadd.f32 %v4120, %v4212
  %v4214 = vpop.f32.mrf.mxu0
  %v4215 = vpop.f32.mrf.mxu0
  %v4216 = vadd.f32 %v4120, %v4215
  %v4217 = vpop.f32.mrf.mxu0
  %4218 = vmatprep.mubr.bf16.mxu0 0
  %4219 = vmatmul.mubr.bf16.gmra.mxu0 %v4093
  %v4220 = vpop.f32.mrf.mxu0
  %v4221 = vadd.f32 %v4120, %v4220
  %v4222 = vpop.f32.mrf.mxu0
  %v4223 = vpop.f32.mrf.mxu0
  %v4224 = vadd.f32 %v4120, %v4223
  %v4225 = vpop.f32.mrf.mxu0
  %4226 = vmatprep.mubr.bf16.mxu0 0
  %4227 = vmatmul.mubr.bf16.gmra.mxu0 %v4094
  %v4228 = vpop.f32.mrf.mxu0
  %v4229 = vadd.f32 %v4120, %v4228
  %v4230 = vpop.f32.mrf.mxu0
  %v4231 = vpop.f32.mrf.mxu0
  %v4232 = vadd.f32 %v4120, %v4231
  %v4233 = vpop.f32.mrf.mxu0
  %4234 = vmatprep.mubr.bf16.mxu0 0
  %4235 = vmatmul.mubr.bf16.gmra.mxu0 %v4095
  %v4236 = vpop.f32.mrf.mxu0
  %v4237 = vadd.f32 %v4120, %v4236
  %v4238 = vpop.f32.mrf.mxu0
  %v4239 = vpop.f32.mrf.mxu0
  %v4240 = vadd.f32 %v4120, %v4239
  %v4241 = vpop.f32.mrf.mxu0
  %4242 = vmatprep.mubr.bf16.mxu0 0
  %4243 = vmatmul.mubr.bf16.gmra.mxu0 %v4096
  %v4244 = vpop.f32.mrf.mxu0
  %v4245 = vadd.f32 %v4120, %v4244
  %v4246 = vpop.f32.mrf.mxu0
  %v4247 = vpop.f32.mrf.mxu0
  %v4248 = vadd.f32 %v4120, %v4247
  %v4249 = vpop.f32.mrf.mxu0
  %4250 = vmatprep.mubr.bf16.mxu0 0
  %4251 = vmatmul.mubr.bf16.gmra.mxu0 %v4097
  %v4252 = vpop.f32.mrf.mxu0
  %v4253 = vadd.f32 %v4120, %v4252
  %v4254 = vpop.f32.mrf.mxu0
  %v4255 = vpop.f32.mrf.mxu0
  %v4256 = vadd.f32 %v4120, %v4255
  %v4257 = vpop.f32.mrf.mxu0
  %4258 = vmatprep.mubr.bf16.mxu0 0
  %4259 = vmatmul.mubr.bf16.gmra.mxu0 %v4098
  %v4260 = vpop.f32.mrf.mxu0
  %v4261 = vadd.f32 %v4120, %v4260
  %v4262 = vpop.f32.mrf.mxu0
  %v4263 = vpop.f32.mrf.mxu0
  %v4264 = vadd.f32 %v4120, %v4263
  %v4265 = vpop.f32.mrf.mxu0
  %4266 = vdwg.mxu0
  %4267 = vst [vmem:[%s11] sm:$0xff] %v4205
  %4268 = vst [vmem:[%s11 + $0x8] sm:$0xff] %v4208
  %4269 = vst [vmem:[%s11 + $0x10] sm:$0xff] %v4213
  %4270 = vst [vmem:[%s11 + $0x18] sm:$0xff] %v4216
  %4271 = vst [vmem:[%s11 + $0x20] sm:$0xff] %v4221
  %4272 = vst [vmem:[%s11 + $0x28] sm:$0xff] %v4224
  %4273 = vst [vmem:[%s11 + $0x30] sm:$0xff] %v4229
  %4274 = vst [vmem:[%s11 + $0x38] sm:$0xff] %v4232
  %4275 = vst [vmem:[%s11 + $0x40] sm:$0xff] %v4237
  %4276 = vst [vmem:[%s11 + $0x48] sm:$0xff] %v4240
  %4277 = vst [vmem:[%s11 + $0x50] sm:$0xff] %v4245
  %4278 = vst [vmem:[%s11 + $0x58] sm:$0xff] %v4248
  %4279 = vst [vmem:[%s11 + $0x60] sm:$0xff] %v4253
  %4280 = vst [vmem:[%s11 + $0x68] sm:$0xff] %v4256
  %4281 = vst [vmem:[%s11 + $0x70] sm:$0xff] %v4261
  %4282 = vst [vmem:[%s11 + $0x78] sm:$0xff] %v4264
  // Predicated region
  $region46: #{fcn_forward.1} parent=0 // pred_check
    _
  $region47: #{fcn_forward.1} parent=0 // pred_check_branch
    %4284 = sbr.rel (0) target = $region49
  $region48: #{fcn_forward.1} parent=0 // pred_region
    _
  $region49: #{fcn_forward.1} parent=0 // pred_fallthru
    _
  // Predicated region
  $region50: #{fcn_forward.1} parent=0 // pred_check
    _
  $region51: #{fcn_forward.1} parent=0 // pred_check_branch
    %4286 = sbr.rel (0) target = $region53
  $region52: #{fcn_forward.1} parent=0 // pred_region
    _
  $region53: #{fcn_forward.1} parent=0 // pred_fallthru
    _

</llo_original>
